<compile_context>
chip_gen: v7x
topology: tpu7x:2x2x1
jax: 0.10.0
libtpu: 0.0.40
codegen_flags: <defaults>
</compile_context>

<pallas_src>
import numpy as np
import jax
import jax.numpy as jnp
from jax import lax
from jax.experimental import pallas as pl
from jax.experimental.pallas import tpu as pltpu


# ----------------------------------------------------------------------------
# Fused kernel (one grid step == one image)
# ----------------------------------------------------------------------------

def _lenet_fused_kernel(x_ref, w1b_ref, b1_ref, cs1_ref, rs1_ref,
                        w2b_ref, b2_ref, cs2_ref, rs2_ref,
                        wfc1_ref, bfc1_ref, wfc2_ref, bfc2_ref,
                        wfc3_ref, bfc3_ref, out_ref):
    f32 = jnp.float32
    dot = lambda a, b: jnp.dot(a, b, preferred_element_type=f32)

    # ---- conv1 (3 -> 6, k=5, valid) as 5 banded matmuls over kernel rows ----
    # x_ref block: [1, 32, 96]  (row r, lane = w*3 + c)
    y1 = dot(x_ref[0, 0:28, :], w1b_ref[0])
    for i in range(1, 5):
        y1 = y1 + dot(x_ref[0, i:i + 28, :], w1b_ref[i])           # [28, 168]
    y1 = jnp.maximum(y1 + b1_ref[...], 0.0)                        # relu

    # ---- maxpool 2x2 via exact selection matmuls ----------------------------
    cmax = jnp.maximum(dot(y1, cs1_ref[0]), dot(y1, cs1_ref[1]))   # [28, 84]
    p1 = jnp.maximum(dot(rs1_ref[0], cmax), dot(rs1_ref[1], cmax))  # [14, 84]

    # ---- conv2 (6 -> 16, k=5, valid) ----------------------------------------
    y2 = dot(p1[0:10, :], w2b_ref[0])
    for i in range(1, 5):
        y2 = y2 + dot(p1[i:i + 10, :], w2b_ref[i])                 # [10, 160]
    y2 = jnp.maximum(y2 + b2_ref[...], 0.0)                        # relu

    # ---- maxpool 2x2 ---------------------------------------------------------
    cmax2 = jnp.maximum(dot(y2, cs2_ref[0]), dot(y2, cs2_ref[1]))  # [10, 80]
    p2 = jnp.maximum(dot(rs2_ref[0], cmax2), dot(rs2_ref[1], cmax2))  # [5, 80]

    # ---- classifier: flatten is folded into the (host-permuted) fc1 weight --
    # p2[ph, pw*16 + c]  @  wfc1[ph*80 + pw*16 + c, :]  == torch NCHW flatten
    h1 = dot(p2[0:1, :], wfc1_ref[0:80, :])
    for s in range(1, 5):
        h1 = h1 + dot(p2[s:s + 1, :], wfc1_ref[s * 80:(s + 1) * 80, :])
    h1 = jnp.maximum(h1 + bfc1_ref[...], 0.0)                      # [1, 120]
    h2 = jnp.maximum(dot(h1, wfc2_ref[...]) + bfc2_ref[...], 0.0)  # [1, 84]
    logits = dot(h2, wfc3_ref[...]) + bfc3_ref[...]                # [1, 4]

    # ---- numerically stable softmax over dim=-1 (EUP reciprocal) ------------
    m = jnp.max(logits, axis=-1, keepdims=True)
    e = jnp.exp(logits - m)
    denom = jnp.sum(e, axis=-1, keepdims=True)
    out_ref[0] = e * pl.reciprocal(denom, approx=True)


# ----------------------------------------------------------------------------
# Host-side (one-time) parameter preparation
# ----------------------------------------------------------------------------

def _conv_band(w_np, w_in):
    """torch conv weight [Cout, Cin, K, K] -> banded matrices
    [K, w_in*Cin, w_out*Cout] so that for an activation slab X with layout
    X[row, w*Cin + c], conv(X)[oh, ow*Cout + o] = sum_i X[oh+i, :] @ band[i]."""
    cout, cin, k, _ = w_np.shape
    w_out = w_in - k + 1
    band = np.zeros((k, w_in * cin, w_out * cout), np.float32)
    for i in range(k):
        for j in range(k):
            blk = w_np[:, :, i, j].T                     # [Cin, Cout]
            for ow in range(w_out):
                band[i, (ow + j) * cin:(ow + j) * cin + cin,
                     ow * cout:ow * cout + cout] += blk
    return band


def _pool_col_sel(w_in, c):
    """0/1 matrices [2, w_in*c, (w_in//2)*c] selecting even/odd width columns."""
    w_out = w_in // 2
    sel = np.zeros((2, w_in * c, w_out * c), np.float32)
    for dj in range(2):
        for pw in range(w_out):
            for ch in range(c):
                sel[dj, (2 * pw + dj) * c + ch, pw * c + ch] = 1.0
    return sel


def _pool_row_sel(h_in):
    """0/1 matrices [2, h_in//2, h_in] selecting even/odd rows."""
    h_out = h_in // 2
    sel = np.zeros((2, h_out, h_in), np.float32)
    for di in range(2):
        for p in range(h_out):
            sel[di, p, 2 * p + di] = 1.0
    return sel


def prepare_params(p):
    """Build kernel-ready constants (banded conv weights, pool selectors,
    permuted fc1 weight).  Done once, outside the hot path."""
    w1 = np.asarray(p["conv1_w"])
    w2 = np.asarray(p["conv2_w"])
    b1 = np.asarray(p["conv1_b"])
    b2 = np.asarray(p["conv2_b"])
    fc1_w = np.asarray(p["fc1_w"])

    # kernel feature order is (ph, pw, c); torch flatten of NCHW is (c, ph, pw)
    perm = np.zeros(400, np.int32)
    for ph in range(5):
        for pw in range(5):
            for c in range(16):
                perm[ph * 80 + pw * 16 + c] = c * 25 + ph * 5 + pw

    return dict(
        w1b=jnp.asarray(_conv_band(w1, 32)),            # [5, 96, 168]
        b1=jnp.asarray(np.tile(b1, 28)[None, :]),       # [1, 168]
        cs1=jnp.asarray(_pool_col_sel(28, 6)),          # [2, 168, 84]
        rs1=jnp.asarray(_pool_row_sel(28)),             # [2, 14, 28]
        w2b=jnp.asarray(_conv_band(w2, 14)),            # [5, 84, 160]
        b2=jnp.asarray(np.tile(b2, 10)[None, :]),       # [1, 160]
        cs2=jnp.asarray(_pool_col_sel(10, 16)),         # [2, 160, 80]
        rs2=jnp.asarray(_pool_row_sel(10)),             # [2, 5, 10]
        wfc1=jnp.asarray(fc1_w[perm, :]),               # [400, 120]
        bfc1=jnp.asarray(p["fc1_b"]).reshape(1, -1),
        wfc2=jnp.asarray(p["fc2_w"]),
        bfc2=jnp.asarray(p["fc2_b"]).reshape(1, -1),
        wfc3=jnp.asarray(p["fc3_w"]),
        bfc3=jnp.asarray(p["fc3_b"]).reshape(1, -1),
    )


# ----------------------------------------------------------------------------
# Forward (single fused pallas_call, batch-parallel grid)
# ----------------------------------------------------------------------------

@jax.jit
def forward(x_nchw, kp):
    """x_nchw: [B, 3, 32, 32] float32 -> [B, 4] softmax probabilities."""
    B = x_nchw.shape[0]
    # NCHW -> [B, 32, 96] slabs with lane index w*3 + c (layout prep only).
    x2 = jnp.transpose(x_nchw.astype(jnp.float32), (0, 2, 3, 1)).reshape(B, 32, 96)

    consts = (kp["w1b"], kp["b1"], kp["cs1"], kp["rs1"],
              kp["w2b"], kp["b2"], kp["cs2"], kp["rs2"],
              kp["wfc1"], kp["bfc1"], kp["wfc2"], kp["bfc2"],
              kp["wfc3"], kp["bfc3"])

    def const_spec(a):
        n = a.ndim
        return pl.BlockSpec(a.shape, lambda b, _n=n: (0,) * _n)

    out = pl.pallas_call(
        _lenet_fused_kernel,
        out_shape=jax.ShapeDtypeStruct((B, 1, 4), jnp.float32),
        grid=(B,),
        in_specs=[pl.BlockSpec((1, 32, 96), lambda b: (b, 0, 0))]
                 + [const_spec(a) for a in consts],
        out_specs=pl.BlockSpec((1, 1, 4), lambda b: (b, 0, 0)),
        compiler_params=pltpu.CompilerParams(
            dimension_semantics=("parallel",)),
    )(x2, *consts)
    return out.reshape(B, 4)


# ----------------------------------------------------------------------------
# Parameters + pure-JAX reference
# ----------------------------------------------------------------------------

def init_params(key):
    ks = jax.random.split(key, 10)
    f32 = jnp.float32
    return {
        "conv1_w": 0.1 * jax.random.normal(ks[0], (6, 3, 5, 5), f32),
        "conv1_b": 0.1 * jax.random.normal(ks[1], (6,), f32),
        "conv2_w": 0.1 * jax.random.normal(ks[2], (16, 6, 5, 5), f32),
        "conv2_b": 0.1 * jax.random.normal(ks[3], (16,), f32),
        "fc1_w": 0.1 * jax.random.normal(ks[4], (400, 120), f32),
        "fc1_b": 0.1 * jax.random.normal(ks[5], (120,), f32),
        "fc2_w": 0.1 * jax.random.normal(ks[6], (120, 84), f32),
        "fc2_b": 0.1 * jax.random.normal(ks[7], (84,), f32),
        "fc3_w": 0.1 * jax.random.normal(ks[8], (84, 4), f32),
        "fc3_b": 0.1 * jax.random.normal(ks[9], (4,), f32),
    }


def forward_ref(x_nchw, p):
    x = x_nchw.astype(jnp.float32)
    y = lax.conv_general_dilated(x, p["conv1_w"], (1, 1), "VALID",
                                 dimension_numbers=("NCHW", "OIHW", "NCHW"))
    y = jnp.maximum(y + p["conv1_b"][None, :, None, None], 0.0)
    y = lax.reduce_window(y, -jnp.inf, lax.max, (1, 1, 2, 2), (1, 1, 2, 2), "VALID")
    y = lax.conv_general_dilated(y, p["conv2_w"], (1, 1), "VALID",
                                 dimension_numbers=("NCHW", "OIHW", "NCHW"))
    y = jnp.maximum(y + p["conv2_b"][None, :, None, None], 0.0)
    y = lax.reduce_window(y, -jnp.inf, lax.max, (1, 1, 2, 2), (1, 1, 2, 2), "VALID")
    feat = y.reshape(y.shape[0], 16 * 5 * 5)
    h = jnp.maximum(feat @ p["fc1_w"] + p["fc1_b"], 0.0)
    h = jnp.maximum(h @ p["fc2_w"] + p["fc2_b"], 0.0)
    logits = h @ p["fc3_w"] + p["fc3_b"]
    return jax.nn.softmax(logits, axis=-1)


if __name__ == "__main__":
    key = jax.random.PRNGKey(0)
    k_params, k_x = jax.random.split(key)

    params = init_params(k_params)
    kparams = prepare_params(params)
    x = jax.random.normal(k_x, (2, 3, 32, 32), jnp.float32)

    out = jax.block_until_ready(forward(x, kparams))
    ref = jax.block_until_ready(forward_ref(x, params))

    assert out.shape == (2, 4)
    # Tolerance covers the approximate EUP reciprocal used in the softmax.
    assert jnp.allclose(jnp.sum(out, axis=-1), 1.0, atol=1e-2)
    assert jnp.allclose(out, ref, atol=1e-2, rtol=1e-2)

    print("KERNEL_OK")
</pallas_src>

<mosaic_0001>
module attributes {stable_mosaic.version = 11 : i64} {
  func.func @_lenet_fused_kernel(%arg0: i32, %arg1: memref<1x32x96xf32, #tpu.memory_space<vmem>>, %arg2: memref<5x96x168xf32, #tpu.memory_space<vmem>>, %arg3: memref<1x168xf32, #tpu.memory_space<vmem>>, %arg4: memref<2x168x84xf32, #tpu.memory_space<vmem>>, %arg5: memref<2x14x28xf32, #tpu.memory_space<vmem>>, %arg6: memref<5x84x160xf32, #tpu.memory_space<vmem>>, %arg7: memref<1x160xf32, #tpu.memory_space<vmem>>, %arg8: memref<2x160x80xf32, #tpu.memory_space<vmem>>, %arg9: memref<2x5x10xf32, #tpu.memory_space<vmem>>, %arg10: memref<400x120xf32, #tpu.memory_space<vmem>>, %arg11: memref<1x120xf32, #tpu.memory_space<vmem>>, %arg12: memref<120x84xf32, #tpu.memory_space<vmem>>, %arg13: memref<1x84xf32, #tpu.memory_space<vmem>>, %arg14: memref<84x4xf32, #tpu.memory_space<vmem>>, %arg15: memref<1x4xf32, #tpu.memory_space<vmem>>, %arg16: memref<1x1x4xf32, #tpu.memory_space<vmem>>) attributes {dimension_semantics = [#tpu.dimension_semantics<parallel>], iteration_bounds = array<i64: 2>, scalar_prefetch = 0 : i64, scratch_operands = 0 : i64, tpu.core_type = #tpu.core_type<tc>, window_params = [{transform_indices = @transform_0, window_bounds = array<i64: 1, 32, 96>}, {pipeline_mode = #tpu.pipeline_mode<synchronous>, transform_indices = @transform_1, window_bounds = array<i64: 5, 96, 168>}, {pipeline_mode = #tpu.pipeline_mode<synchronous>, transform_indices = @transform_2, window_bounds = array<i64: 1, 168>}, {pipeline_mode = #tpu.pipeline_mode<synchronous>, transform_indices = @transform_3, window_bounds = array<i64: 2, 168, 84>}, {pipeline_mode = #tpu.pipeline_mode<synchronous>, transform_indices = @transform_4, window_bounds = array<i64: 2, 14, 28>}, {pipeline_mode = #tpu.pipeline_mode<synchronous>, transform_indices = @transform_5, window_bounds = array<i64: 5, 84, 160>}, {pipeline_mode = #tpu.pipeline_mode<synchronous>, transform_indices = @transform_6, window_bounds = array<i64: 1, 160>}, {pipeline_mode = #tpu.pipeline_mode<synchronous>, transform_indices = @transform_7, window_bounds = array<i64: 2, 160, 80>}, {pipeline_mode = #tpu.pipeline_mode<synchronous>, transform_indices = @transform_8, window_bounds = array<i64: 2, 5, 10>}, {pipeline_mode = #tpu.pipeline_mode<synchronous>, transform_indices = @transform_9, window_bounds = array<i64: 400, 120>}, {pipeline_mode = #tpu.pipeline_mode<synchronous>, transform_indices = @transform_10, window_bounds = array<i64: 1, 120>}, {pipeline_mode = #tpu.pipeline_mode<synchronous>, transform_indices = @transform_11, window_bounds = array<i64: 120, 84>}, {pipeline_mode = #tpu.pipeline_mode<synchronous>, transform_indices = @transform_12, window_bounds = array<i64: 1, 84>}, {pipeline_mode = #tpu.pipeline_mode<synchronous>, transform_indices = @transform_13, window_bounds = array<i64: 84, 4>}, {pipeline_mode = #tpu.pipeline_mode<synchronous>, transform_indices = @transform_14, window_bounds = array<i64: 1, 4>}, {transform_indices = @transform_15, window_bounds = array<i64: 1, 1, 4>}]} {
    %c0 = arith.constant 0 : index
    %c0_0 = arith.constant 0 : index
    %c0_1 = arith.constant 0 : index
    %0 = vector.load %arg1[%c0, %c0_0, %c0_1] : memref<1x32x96xf32, #tpu.memory_space<vmem>>, vector<1x28x96xf32>
    %1 = vector.shape_cast %0 : vector<1x28x96xf32> to vector<28x96xf32>
    %c0_2 = arith.constant 0 : index
    %c0_3 = arith.constant 0 : index
    %c0_4 = arith.constant 0 : index
    %2 = vector.load %arg2[%c0_2, %c0_3, %c0_4] : memref<5x96x168xf32, #tpu.memory_space<vmem>>, vector<1x96x168xf32>
    %3 = vector.shape_cast %2 : vector<1x96x168xf32> to vector<96x168xf32>
    %cst = arith.constant dense<0.000000e+00> : vector<28x168xf32>
    %4 = tpu.matmul %1, %3, %cst {dimension_numbers = #tpu.dot_dimension_numbers<[1], [0], [0], [1], [0, 0, 1, 1], [], []>} : vector<28x96xf32>, vector<96x168xf32>, vector<28x168xf32> -> vector<28x168xf32>
    %c0_5 = arith.constant 0 : index
    %c1 = arith.constant 1 : index
    %c0_6 = arith.constant 0 : index
    %5 = vector.load %arg1[%c0_5, %c1, %c0_6] : memref<1x32x96xf32, #tpu.memory_space<vmem>>, vector<1x28x96xf32>
    %6 = vector.shape_cast %5 : vector<1x28x96xf32> to vector<28x96xf32>
    %c1_7 = arith.constant 1 : index
    %c0_8 = arith.constant 0 : index
    %c0_9 = arith.constant 0 : index
    %7 = vector.load %arg2[%c1_7, %c0_8, %c0_9] : memref<5x96x168xf32, #tpu.memory_space<vmem>>, vector<1x96x168xf32>
    %8 = vector.shape_cast %7 : vector<1x96x168xf32> to vector<96x168xf32>
    %cst_10 = arith.constant dense<0.000000e+00> : vector<28x168xf32>
    %9 = tpu.matmul %6, %8, %cst_10 {dimension_numbers = #tpu.dot_dimension_numbers<[1], [0], [0], [1], [0, 0, 1, 1], [], []>} : vector<28x96xf32>, vector<96x168xf32>, vector<28x168xf32> -> vector<28x168xf32>
    %10 = arith.addf %4, %9 : vector<28x168xf32>
    %c0_11 = arith.constant 0 : index
    %c2 = arith.constant 2 : index
    %c0_12 = arith.constant 0 : index
    %11 = vector.load %arg1[%c0_11, %c2, %c0_12] : memref<1x32x96xf32, #tpu.memory_space<vmem>>, vector<1x28x96xf32>
    %12 = vector.shape_cast %11 : vector<1x28x96xf32> to vector<28x96xf32>
    %c2_13 = arith.constant 2 : index
    %c0_14 = arith.constant 0 : index
    %c0_15 = arith.constant 0 : index
    %13 = vector.load %arg2[%c2_13, %c0_14, %c0_15] : memref<5x96x168xf32, #tpu.memory_space<vmem>>, vector<1x96x168xf32>
    %14 = vector.shape_cast %13 : vector<1x96x168xf32> to vector<96x168xf32>
    %cst_16 = arith.constant dense<0.000000e+00> : vector<28x168xf32>
    %15 = tpu.matmul %12, %14, %cst_16 {dimension_numbers = #tpu.dot_dimension_numbers<[1], [0], [0], [1], [0, 0, 1, 1], [], []>} : vector<28x96xf32>, vector<96x168xf32>, vector<28x168xf32> -> vector<28x168xf32>
    %16 = arith.addf %10, %15 : vector<28x168xf32>
    %c0_17 = arith.constant 0 : index
    %c3 = arith.constant 3 : index
    %c0_18 = arith.constant 0 : index
    %17 = vector.load %arg1[%c0_17, %c3, %c0_18] : memref<1x32x96xf32, #tpu.memory_space<vmem>>, vector<1x28x96xf32>
    %18 = vector.shape_cast %17 : vector<1x28x96xf32> to vector<28x96xf32>
    %c3_19 = arith.constant 3 : index
    %c0_20 = arith.constant 0 : index
    %c0_21 = arith.constant 0 : index
    %19 = vector.load %arg2[%c3_19, %c0_20, %c0_21] : memref<5x96x168xf32, #tpu.memory_space<vmem>>, vector<1x96x168xf32>
    %20 = vector.shape_cast %19 : vector<1x96x168xf32> to vector<96x168xf32>
    %cst_22 = arith.constant dense<0.000000e+00> : vector<28x168xf32>
    %21 = tpu.matmul %18, %20, %cst_22 {dimension_numbers = #tpu.dot_dimension_numbers<[1], [0], [0], [1], [0, 0, 1, 1], [], []>} : vector<28x96xf32>, vector<96x168xf32>, vector<28x168xf32> -> vector<28x168xf32>
    %22 = arith.addf %16, %21 : vector<28x168xf32>
    %c0_23 = arith.constant 0 : index
    %c4 = arith.constant 4 : index
    %c0_24 = arith.constant 0 : index
    %23 = vector.load %arg1[%c0_23, %c4, %c0_24] : memref<1x32x96xf32, #tpu.memory_space<vmem>>, vector<1x28x96xf32>
    %24 = vector.shape_cast %23 : vector<1x28x96xf32> to vector<28x96xf32>
    %c4_25 = arith.constant 4 : index
    %c0_26 = arith.constant 0 : index
    %c0_27 = arith.constant 0 : index
    %25 = vector.load %arg2[%c4_25, %c0_26, %c0_27] : memref<5x96x168xf32, #tpu.memory_space<vmem>>, vector<1x96x168xf32>
    %26 = vector.shape_cast %25 : vector<1x96x168xf32> to vector<96x168xf32>
    %cst_28 = arith.constant dense<0.000000e+00> : vector<28x168xf32>
    %27 = tpu.matmul %24, %26, %cst_28 {dimension_numbers = #tpu.dot_dimension_numbers<[1], [0], [0], [1], [0, 0, 1, 1], [], []>} : vector<28x96xf32>, vector<96x168xf32>, vector<28x168xf32> -> vector<28x168xf32>
    %28 = arith.addf %22, %27 : vector<28x168xf32>
    %c0_29 = arith.constant 0 : index
    %c0_30 = arith.constant 0 : index
    %29 = vector.load %arg3[%c0_29, %c0_30] : memref<1x168xf32, #tpu.memory_space<vmem>>, vector<1x168xf32>
    %30 = vector.broadcast %29 : vector<1x168xf32> to vector<28x168xf32>
    %31 = arith.addf %28, %30 : vector<28x168xf32>
    %cst_31 = arith.constant 0.000000e+00 : f32
    %32 = vector.broadcast %cst_31 : f32 to vector<28x168xf32>
    %33 = arith.maximumf %31, %32 : vector<28x168xf32>
    %c0_32 = arith.constant 0 : index
    %c0_33 = arith.constant 0 : index
    %c0_34 = arith.constant 0 : index
    %34 = vector.load %arg4[%c0_32, %c0_33, %c0_34] : memref<2x168x84xf32, #tpu.memory_space<vmem>>, vector<1x168x84xf32>
    %35 = vector.shape_cast %34 : vector<1x168x84xf32> to vector<168x84xf32>
    %cst_35 = arith.constant dense<0.000000e+00> : vector<28x84xf32>
    %36 = tpu.matmul %33, %35, %cst_35 {dimension_numbers = #tpu.dot_dimension_numbers<[1], [0], [0], [1], [0, 0, 1, 1], [], []>} : vector<28x168xf32>, vector<168x84xf32>, vector<28x84xf32> -> vector<28x84xf32>
    %c1_36 = arith.constant 1 : index
    %c0_37 = arith.constant 0 : index
    %c0_38 = arith.constant 0 : index
    %37 = vector.load %arg4[%c1_36, %c0_37, %c0_38] : memref<2x168x84xf32, #tpu.memory_space<vmem>>, vector<1x168x84xf32>
    %38 = vector.shape_cast %37 : vector<1x168x84xf32> to vector<168x84xf32>
    %cst_39 = arith.constant dense<0.000000e+00> : vector<28x84xf32>
    %39 = tpu.matmul %33, %38, %cst_39 {dimension_numbers = #tpu.dot_dimension_numbers<[1], [0], [0], [1], [0, 0, 1, 1], [], []>} : vector<28x168xf32>, vector<168x84xf32>, vector<28x84xf32> -> vector<28x84xf32>
    %40 = arith.maximumf %36, %39 : vector<28x84xf32>
    %c0_40 = arith.constant 0 : index
    %c0_41 = arith.constant 0 : index
    %c0_42 = arith.constant 0 : index
    %41 = vector.load %arg5[%c0_40, %c0_41, %c0_42] : memref<2x14x28xf32, #tpu.memory_space<vmem>>, vector<1x14x28xf32>
    %42 = vector.shape_cast %41 : vector<1x14x28xf32> to vector<14x28xf32>
    %cst_43 = arith.constant dense<0.000000e+00> : vector<14x84xf32>
    %43 = tpu.matmul %42, %40, %cst_43 {dimension_numbers = #tpu.dot_dimension_numbers<[1], [0], [0], [1], [0, 0, 1, 1], [], []>} : vector<14x28xf32>, vector<28x84xf32>, vector<14x84xf32> -> vector<14x84xf32>
    %c1_44 = arith.constant 1 : index
    %c0_45 = arith.constant 0 : index
    %c0_46 = arith.constant 0 : index
    %44 = vector.load %arg5[%c1_44, %c0_45, %c0_46] : memref<2x14x28xf32, #tpu.memory_space<vmem>>, vector<1x14x28xf32>
    %45 = vector.shape_cast %44 : vector<1x14x28xf32> to vector<14x28xf32>
    %cst_47 = arith.constant dense<0.000000e+00> : vector<14x84xf32>
    %46 = tpu.matmul %45, %40, %cst_47 {dimension_numbers = #tpu.dot_dimension_numbers<[1], [0], [0], [1], [0, 0, 1, 1], [], []>} : vector<14x28xf32>, vector<28x84xf32>, vector<14x84xf32> -> vector<14x84xf32>
    %47 = arith.maximumf %43, %46 : vector<14x84xf32>
    %48 = vector.extract_strided_slice %47 {offsets = [0, 0], sizes = [10, 84], strides = [1, 1]} : vector<14x84xf32> to vector<10x84xf32>
    %c0_48 = arith.constant 0 : index
    %c0_49 = arith.constant 0 : index
    %c0_50 = arith.constant 0 : index
    %49 = vector.load %arg6[%c0_48, %c0_49, %c0_50] : memref<5x84x160xf32, #tpu.memory_space<vmem>>, vector<1x84x160xf32>
    %50 = vector.shape_cast %49 : vector<1x84x160xf32> to vector<84x160xf32>
    %cst_51 = arith.constant dense<0.000000e+00> : vector<10x160xf32>
    %51 = tpu.matmul %48, %50, %cst_51 {dimension_numbers = #tpu.dot_dimension_numbers<[1], [0], [0], [1], [0, 0, 1, 1], [], []>} : vector<10x84xf32>, vector<84x160xf32>, vector<10x160xf32> -> vector<10x160xf32>
    %52 = vector.extract_strided_slice %47 {offsets = [1, 0], sizes = [10, 84], strides = [1, 1]} : vector<14x84xf32> to vector<10x84xf32>
    %c1_52 = arith.constant 1 : index
    %c0_53 = arith.constant 0 : index
    %c0_54 = arith.constant 0 : index
    %53 = vector.load %arg6[%c1_52, %c0_53, %c0_54] : memref<5x84x160xf32, #tpu.memory_space<vmem>>, vector<1x84x160xf32>
    %54 = vector.shape_cast %53 : vector<1x84x160xf32> to vector<84x160xf32>
    %cst_55 = arith.constant dense<0.000000e+00> : vector<10x160xf32>
    %55 = tpu.matmul %52, %54, %cst_55 {dimension_numbers = #tpu.dot_dimension_numbers<[1], [0], [0], [1], [0, 0, 1, 1], [], []>} : vector<10x84xf32>, vector<84x160xf32>, vector<10x160xf32> -> vector<10x160xf32>
    %56 = arith.addf %51, %55 : vector<10x160xf32>
    %57 = vector.extract_strided_slice %47 {offsets = [2, 0], sizes = [10, 84], strides = [1, 1]} : vector<14x84xf32> to vector<10x84xf32>
    %c2_56 = arith.constant 2 : index
    %c0_57 = arith.constant 0 : index
    %c0_58 = arith.constant 0 : index
    %58 = vector.load %arg6[%c2_56, %c0_57, %c0_58] : memref<5x84x160xf32, #tpu.memory_space<vmem>>, vector<1x84x160xf32>
    %59 = vector.shape_cast %58 : vector<1x84x160xf32> to vector<84x160xf32>
    %cst_59 = arith.constant dense<0.000000e+00> : vector<10x160xf32>
    %60 = tpu.matmul %57, %59, %cst_59 {dimension_numbers = #tpu.dot_dimension_numbers<[1], [0], [0], [1], [0, 0, 1, 1], [], []>} : vector<10x84xf32>, vector<84x160xf32>, vector<10x160xf32> -> vector<10x160xf32>
    %61 = arith.addf %56, %60 : vector<10x160xf32>
    %62 = vector.extract_strided_slice %47 {offsets = [3, 0], sizes = [10, 84], strides = [1, 1]} : vector<14x84xf32> to vector<10x84xf32>
    %c3_60 = arith.constant 3 : index
    %c0_61 = arith.constant 0 : index
    %c0_62 = arith.constant 0 : index
    %63 = vector.load %arg6[%c3_60, %c0_61, %c0_62] : memref<5x84x160xf32, #tpu.memory_space<vmem>>, vector<1x84x160xf32>
    %64 = vector.shape_cast %63 : vector<1x84x160xf32> to vector<84x160xf32>
    %cst_63 = arith.constant dense<0.000000e+00> : vector<10x160xf32>
    %65 = tpu.matmul %62, %64, %cst_63 {dimension_numbers = #tpu.dot_dimension_numbers<[1], [0], [0], [1], [0, 0, 1, 1], [], []>} : vector<10x84xf32>, vector<84x160xf32>, vector<10x160xf32> -> vector<10x160xf32>
    %66 = arith.addf %61, %65 : vector<10x160xf32>
    %67 = vector.extract_strided_slice %47 {offsets = [4, 0], sizes = [10, 84], strides = [1, 1]} : vector<14x84xf32> to vector<10x84xf32>
    %c4_64 = arith.constant 4 : index
    %c0_65 = arith.constant 0 : index
    %c0_66 = arith.constant 0 : index
    %68 = vector.load %arg6[%c4_64, %c0_65, %c0_66] : memref<5x84x160xf32, #tpu.memory_space<vmem>>, vector<1x84x160xf32>
    %69 = vector.shape_cast %68 : vector<1x84x160xf32> to vector<84x160xf32>
    %cst_67 = arith.constant dense<0.000000e+00> : vector<10x160xf32>
    %70 = tpu.matmul %67, %69, %cst_67 {dimension_numbers = #tpu.dot_dimension_numbers<[1], [0], [0], [1], [0, 0, 1, 1], [], []>} : vector<10x84xf32>, vector<84x160xf32>, vector<10x160xf32> -> vector<10x160xf32>
    %71 = arith.addf %66, %70 : vector<10x160xf32>
    %c0_68 = arith.constant 0 : index
    %c0_69 = arith.constant 0 : index
    %72 = vector.load %arg7[%c0_68, %c0_69] : memref<1x160xf32, #tpu.memory_space<vmem>>, vector<1x160xf32>
    %73 = vector.broadcast %72 : vector<1x160xf32> to vector<10x160xf32>
    %74 = arith.addf %71, %73 : vector<10x160xf32>
    %cst_70 = arith.constant 0.000000e+00 : f32
    %75 = vector.broadcast %cst_70 : f32 to vector<10x160xf32>
    %76 = arith.maximumf %74, %75 : vector<10x160xf32>
    %c0_71 = arith.constant 0 : index
    %c0_72 = arith.constant 0 : index
    %c0_73 = arith.constant 0 : index
    %77 = vector.load %arg8[%c0_71, %c0_72, %c0_73] : memref<2x160x80xf32, #tpu.memory_space<vmem>>, vector<1x160x80xf32>
    %78 = vector.shape_cast %77 : vector<1x160x80xf32> to vector<160x80xf32>
    %cst_74 = arith.constant dense<0.000000e+00> : vector<10x80xf32>
    %79 = tpu.matmul %76, %78, %cst_74 {dimension_numbers = #tpu.dot_dimension_numbers<[1], [0], [0], [1], [0, 0, 1, 1], [], []>} : vector<10x160xf32>, vector<160x80xf32>, vector<10x80xf32> -> vector<10x80xf32>
    %c1_75 = arith.constant 1 : index
    %c0_76 = arith.constant 0 : index
    %c0_77 = arith.constant 0 : index
    %80 = vector.load %arg8[%c1_75, %c0_76, %c0_77] : memref<2x160x80xf32, #tpu.memory_space<vmem>>, vector<1x160x80xf32>
    %81 = vector.shape_cast %80 : vector<1x160x80xf32> to vector<160x80xf32>
    %cst_78 = arith.constant dense<0.000000e+00> : vector<10x80xf32>
    %82 = tpu.matmul %76, %81, %cst_78 {dimension_numbers = #tpu.dot_dimension_numbers<[1], [0], [0], [1], [0, 0, 1, 1], [], []>} : vector<10x160xf32>, vector<160x80xf32>, vector<10x80xf32> -> vector<10x80xf32>
    %83 = arith.maximumf %79, %82 : vector<10x80xf32>
    %c0_79 = arith.constant 0 : index
    %c0_80 = arith.constant 0 : index
    %c0_81 = arith.constant 0 : index
    %84 = vector.load %arg9[%c0_79, %c0_80, %c0_81] : memref<2x5x10xf32, #tpu.memory_space<vmem>>, vector<1x5x10xf32>
    %85 = vector.shape_cast %84 : vector<1x5x10xf32> to vector<5x10xf32>
    %cst_82 = arith.constant dense<0.000000e+00> : vector<5x80xf32>
    %86 = tpu.matmul %85, %83, %cst_82 {dimension_numbers = #tpu.dot_dimension_numbers<[1], [0], [0], [1], [0, 0, 1, 1], [], []>} : vector<5x10xf32>, vector<10x80xf32>, vector<5x80xf32> -> vector<5x80xf32>
    %c1_83 = arith.constant 1 : index
    %c0_84 = arith.constant 0 : index
    %c0_85 = arith.constant 0 : index
    %87 = vector.load %arg9[%c1_83, %c0_84, %c0_85] : memref<2x5x10xf32, #tpu.memory_space<vmem>>, vector<1x5x10xf32>
    %88 = vector.shape_cast %87 : vector<1x5x10xf32> to vector<5x10xf32>
    %cst_86 = arith.constant dense<0.000000e+00> : vector<5x80xf32>
    %89 = tpu.matmul %88, %83, %cst_86 {dimension_numbers = #tpu.dot_dimension_numbers<[1], [0], [0], [1], [0, 0, 1, 1], [], []>} : vector<5x10xf32>, vector<10x80xf32>, vector<5x80xf32> -> vector<5x80xf32>
    %90 = arith.maximumf %86, %89 : vector<5x80xf32>
    %91 = vector.extract_strided_slice %90 {offsets = [0, 0], sizes = [1, 80], strides = [1, 1]} : vector<5x80xf32> to vector<1x80xf32>
    %c0_87 = arith.constant 0 : index
    %c0_88 = arith.constant 0 : index
    %92 = vector.load %arg10[%c0_87, %c0_88] : memref<400x120xf32, #tpu.memory_space<vmem>>, vector<80x120xf32>
    %cst_89 = arith.constant dense<0.000000e+00> : vector<1x120xf32>
    %93 = tpu.matmul %91, %92, %cst_89 {dimension_numbers = #tpu.dot_dimension_numbers<[1], [0], [0], [1], [0, 0, 1, 1], [], []>} : vector<1x80xf32>, vector<80x120xf32>, vector<1x120xf32> -> vector<1x120xf32>
    %94 = vector.extract_strided_slice %90 {offsets = [1, 0], sizes = [1, 80], strides = [1, 1]} : vector<5x80xf32> to vector<1x80xf32>
    %c80 = arith.constant 80 : index
    %c0_90 = arith.constant 0 : index
    %95 = vector.load %arg10[%c80, %c0_90] : memref<400x120xf32, #tpu.memory_space<vmem>>, vector<80x120xf32>
    %cst_91 = arith.constant dense<0.000000e+00> : vector<1x120xf32>
    %96 = tpu.matmul %94, %95, %cst_91 {dimension_numbers = #tpu.dot_dimension_numbers<[1], [0], [0], [1], [0, 0, 1, 1], [], []>} : vector<1x80xf32>, vector<80x120xf32>, vector<1x120xf32> -> vector<1x120xf32>
    %97 = arith.addf %93, %96 : vector<1x120xf32>
    %98 = vector.extract_strided_slice %90 {offsets = [2, 0], sizes = [1, 80], strides = [1, 1]} : vector<5x80xf32> to vector<1x80xf32>
    %c160 = arith.constant 160 : index
    %c0_92 = arith.constant 0 : index
    %99 = vector.load %arg10[%c160, %c0_92] : memref<400x120xf32, #tpu.memory_space<vmem>>, vector<80x120xf32>
    %cst_93 = arith.constant dense<0.000000e+00> : vector<1x120xf32>
    %100 = tpu.matmul %98, %99, %cst_93 {dimension_numbers = #tpu.dot_dimension_numbers<[1], [0], [0], [1], [0, 0, 1, 1], [], []>} : vector<1x80xf32>, vector<80x120xf32>, vector<1x120xf32> -> vector<1x120xf32>
    %101 = arith.addf %97, %100 : vector<1x120xf32>
    %102 = vector.extract_strided_slice %90 {offsets = [3, 0], sizes = [1, 80], strides = [1, 1]} : vector<5x80xf32> to vector<1x80xf32>
    %c240 = arith.constant 240 : index
    %c0_94 = arith.constant 0 : index
    %103 = vector.load %arg10[%c240, %c0_94] : memref<400x120xf32, #tpu.memory_space<vmem>>, vector<80x120xf32>
    %cst_95 = arith.constant dense<0.000000e+00> : vector<1x120xf32>
    %104 = tpu.matmul %102, %103, %cst_95 {dimension_numbers = #tpu.dot_dimension_numbers<[1], [0], [0], [1], [0, 0, 1, 1], [], []>} : vector<1x80xf32>, vector<80x120xf32>, vector<1x120xf32> -> vector<1x120xf32>
    %105 = arith.addf %101, %104 : vector<1x120xf32>
    %106 = vector.extract_strided_slice %90 {offsets = [4, 0], sizes = [1, 80], strides = [1, 1]} : vector<5x80xf32> to vector<1x80xf32>
    %c320 = arith.constant 320 : index
    %c0_96 = arith.constant 0 : index
    %107 = vector.load %arg10[%c320, %c0_96] : memref<400x120xf32, #tpu.memory_space<vmem>>, vector<80x120xf32>
    %cst_97 = arith.constant dense<0.000000e+00> : vector<1x120xf32>
    %108 = tpu.matmul %106, %107, %cst_97 {dimension_numbers = #tpu.dot_dimension_numbers<[1], [0], [0], [1], [0, 0, 1, 1], [], []>} : vector<1x80xf32>, vector<80x120xf32>, vector<1x120xf32> -> vector<1x120xf32>
    %109 = arith.addf %105, %108 : vector<1x120xf32>
    %c0_98 = arith.constant 0 : index
    %c0_99 = arith.constant 0 : index
    %110 = vector.load %arg11[%c0_98, %c0_99] : memref<1x120xf32, #tpu.memory_space<vmem>>, vector<1x120xf32>
    %111 = arith.addf %109, %110 : vector<1x120xf32>
    %cst_100 = arith.constant 0.000000e+00 : f32
    %112 = vector.broadcast %cst_100 : f32 to vector<1x120xf32>
    %113 = arith.maximumf %111, %112 : vector<1x120xf32>
    %c0_101 = arith.constant 0 : index
    %c0_102 = arith.constant 0 : index
    %114 = vector.load %arg12[%c0_101, %c0_102] : memref<120x84xf32, #tpu.memory_space<vmem>>, vector<120x84xf32>
    %cst_103 = arith.constant dense<0.000000e+00> : vector<1x84xf32>
    %115 = tpu.matmul %113, %114, %cst_103 {dimension_numbers = #tpu.dot_dimension_numbers<[1], [0], [0], [1], [0, 0, 1, 1], [], []>} : vector<1x120xf32>, vector<120x84xf32>, vector<1x84xf32> -> vector<1x84xf32>
    %c0_104 = arith.constant 0 : index
    %c0_105 = arith.constant 0 : index
    %116 = vector.load %arg13[%c0_104, %c0_105] : memref<1x84xf32, #tpu.memory_space<vmem>>, vector<1x84xf32>
    %117 = arith.addf %115, %116 : vector<1x84xf32>
    %cst_106 = arith.constant 0.000000e+00 : f32
    %118 = vector.broadcast %cst_106 : f32 to vector<1x84xf32>
    %119 = arith.maximumf %117, %118 : vector<1x84xf32>
    %c0_107 = arith.constant 0 : index
    %c0_108 = arith.constant 0 : index
    %120 = vector.load %arg14[%c0_107, %c0_108] : memref<84x4xf32, #tpu.memory_space<vmem>>, vector<84x4xf32>
    %cst_109 = arith.constant dense<0.000000e+00> : vector<1x4xf32>
    %121 = tpu.matmul %119, %120, %cst_109 {dimension_numbers = #tpu.dot_dimension_numbers<[1], [0], [0], [1], [0, 0, 1, 1], [], []>} : vector<1x84xf32>, vector<84x4xf32>, vector<1x4xf32> -> vector<1x4xf32>
    %c0_110 = arith.constant 0 : index
    %c0_111 = arith.constant 0 : index
    %122 = vector.load %arg15[%c0_110, %c0_111] : memref<1x4xf32, #tpu.memory_space<vmem>>, vector<1x4xf32>
    %123 = arith.addf %121, %122 : vector<1x4xf32>
    %cst_112 = arith.constant dense<0xFF800000> : vector<1xf32>
    %124 = vector.multi_reduction <maximumf>, %123, %cst_112 [1] : vector<1x4xf32> to vector<1xf32>
    %125 = vector.shape_cast %124 : vector<1xf32> to vector<1x1xf32>
    %126 = vector.broadcast %125 : vector<1x1xf32> to vector<1x4xf32>
    %127 = arith.subf %123, %126 : vector<1x4xf32>
    %128 = math.exp %127 : vector<1x4xf32>
    %cst_113 = arith.constant dense<0.000000e+00> : vector<1xf32>
    %129 = vector.multi_reduction <add>, %128, %cst_113 [1] : vector<1x4xf32> to vector<1xf32>
    %130 = vector.shape_cast %129 : vector<1xf32> to vector<1x1xf32>
    %131 = tpu.reciprocal %130 {approx = true} : vector<1x1xf32> -> vector<1x1xf32>
    %132 = vector.broadcast %131 : vector<1x1xf32> to vector<1x4xf32>
    %133 = arith.mulf %128, %132 : vector<1x4xf32>
    %c0_114 = arith.constant 0 : index
    %c0_115 = arith.constant 0 : index
    %c0_116 = arith.constant 0 : index
    %134 = vector.load %arg16[%c0_114, %c0_115, %c0_116] : memref<1x1x4xf32, #tpu.memory_space<vmem>>, vector<1x1x4xf32>
    %135 = vector.shape_cast %134 : vector<1x1x4xf32> to vector<1x4xf32>
    %136 = vector.shape_cast %133 : vector<1x4xf32> to vector<1x1x4xf32>
    tpu.vector_store %arg16[%c0_114, %c0_115, %c0_116], %136 {strides = array<i32>} : memref<1x1x4xf32, #tpu.memory_space<vmem>>, vector<1x1x4xf32>,
    return
  }
  func.func @transform_0(%arg0: i32) -> (i32, i32, i32) {
    %c0_i32 = arith.constant 0 : i32
    %c0_i32_0 = arith.constant 0 : i32
    %c0_i32_1 = arith.constant 0 : i32
    return %arg0, %c0_i32, %c0_i32_0 : i32, i32, i32
  }
  func.func @transform_1(%arg0: i32) -> (i32, i32, i32) {
    %c0_i32 = arith.constant 0 : i32
    %c0_i32_0 = arith.constant 0 : i32
    %c0_i32_1 = arith.constant 0 : i32
    %c0_i32_2 = arith.constant 0 : i32
    return %c0_i32, %c0_i32_0, %c0_i32_1 : i32, i32, i32
  }
  func.func @transform_2(%arg0: i32) -> (i32, i32) {
    %c0_i32 = arith.constant 0 : i32
    %c0_i32_0 = arith.constant 0 : i32
    %c0_i32_1 = arith.constant 0 : i32
    return %c0_i32, %c0_i32_0 : i32, i32
  }
  func.func @transform_3(%arg0: i32) -> (i32, i32, i32) {
    %c0_i32 = arith.constant 0 : i32
    %c0_i32_0 = arith.constant 0 : i32
    %c0_i32_1 = arith.constant 0 : i32
    %c0_i32_2 = arith.constant 0 : i32
    return %c0_i32, %c0_i32_0, %c0_i32_1 : i32, i32, i32
  }
  func.func @transform_4(%arg0: i32) -> (i32, i32, i32) {
    %c0_i32 = arith.constant 0 : i32
    %c0_i32_0 = arith.constant 0 : i32
    %c0_i32_1 = arith.constant 0 : i32
    %c0_i32_2 = arith.constant 0 : i32
    return %c0_i32, %c0_i32_0, %c0_i32_1 : i32, i32, i32
  }
  func.func @transform_5(%arg0: i32) -> (i32, i32, i32) {
    %c0_i32 = arith.constant 0 : i32
    %c0_i32_0 = arith.constant 0 : i32
    %c0_i32_1 = arith.constant 0 : i32
    %c0_i32_2 = arith.constant 0 : i32
    return %c0_i32, %c0_i32_0, %c0_i32_1 : i32, i32, i32
  }
  func.func @transform_6(%arg0: i32) -> (i32, i32) {
    %c0_i32 = arith.constant 0 : i32
    %c0_i32_0 = arith.constant 0 : i32
    %c0_i32_1 = arith.constant 0 : i32
    return %c0_i32, %c0_i32_0 : i32, i32
  }
  func.func @transform_7(%arg0: i32) -> (i32, i32, i32) {
    %c0_i32 = arith.constant 0 : i32
    %c0_i32_0 = arith.constant 0 : i32
    %c0_i32_1 = arith.constant 0 : i32
    %c0_i32_2 = arith.constant 0 : i32
    return %c0_i32, %c0_i32_0, %c0_i32_1 : i32, i32, i32
  }
  func.func @transform_8(%arg0: i32) -> (i32, i32, i32) {
    %c0_i32 = arith.constant 0 : i32
    %c0_i32_0 = arith.constant 0 : i32
    %c0_i32_1 = arith.constant 0 : i32
    %c0_i32_2 = arith.constant 0 : i32
    return %c0_i32, %c0_i32_0, %c0_i32_1 : i32, i32, i32
  }
  func.func @transform_9(%arg0: i32) -> (i32, i32) {
    %c0_i32 = arith.constant 0 : i32
    %c0_i32_0 = arith.constant 0 : i32
    %c0_i32_1 = arith.constant 0 : i32
    return %c0_i32, %c0_i32_0 : i32, i32
  }
  func.func @transform_10(%arg0: i32) -> (i32, i32) {
    %c0_i32 = arith.constant 0 : i32
    %c0_i32_0 = arith.constant 0 : i32
    %c0_i32_1 = arith.constant 0 : i32
    return %c0_i32, %c0_i32_0 : i32, i32
  }
  func.func @transform_11(%arg0: i32) -> (i32, i32) {
    %c0_i32 = arith.constant 0 : i32
    %c0_i32_0 = arith.constant 0 : i32
    %c0_i32_1 = arith.constant 0 : i32
    return %c0_i32, %c0_i32_0 : i32, i32
  }
  func.func @transform_12(%arg0: i32) -> (i32, i32) {
    %c0_i32 = arith.constant 0 : i32
    %c0_i32_0 = arith.constant 0 : i32
    %c0_i32_1 = arith.constant 0 : i32
    return %c0_i32, %c0_i32_0 : i32, i32
  }
  func.func @transform_13(%arg0: i32) -> (i32, i32) {
    %c0_i32 = arith.constant 0 : i32
    %c0_i32_0 = arith.constant 0 : i32
    %c0_i32_1 = arith.constant 0 : i32
    return %c0_i32, %c0_i32_0 : i32, i32
  }
  func.func @transform_14(%arg0: i32) -> (i32, i32) {
    %c0_i32 = arith.constant 0 : i32
    %c0_i32_0 = arith.constant 0 : i32
    %c0_i32_1 = arith.constant 0 : i32
    return %c0_i32, %c0_i32_0 : i32, i32
  }
  func.func @transform_15(%arg0: i32) -> (i32, i32, i32) {
    %c0_i32 = arith.constant 0 : i32
    %c0_i32_0 = arith.constant 0 : i32
    %c0_i32_1 = arith.constant 0 : i32
    return %arg0, %c0_i32, %c0_i32_0 : i32, i32, i32
  }
}

</mosaic_0001>

<llo_original>
// kernel: forward.1
$region0: #{forward.1}
  #allocation0 [shape = 'u32[]', space=smem, size = 0x4, offset = 0x4, fixed_abs, tag = 'smem constant byte address 0x4 - core index']
  #allocation1 [shape = 'u32[144,128]{1,0:T(1,128)}', space=vmem, size = 0x12000, scoped, tag = 'internal scratch']
  %s0 = inlined_call_operand.vmem [shape: f32[2,32,96], index: 0, kind: input, shape index: {}]
  %s1 = inlined_call_operand.vmem [shape: f32[5,96,168], index: 1, kind: input, shape index: {}]
  %s2 = inlined_call_operand.vmem [shape: f32[1,168], index: 2, kind: input, shape index: {}]
  %s3 = inlined_call_operand.vmem [shape: f32[2,168,84], index: 3, kind: input, shape index: {}]
  %s4 = inlined_call_operand.vmem [shape: f32[2,14,28], index: 4, kind: input, shape index: {}]
  %s5 = inlined_call_operand.vmem [shape: f32[5,84,160], index: 5, kind: input, shape index: {}]
  %s6 = inlined_call_operand.vmem [shape: f32[1,160], index: 6, kind: input, shape index: {}]
  %s7 = inlined_call_operand.vmem [shape: f32[2,160,80], index: 7, kind: input, shape index: {}]
  %s8 = inlined_call_operand.vmem [shape: f32[2,5,10], index: 8, kind: input, shape index: {}]
  %s9 = inlined_call_operand.vmem [shape: f32[400,120], index: 9, kind: input, shape index: {}]
  %s10 = inlined_call_operand.vmem [shape: f32[1,120], index: 10, kind: input, shape index: {}]
  %s11 = inlined_call_operand.vmem [shape: f32[120,84], index: 11, kind: input, shape index: {}]
  %s12 = inlined_call_operand.vmem [shape: f32[1,84], index: 12, kind: input, shape index: {}]
  %s13 = inlined_call_operand.vmem [shape: f32[84,4], index: 13, kind: input, shape index: {}]
  %s14 = inlined_call_operand.vmem [shape: f32[1,4], index: 14, kind: input, shape index: {}]
  %s15 = inlined_call_operand.hbm [shape: f32[2,1,4], index: 15, kind: output, shape index: {}]
  %s16 = sld [smem:[#allocation0]]
  $region93: #{forward.1} parent=0
    _
  %s18 = ssub.s32 1, %s16
  %s19 = scalar_select 0, %s18, %s16
  $region1: #{forward.1} parent=0
    #allocation2 [shape = 'u8[1024]{0}', space=vmem, size = 0x400, scoped, tag = 'output window, operand 0']
    #allocation3 [shape = 's32[2]{0}', space=sflag, size = 0x8, scoped, tag = 'scoped memory for forward.1']
    %20 = vsyncpa [#allocation3], 0
    %s21 = scalar_lea.sflag [#allocation3], 1
    %22 = vsyncpa %s21, 0
    loop: start=0, step=1, limit=4
    $region2: #{forward.1} parent=1 // loop_pre_header
      _
    $region3: #{forward.1} parent=1 // loop_header
      %s24 = sphi 0, %s28
      %p25 = scmp.ge.s32.totalorder %s24, 4
      %s34 = sphi 0, %s36
      %s37 = sphi 0, %s34
      %s38 = sphi 0, %s37
      %s54 = sphi 0, %s38
      %s58 = sphi 0, %s58
      %s60 = sphi 0, %s58
      %s61 = sphi 0, %s60
      %s75 = sphi 0, %s61
      %s79 = sphi 0, %s79
      %s81 = sphi 0, %s79
      %s82 = sphi 0, %s81
      %s96 = sphi 0, %s82
      %s100 = sphi 0, %s100
      %s102 = sphi 0, %s100
      %s103 = sphi 0, %s102
      %s117 = sphi 0, %s103
      %s121 = sphi 0, %s121
      %s123 = sphi 0, %s121
      %s124 = sphi 0, %s123
      %s138 = sphi 0, %s124
      %s142 = sphi 0, %s142
      %s144 = sphi 0, %s142
      %s145 = sphi 0, %s144
      %s159 = sphi 0, %s145
      %s163 = sphi 0, %s163
      %s165 = sphi 0, %s163
      %s166 = sphi 0, %s165
      %s180 = sphi 0, %s166
      %s184 = sphi 0, %s184
      %s186 = sphi 0, %s184
      %s187 = sphi 0, %s186
      %s201 = sphi 0, %s187
      %s205 = sphi 0, %s205
      %s207 = sphi 0, %s205
      %s208 = sphi 0, %s207
      %s222 = sphi 0, %s208
      %s226 = sphi 0, %s226
      %s228 = sphi 0, %s226
      %s229 = sphi 0, %s228
      %s243 = sphi 0, %s229
      %s247 = sphi 0, %s247
      %s249 = sphi 0, %s247
      %s250 = sphi 0, %s249
      %s264 = sphi 0, %s250
      %s268 = sphi 0, %s268
      %s270 = sphi 0, %s268
      %s271 = sphi 0, %s270
      %s285 = sphi 0, %s271
      %s289 = sphi 0, %s289
      %s291 = sphi 0, %s289
      %s292 = sphi 0, %s291
      %s306 = sphi 0, %s292
      %s310 = sphi 0, %s310
      %s312 = sphi 0, %s310
      %s313 = sphi 0, %s312
      %s327 = sphi 0, %s313
      %s331 = sphi 0, %s331
      %s333 = sphi 0, %s331
      %s334 = sphi 0, %s333
      %s348 = sphi 0, %s334
      %s354 = sphi 0, %s356
      %s357 = sphi 0, %s354
      %s358 = sphi 0, %s357
      %s374 = sphi 0, %s358
    $region4: #{forward.1} parent=1 // loop_header_branch
      %27 = sbr.rel (%p25) target = $region8
    $region5: #{forward.1} parent=1 // loop_body
      %s29 = ssub.s32 %s24, 1
      %s30 = ssub.s32 %s24, 2
      %s31 = sadd.s32 %s24, 1
      %s32 = ssub.s32 %s24, %s31
      %p33 = scmp.eq.s32.totalorder %s32, 0
      %s35 = sadd.s32 %s34, 1
      %s36 = scalar_select %p33, %s34, %s35
      %p39 = pneg %p33
      %p40 = scmp.eq.s32.totalorder %s24, 1
      %p41 = por %p39, %p40
      %p42 = scmp.ne.s32.totalorder %s34, %s37
      %p43 = scmp.eq.s32.totalorder %s24, 0
      %p44 = por %p42, %p43
      %p45 = scmp.ne.s32.totalorder %s34, %s37
      %p46 = scmp.eq.s32.totalorder %s29, 1
      %p47 = por %p45, %p46
      %p48 = scmp.ne.s32.totalorder %s37, %s38
      %p49 = scmp.eq.s32.totalorder %s29, 0
      %p50 = por %p48, %p49
      %p51 = scmp.ne.s32.totalorder %s37, %s38
      %p52 = scmp.eq.s32.totalorder %s30, 1
      %p53 = por %p51, %p52
      %p55 = scmp.ne.s32.totalorder %s38, %s54
      %p56 = scmp.eq.s32.totalorder %s30, 0
      %p57 = por %p55, %p56
      %s59 = sadd.s32 %s58, 1
      %p62 = scmp.eq.s32.totalorder %s24, 1
      %p63 = scmp.ne.s32.totalorder %s58, %s60
      %p64 = scmp.eq.s32.totalorder %s24, 0
      %p65 = por %p63, %p64
      %p66 = scmp.ne.s32.totalorder %s58, %s60
      %p67 = scmp.eq.s32.totalorder %s29, 1
      %p68 = por %p66, %p67
      %p69 = scmp.ne.s32.totalorder %s60, %s61
      %p70 = scmp.eq.s32.totalorder %s29, 0
      %p71 = por %p69, %p70
      %p72 = scmp.ne.s32.totalorder %s60, %s61
      %p73 = scmp.eq.s32.totalorder %s30, 1
      %p74 = por %p72, %p73
      %p76 = scmp.ne.s32.totalorder %s61, %s75
      %p77 = scmp.eq.s32.totalorder %s30, 0
      %p78 = por %p76, %p77
      %s80 = sadd.s32 %s79, 1
      %p83 = scmp.eq.s32.totalorder %s24, 1
      %p84 = scmp.ne.s32.totalorder %s79, %s81
      %p85 = scmp.eq.s32.totalorder %s24, 0
      %p86 = por %p84, %p85
      %p87 = scmp.ne.s32.totalorder %s79, %s81
      %p88 = scmp.eq.s32.totalorder %s29, 1
      %p89 = por %p87, %p88
      %p90 = scmp.ne.s32.totalorder %s81, %s82
      %p91 = scmp.eq.s32.totalorder %s29, 0
      %p92 = por %p90, %p91
      %p93 = scmp.ne.s32.totalorder %s81, %s82
      %p94 = scmp.eq.s32.totalorder %s30, 1
      %p95 = por %p93, %p94
      %p97 = scmp.ne.s32.totalorder %s82, %s96
      %p98 = scmp.eq.s32.totalorder %s30, 0
      %p99 = por %p97, %p98
      %s101 = sadd.s32 %s100, 1
      %p104 = scmp.eq.s32.totalorder %s24, 1
      %p105 = scmp.ne.s32.totalorder %s100, %s102
      %p106 = scmp.eq.s32.totalorder %s24, 0
      %p107 = por %p105, %p106
      %p108 = scmp.ne.s32.totalorder %s100, %s102
      %p109 = scmp.eq.s32.totalorder %s29, 1
      %p110 = por %p108, %p109
      %p111 = scmp.ne.s32.totalorder %s102, %s103
      %p112 = scmp.eq.s32.totalorder %s29, 0
      %p113 = por %p111, %p112
      %p114 = scmp.ne.s32.totalorder %s102, %s103
      %p115 = scmp.eq.s32.totalorder %s30, 1
      %p116 = por %p114, %p115
      %p118 = scmp.ne.s32.totalorder %s103, %s117
      %p119 = scmp.eq.s32.totalorder %s30, 0
      %p120 = por %p118, %p119
      %s122 = sadd.s32 %s121, 1
      %p125 = scmp.eq.s32.totalorder %s24, 1
      %p126 = scmp.ne.s32.totalorder %s121, %s123
      %p127 = scmp.eq.s32.totalorder %s24, 0
      %p128 = por %p126, %p127
      %p129 = scmp.ne.s32.totalorder %s121, %s123
      %p130 = scmp.eq.s32.totalorder %s29, 1
      %p131 = por %p129, %p130
      %p132 = scmp.ne.s32.totalorder %s123, %s124
      %p133 = scmp.eq.s32.totalorder %s29, 0
      %p134 = por %p132, %p133
      %p135 = scmp.ne.s32.totalorder %s123, %s124
      %p136 = scmp.eq.s32.totalorder %s30, 1
      %p137 = por %p135, %p136
      %p139 = scmp.ne.s32.totalorder %s124, %s138
      %p140 = scmp.eq.s32.totalorder %s30, 0
      %p141 = por %p139, %p140
      %s143 = sadd.s32 %s142, 1
      %p146 = scmp.eq.s32.totalorder %s24, 1
      %p147 = scmp.ne.s32.totalorder %s142, %s144
      %p148 = scmp.eq.s32.totalorder %s24, 0
      %p149 = por %p147, %p148
      %p150 = scmp.ne.s32.totalorder %s142, %s144
      %p151 = scmp.eq.s32.totalorder %s29, 1
      %p152 = por %p150, %p151
      %p153 = scmp.ne.s32.totalorder %s144, %s145
      %p154 = scmp.eq.s32.totalorder %s29, 0
      %p155 = por %p153, %p154
      %p156 = scmp.ne.s32.totalorder %s144, %s145
      %p157 = scmp.eq.s32.totalorder %s30, 1
      %p158 = por %p156, %p157
      %p160 = scmp.ne.s32.totalorder %s145, %s159
      %p161 = scmp.eq.s32.totalorder %s30, 0
      %p162 = por %p160, %p161
      %s164 = sadd.s32 %s163, 1
      %p167 = scmp.eq.s32.totalorder %s24, 1
      %p168 = scmp.ne.s32.totalorder %s163, %s165
      %p169 = scmp.eq.s32.totalorder %s24, 0
      %p170 = por %p168, %p169
      %p171 = scmp.ne.s32.totalorder %s163, %s165
      %p172 = scmp.eq.s32.totalorder %s29, 1
      %p173 = por %p171, %p172
      %p174 = scmp.ne.s32.totalorder %s165, %s166
      %p175 = scmp.eq.s32.totalorder %s29, 0
      %p176 = por %p174, %p175
      %p177 = scmp.ne.s32.totalorder %s165, %s166
      %p178 = scmp.eq.s32.totalorder %s30, 1
      %p179 = por %p177, %p178
      %p181 = scmp.ne.s32.totalorder %s166, %s180
      %p182 = scmp.eq.s32.totalorder %s30, 0
      %p183 = por %p181, %p182
      %s185 = sadd.s32 %s184, 1
      %p188 = scmp.eq.s32.totalorder %s24, 1
      %p189 = scmp.ne.s32.totalorder %s184, %s186
      %p190 = scmp.eq.s32.totalorder %s24, 0
      %p191 = por %p189, %p190
      %p192 = scmp.ne.s32.totalorder %s184, %s186
      %p193 = scmp.eq.s32.totalorder %s29, 1
      %p194 = por %p192, %p193
      %p195 = scmp.ne.s32.totalorder %s186, %s187
      %p196 = scmp.eq.s32.totalorder %s29, 0
      %p197 = por %p195, %p196
      %p198 = scmp.ne.s32.totalorder %s186, %s187
      %p199 = scmp.eq.s32.totalorder %s30, 1
      %p200 = por %p198, %p199
      %p202 = scmp.ne.s32.totalorder %s187, %s201
      %p203 = scmp.eq.s32.totalorder %s30, 0
      %p204 = por %p202, %p203
      %s206 = sadd.s32 %s205, 1
      %p209 = scmp.eq.s32.totalorder %s24, 1
      %p210 = scmp.ne.s32.totalorder %s205, %s207
      %p211 = scmp.eq.s32.totalorder %s24, 0
      %p212 = por %p210, %p211
      %p213 = scmp.ne.s32.totalorder %s205, %s207
      %p214 = scmp.eq.s32.totalorder %s29, 1
      %p215 = por %p213, %p214
      %p216 = scmp.ne.s32.totalorder %s207, %s208
      %p217 = scmp.eq.s32.totalorder %s29, 0
      %p218 = por %p216, %p217
      %p219 = scmp.ne.s32.totalorder %s207, %s208
      %p220 = scmp.eq.s32.totalorder %s30, 1
      %p221 = por %p219, %p220
      %p223 = scmp.ne.s32.totalorder %s208, %s222
      %p224 = scmp.eq.s32.totalorder %s30, 0
      %p225 = por %p223, %p224
      %s227 = sadd.s32 %s226, 1
      %p230 = scmp.eq.s32.totalorder %s24, 1
      %p231 = scmp.ne.s32.totalorder %s226, %s228
      %p232 = scmp.eq.s32.totalorder %s24, 0
      %p233 = por %p231, %p232
      %p234 = scmp.ne.s32.totalorder %s226, %s228
      %p235 = scmp.eq.s32.totalorder %s29, 1
      %p236 = por %p234, %p235
      %p237 = scmp.ne.s32.totalorder %s228, %s229
      %p238 = scmp.eq.s32.totalorder %s29, 0
      %p239 = por %p237, %p238
      %p240 = scmp.ne.s32.totalorder %s228, %s229
      %p241 = scmp.eq.s32.totalorder %s30, 1
      %p242 = por %p240, %p241
      %p244 = scmp.ne.s32.totalorder %s229, %s243
      %p245 = scmp.eq.s32.totalorder %s30, 0
      %p246 = por %p244, %p245
      %s248 = sadd.s32 %s247, 1
      %p251 = scmp.eq.s32.totalorder %s24, 1
      %p252 = scmp.ne.s32.totalorder %s247, %s249
      %p253 = scmp.eq.s32.totalorder %s24, 0
      %p254 = por %p252, %p253
      %p255 = scmp.ne.s32.totalorder %s247, %s249
      %p256 = scmp.eq.s32.totalorder %s29, 1
      %p257 = por %p255, %p256
      %p258 = scmp.ne.s32.totalorder %s249, %s250
      %p259 = scmp.eq.s32.totalorder %s29, 0
      %p260 = por %p258, %p259
      %p261 = scmp.ne.s32.totalorder %s249, %s250
      %p262 = scmp.eq.s32.totalorder %s30, 1
      %p263 = por %p261, %p262
      %p265 = scmp.ne.s32.totalorder %s250, %s264
      %p266 = scmp.eq.s32.totalorder %s30, 0
      %p267 = por %p265, %p266
      %s269 = sadd.s32 %s268, 1
      %p272 = scmp.eq.s32.totalorder %s24, 1
      %p273 = scmp.ne.s32.totalorder %s268, %s270
      %p274 = scmp.eq.s32.totalorder %s24, 0
      %p275 = por %p273, %p274
      %p276 = scmp.ne.s32.totalorder %s268, %s270
      %p277 = scmp.eq.s32.totalorder %s29, 1
      %p278 = por %p276, %p277
      %p279 = scmp.ne.s32.totalorder %s270, %s271
      %p280 = scmp.eq.s32.totalorder %s29, 0
      %p281 = por %p279, %p280
      %p282 = scmp.ne.s32.totalorder %s270, %s271
      %p283 = scmp.eq.s32.totalorder %s30, 1
      %p284 = por %p282, %p283
      %p286 = scmp.ne.s32.totalorder %s271, %s285
      %p287 = scmp.eq.s32.totalorder %s30, 0
      %p288 = por %p286, %p287
      %s290 = sadd.s32 %s289, 1
      %p293 = scmp.eq.s32.totalorder %s24, 1
      %p294 = scmp.ne.s32.totalorder %s289, %s291
      %p295 = scmp.eq.s32.totalorder %s24, 0
      %p296 = por %p294, %p295
      %p297 = scmp.ne.s32.totalorder %s289, %s291
      %p298 = scmp.eq.s32.totalorder %s29, 1
      %p299 = por %p297, %p298
      %p300 = scmp.ne.s32.totalorder %s291, %s292
      %p301 = scmp.eq.s32.totalorder %s29, 0
      %p302 = por %p300, %p301
      %p303 = scmp.ne.s32.totalorder %s291, %s292
      %p304 = scmp.eq.s32.totalorder %s30, 1
      %p305 = por %p303, %p304
      %p307 = scmp.ne.s32.totalorder %s292, %s306
      %p308 = scmp.eq.s32.totalorder %s30, 0
      %p309 = por %p307, %p308
      %s311 = sadd.s32 %s310, 1
      %p314 = scmp.eq.s32.totalorder %s24, 1
      %p315 = scmp.ne.s32.totalorder %s310, %s312
      %p316 = scmp.eq.s32.totalorder %s24, 0
      %p317 = por %p315, %p316
      %p318 = scmp.ne.s32.totalorder %s310, %s312
      %p319 = scmp.eq.s32.totalorder %s29, 1
      %p320 = por %p318, %p319
      %p321 = scmp.ne.s32.totalorder %s312, %s313
      %p322 = scmp.eq.s32.totalorder %s29, 0
      %p323 = por %p321, %p322
      %p324 = scmp.ne.s32.totalorder %s312, %s313
      %p325 = scmp.eq.s32.totalorder %s30, 1
      %p326 = por %p324, %p325
      %p328 = scmp.ne.s32.totalorder %s313, %s327
      %p329 = scmp.eq.s32.totalorder %s30, 0
      %p330 = por %p328, %p329
      %s332 = sadd.s32 %s331, 1
      %p335 = scmp.eq.s32.totalorder %s24, 1
      %p336 = scmp.ne.s32.totalorder %s331, %s333
      %p337 = scmp.eq.s32.totalorder %s24, 0
      %p338 = por %p336, %p337
      %p339 = scmp.ne.s32.totalorder %s331, %s333
      %p340 = scmp.eq.s32.totalorder %s29, 1
      %p341 = por %p339, %p340
      %p342 = scmp.ne.s32.totalorder %s333, %s334
      %p343 = scmp.eq.s32.totalorder %s29, 0
      %p344 = por %p342, %p343
      %p345 = scmp.ne.s32.totalorder %s333, %s334
      %p346 = scmp.eq.s32.totalorder %s30, 1
      %p347 = por %p345, %p346
      %p349 = scmp.ne.s32.totalorder %s334, %s348
      %p350 = scmp.eq.s32.totalorder %s30, 0
      %p351 = por %p349, %p350
      %s352 = ssub.s32 %s24, %s31
      %p353 = scmp.eq.s32.totalorder %s352, 0
      %s355 = sadd.s32 %s354, 1
      %s356 = scalar_select %p353, %s354, %s355
      %p359 = pneg %p353
      %p360 = scmp.eq.s32.totalorder %s24, 1
      %p361 = por %p359, %p360
      %p362 = scmp.ne.s32.totalorder %s354, %s357
      %p363 = scmp.eq.s32.totalorder %s24, 0
      %p364 = por %p362, %p363
      %p365 = scmp.ne.s32.totalorder %s354, %s357
      %p366 = scmp.eq.s32.totalorder %s29, 1
      %p367 = por %p365, %p366
      %p368 = scmp.ne.s32.totalorder %s357, %s358
      %p369 = scmp.eq.s32.totalorder %s29, 0
      %p370 = por %p368, %p369
      %p371 = scmp.ne.s32.totalorder %s357, %s358
      %p372 = scmp.eq.s32.totalorder %s30, 1
      %p373 = por %p371, %p372
      %p375 = scmp.ne.s32.totalorder %s358, %s374
      %p376 = scmp.eq.s32.totalorder %s30, 0
      %p377 = por %p375, %p376
      %p378 = scmp.le.s32.totalorder 1, %s24
      %p379 = scmp.lt.s32.totalorder %s24, 3
      %p380 = pnand %p378, %p379
      %p381 = pneg %p380
      // Predicated region
      $region9: #{forward.1} parent=5 // pred_check
        _
      $region10: #{forward.1} parent=5 // pred_check_branch
        %383 = sbr.rel (%p380) target = $region12
      $region11: #{forward.1} parent=5 // pred_region
        %s384 = ssub.s32 %s24, 1
        // Predicated region
        $region13: #{forward.1} parent=11 // pred_check
          %p385 = pneg %p71
        $region14: #{forward.1} parent=11 // pred_check_branch
          %387 = sbr.rel (%p385) target = $region16
        $region15: #{forward.1} parent=11 // pred_region
          _
        $region16: #{forward.1} parent=11 // pred_fallthru
          _
        // Predicated region
        $region17: #{forward.1} parent=11 // pred_check
          %p388 = pneg %p92
        $region18: #{forward.1} parent=11 // pred_check_branch
          %390 = sbr.rel (%p388) target = $region20
        $region19: #{forward.1} parent=11 // pred_region
          _
        $region20: #{forward.1} parent=11 // pred_fallthru
          _
        // Predicated region
        $region21: #{forward.1} parent=11 // pred_check
          %p391 = pneg %p113
        $region22: #{forward.1} parent=11 // pred_check_branch
          %393 = sbr.rel (%p391) target = $region24
        $region23: #{forward.1} parent=11 // pred_region
          _
        $region24: #{forward.1} parent=11 // pred_fallthru
          _
        // Predicated region
        $region25: #{forward.1} parent=11 // pred_check
          %p394 = pneg %p134
        $region26: #{forward.1} parent=11 // pred_check_branch
          %396 = sbr.rel (%p394) target = $region28
        $region27: #{forward.1} parent=11 // pred_region
          _
        $region28: #{forward.1} parent=11 // pred_fallthru
          _
        // Predicated region
        $region29: #{forward.1} parent=11 // pred_check
          %p397 = pneg %p155
        $region30: #{forward.1} parent=11 // pred_check_branch
          %399 = sbr.rel (%p397) target = $region32
        $region31: #{forward.1} parent=11 // pred_region
          _
        $region32: #{forward.1} parent=11 // pred_fallthru
          _
        // Predicated region
        $region33: #{forward.1} parent=11 // pred_check
          %p400 = pneg %p176
        $region34: #{forward.1} parent=11 // pred_check_branch
          %402 = sbr.rel (%p400) target = $region36
        $region35: #{forward.1} parent=11 // pred_region
          _
        $region36: #{forward.1} parent=11 // pred_fallthru
          _
        // Predicated region
        $region37: #{forward.1} parent=11 // pred_check
          %p403 = pneg %p197
        $region38: #{forward.1} parent=11 // pred_check_branch
          %405 = sbr.rel (%p403) target = $region40
        $region39: #{forward.1} parent=11 // pred_region
          _
        $region40: #{forward.1} parent=11 // pred_fallthru
          _
        // Predicated region
        $region41: #{forward.1} parent=11 // pred_check
          %p406 = pneg %p218
        $region42: #{forward.1} parent=11 // pred_check_branch
          %408 = sbr.rel (%p406) target = $region44
        $region43: #{forward.1} parent=11 // pred_region
          _
        $region44: #{forward.1} parent=11 // pred_fallthru
          _
        // Predicated region
        $region45: #{forward.1} parent=11 // pred_check
          %p409 = pneg %p239
        $region46: #{forward.1} parent=11 // pred_check_branch
          %411 = sbr.rel (%p409) target = $region48
        $region47: #{forward.1} parent=11 // pred_region
          _
        $region48: #{forward.1} parent=11 // pred_fallthru
          _
        // Predicated region
        $region49: #{forward.1} parent=11 // pred_check
          %p412 = pneg %p260
        $region50: #{forward.1} parent=11 // pred_check_branch
          %414 = sbr.rel (%p412) target = $region52
        $region51: #{forward.1} parent=11 // pred_region
          _
        $region52: #{forward.1} parent=11 // pred_fallthru
          _
        // Predicated region
        $region53: #{forward.1} parent=11 // pred_check
          %p415 = pneg %p281
        $region54: #{forward.1} parent=11 // pred_check_branch
          %417 = sbr.rel (%p415) target = $region56
        $region55: #{forward.1} parent=11 // pred_region
          _
        $region56: #{forward.1} parent=11 // pred_fallthru
          _
        // Predicated region
        $region57: #{forward.1} parent=11 // pred_check
          %p418 = pneg %p302
        $region58: #{forward.1} parent=11 // pred_check_branch
          %420 = sbr.rel (%p418) target = $region60
        $region59: #{forward.1} parent=11 // pred_region
          _
        $region60: #{forward.1} parent=11 // pred_fallthru
          _
        // Predicated region
        $region61: #{forward.1} parent=11 // pred_check
          %p421 = pneg %p323
        $region62: #{forward.1} parent=11 // pred_check_branch
          %423 = sbr.rel (%p421) target = $region64
        $region63: #{forward.1} parent=11 // pred_region
          _
        $region64: #{forward.1} parent=11 // pred_fallthru
          _
        // Predicated region
        $region65: #{forward.1} parent=11 // pred_check
          %p424 = pneg %p344
        $region66: #{forward.1} parent=11 // pred_check_branch
          %426 = sbr.rel (%p424) target = $region68
        $region67: #{forward.1} parent=11 // pred_region
          _
        $region68: #{forward.1} parent=11 // pred_fallthru
          _
      $region12: #{forward.1} parent=5 // pred_fallthru
        _
      %p427 = scmp.lt.s32.totalorder %s24, 2
      // Predicated region
      $region69: #{forward.1} parent=5 // pred_check
        %p428 = pneg %p427
      $region70: #{forward.1} parent=5 // pred_check_branch
        %430 = sbr.rel (%p428) target = $region72
      $region71: #{forward.1} parent=5 // pred_region
        // Predicated region
        $region73: #{forward.1} parent=71 // pred_check
          %p431 = pneg %p44
        $region74: #{forward.1} parent=71 // pred_check_branch
          %433 = sbr.rel (%p431) target = $region76
        $region75: #{forward.1} parent=71 // pred_region
          %p434 = scmp.lt.s32.totalorder %s24, 1
          %s435 = scalar_select %p434, %s24, 1
          %s436 = smul.addr %s435, 4
          %s437 = smul.addr %s436, 8
          %s438 = scalar_lea.vmem %s0, %s437
        $region76: #{forward.1} parent=71 // pred_fallthru
          _
      $region72: #{forward.1} parent=5 // pred_fallthru
        _
      %p439 = scmp.le.s32.totalorder 1, %s24
      %p440 = scmp.lt.s32.totalorder %s24, 3
      %p441 = pnand %p439, %p440
      %p442 = pneg %p441
      // Predicated region
      $region77: #{forward.1} parent=5 // pred_check
        _
      $region78: #{forward.1} parent=5 // pred_check_branch
        %444 = sbr.rel (%p441) target = $region80
      $region79: #{forward.1} parent=5 // pred_region
        %s445 = ssub.s32 %s24, 1
        %p446 = scmp.lt.s32.totalorder %s29, 1
        %s447 = scalar_select %p446, %s29, 1
        %s448 = smul.addr %s447, 4
        %s449 = smul.addr %s448, 8
        %s450 = scalar_lea.vmem %s0, %s449
        %p451 = pneg %p50
        %p452 = pneg %p47
        %p453 = pneg %p71
        %p454 = pneg %p68
        %p455 = pneg %p92
        %p456 = pneg %p89
        %p457 = pneg %p113
        %p458 = pneg %p110
        %p459 = pneg %p134
        %p460 = pneg %p131
        %p461 = pneg %p155
        %p462 = pneg %p152
        %p463 = pneg %p176
        %p464 = pneg %p173
        %p465 = pneg %p197
        %p466 = pneg %p194
        %p467 = pneg %p218
        %p468 = pneg %p215
        %p469 = pneg %p239
        %p470 = pneg %p236
        %p471 = pneg %p260
        %p472 = pneg %p257
        %p473 = pneg %p281
        %p474 = pneg %p278
        %p475 = pneg %p302
        %p476 = pneg %p299
        %p477 = pneg %p323
        %p478 = pneg %p320
        %p479 = pneg %p344
        %p480 = pneg %p341
        %p481 = pneg %p370
        %p482 = pneg %p367
        %s483 = sand.u32 %s357, 1
        %s484 = scalar_lea.sflag [#allocation3], %s483
        %s485 = sand.u32 %s357, 1
        %s486 = scalar_lea.vmem [#allocation2], %s485
        %p487 = scmp.lt.s32.totalorder %s29, 1
        %s488 = scalar_select %p487, %s29, 1
        %s489 = smul.addr %s488, 4
        %s490 = smul.addr %s489, 8
        %s491 = scalar_lea.vmem %s0, %s490
        %v492 = vld [vmem:[%s491] sm:$0xff]
        %v493 = vld [vmem:[%s491 + $0x8] sm:$0xff]
        %v494 = vld [vmem:[%s491 + $0x10] sm:$0xff]
        %v495 = vld [vmem:[%s491 + $0x18] sm:$0xf]
        %v496 = vld [vmem:[%s1] sm:$0xff]
        %v497 = vld [vmem:[%s1 + $0x8] sm:$0xff]
        %v498 = vld [vmem:[%s1 + $0x10] sm:$0xff]
        %v499 = vld [vmem:[%s1 + $0x18] sm:$0xff]
        %v500 = vld [vmem:[%s1 + $0x20] sm:$0xff]
        %v501 = vld [vmem:[%s1 + $0x28] sm:$0xff]
        %v502 = vld [vmem:[%s1 + $0x30] sm:$0xff]
        %v503 = vld [vmem:[%s1 + $0x38] sm:$0xff]
        %v504 = vld [vmem:[%s1 + $0x40] sm:$0xff]
        %v505 = vld [vmem:[%s1 + $0x48] sm:$0xff]
        %v506 = vld [vmem:[%s1 + $0x50] sm:$0xff]
        %v507 = vld [vmem:[%s1 + $0x58] sm:$0xff]
        %v508 = vld [vmem:[%s1 + $0x60] sm:$0xff]
        %v509 = vld [vmem:[%s1 + $0x68] sm:$0xff]
        %v510 = vld [vmem:[%s1 + $0x70] sm:$0xff]
        %v511 = vld [vmem:[%s1 + $0x78] sm:$0xff]
        %v512 = vld [vmem:[%s1 + $0x80] sm:$0xff]
        %v513 = vld [vmem:[%s1 + $0x88] sm:$0xff]
        %v514 = vld [vmem:[%s1 + $0x90] sm:$0xff]
        %v515 = vld [vmem:[%s1 + $0x98] sm:$0xff]
        %v516 = vld [vmem:[%s1 + $0xa0] sm:$0xff]
        %v517 = vld [vmem:[%s1 + $0xa8] sm:$0xff]
        %v518 = vld [vmem:[%s1 + $0xb0] sm:$0xff]
        %v519 = vld [vmem:[%s1 + $0xb8] sm:$0xff]
        %v520 = vld [vmem:[%s491 + $0x1] sm:$0xff]
        %v521 = vld [vmem:[%s491 + $0x9] sm:$0xff]
        %v522 = vld [vmem:[%s491 + $0x11] sm:$0xff]
        %v523 = vld [vmem:[%s491 + $0x19] sm:$0xf]
        %s524 = scalar_lea.vmem %s1, 192
        %v525 = vld [vmem:[%s524] sm:$0xff]
        %v526 = vld [vmem:[%s524 + $0x8] sm:$0xff]
        %v527 = vld [vmem:[%s524 + $0x10] sm:$0xff]
        %v528 = vld [vmem:[%s524 + $0x18] sm:$0xff]
        %v529 = vld [vmem:[%s524 + $0x20] sm:$0xff]
        %v530 = vld [vmem:[%s524 + $0x28] sm:$0xff]
        %v531 = vld [vmem:[%s524 + $0x30] sm:$0xff]
        %v532 = vld [vmem:[%s524 + $0x38] sm:$0xff]
        %v533 = vld [vmem:[%s524 + $0x40] sm:$0xff]
        %v534 = vld [vmem:[%s524 + $0x48] sm:$0xff]
        %v535 = vld [vmem:[%s524 + $0x50] sm:$0xff]
        %v536 = vld [vmem:[%s524 + $0x58] sm:$0xff]
        %v537 = vld [vmem:[%s524 + $0x60] sm:$0xff]
        %v538 = vld [vmem:[%s524 + $0x68] sm:$0xff]
        %v539 = vld [vmem:[%s524 + $0x70] sm:$0xff]
        %v540 = vld [vmem:[%s524 + $0x78] sm:$0xff]
        %v541 = vld [vmem:[%s524 + $0x80] sm:$0xff]
        %v542 = vld [vmem:[%s524 + $0x88] sm:$0xff]
        %v543 = vld [vmem:[%s524 + $0x90] sm:$0xff]
        %v544 = vld [vmem:[%s524 + $0x98] sm:$0xff]
        %v545 = vld [vmem:[%s524 + $0xa0] sm:$0xff]
        %v546 = vld [vmem:[%s524 + $0xa8] sm:$0xff]
        %v547 = vld [vmem:[%s524 + $0xb0] sm:$0xff]
        %v548 = vld [vmem:[%s524 + $0xb8] sm:$0xff]
        %vm549 = vcmask 785408
        %v551 = vsel %vm549, %v520, 0
        %v554 = vsel %vm549, %v521, 0
        %v557 = vsel %vm549, %v522, 0
        %v560 = vsel %vm549, %v523, 0
        %562 = vmatprep.subr.mxu0 %v526
        %563 = vmatpush1.msra.mxu0 %v525
        %564 = vmatprep.subr.mxu0 %v528
        %565 = vmatpush1.msra.mxu0 %v527
        %566 = vmatprep.subr.mxu0 %v530
        %567 = vmatpush1.msra.mxu0 %v529
        %568 = vmatprep.subr.mxu0 %v532
        %569 = vmatpush1.msra.mxu0 %v531
        %570 = vmatprep.subr.mxu0 %v534
        %571 = vmatpush1.msra.mxu0 %v533
        %572 = vmatprep.subr.mxu0 %v536
        %573 = vmatpush1.msra.mxu0 %v535
        %574 = vmatprep.subr.mxu0 %v538
        %575 = vmatpush1.msra.mxu0 %v537
        %576 = vmatprep.subr.mxu0 %v540
        %577 = vmatpush1.msra.mxu0 %v539
        %578 = vmatprep.subr.mxu0 %v542
        %579 = vmatpush1.msra.mxu0 %v541
        %580 = vmatprep.subr.mxu0 %v544
        %581 = vmatpush1.msra.mxu0 %v543
        %582 = vmatprep.subr.mxu0 %v546
        %583 = vmatpush1.msra.mxu0 %v545
        %584 = vmatprep.subr.mxu0 %v548
        %585 = vmatpush1.msra.mxu0 %v547
        %586 = vmatprep.subr.mxu0 0.0
        %587 = vmatpush1.msra.mxu0 0.0
        %588 = vmatprep.subr.mxu0 0.0
        %589 = vmatpush1.msra.mxu0 0.0
        %590 = vmatprep.subr.mxu0 0.0
        %591 = vmatpush1.msra.mxu0 0.0
        %592 = vmatprep.subr.mxu0 0.0
        %593 = vmatpush1.msra.mxu0 0.0
        %594 = vmatprep.subr.mxu0 0.0
        %595 = vmatpush1.msra.mxu0 0.0
        %596 = vmatprep.subr.mxu0 0.0
        %597 = vmatpush1.msra.mxu0 0.0
        %598 = vmatprep.subr.mxu0 0.0
        %599 = vmatpush1.msra.mxu0 0.0
        %600 = vmatprep.subr.mxu0 0.0
        %601 = vmatpush1.msra.mxu0 0.0
        %602 = vmatprep.subr.mxu0 0.0
        %603 = vmatpush1.msra.mxu0 0.0
        %604 = vmatprep.subr.mxu0 0.0
        %605 = vmatpush1.msra.mxu0 0.0
        %606 = vmatprep.subr.mxu0 0.0
        %607 = vmatpush1.msra.mxu0 0.0
        %608 = vmatprep.subr.mxu0 0.0
        %609 = vmatpush1.msra.mxu0 0.0
        %610 = vmatprep.subr.mxu0 0.0
        %611 = vmatpush1.msra.mxu0 0.0
        %612 = vmatprep.subr.mxu0 0.0
        %613 = vmatpush1.msra.mxu0 0.0
        %614 = vmatprep.subr.mxu0 0.0
        %615 = vmatpush1.msra.mxu0 0.0
        %616 = vmatprep.subr.mxu0 0.0
        %617 = vmatpush1.msra.mxu0 0.0
        %618 = vmatprep.subr.mxu0 0.0
        %619 = vmatpush1.msra.mxu0 0.0
        %620 = vmatprep.subr.mxu0 0.0
        %621 = vmatpush1.msra.mxu0 0.0
        %622 = vmatprep.subr.mxu0 0.0
        %623 = vmatpush1.msra.mxu0 0.0
        %624 = vmatprep.subr.mxu0 0.0
        %625 = vmatpush1.msra.mxu0 0.0
        %626 = vmatprep.mubr.f32.mxu0 0.0
        %627 = vmatmul.mubr.f32.gmra.mrb[0].mxu0 %v551
        %v628 = vpop.f32.mrb[0].mxu0
        %v629 = vadd.f32 0.0, %v628
        %v630 = vpop.f32.mrb[0].mxu0
        %v631 = vadd.f32 0.0, %v630
        %632 = vmatprep.mubr.f32.mxu0 0.0
        %633 = vmatmul.mubr.f32.gmra.mrb[0].mxu0 %v554
        %v634 = vpop.f32.mrb[0].mxu0
        %v635 = vadd.f32 0.0, %v634
        %v636 = vpop.f32.mrb[0].mxu0
        %v637 = vadd.f32 0.0, %v636
        %638 = vmatprep.mubr.f32.mxu0 0.0
        %639 = vmatmul.mubr.f32.gmra.mrb[0].mxu0 %v557
        %v640 = vpop.f32.mrb[0].mxu0
        %v641 = vadd.f32 0.0, %v640
        %v642 = vpop.f32.mrb[0].mxu0
        %v643 = vadd.f32 0.0, %v642
        %644 = vmatprep.mubr.f32.mxu0 0.0
        %645 = vmatmul.mubr.f32.gmra.mrb[0].mxu0 %v560
        %v646 = vpop.f32.mrb[0].mxu0
        %v647 = vadd.f32 0.0, %v646
        %v648 = vpop.f32.mrb[0].mxu0
        %v649 = vadd.f32 0.0, %v648
        %650 = vdwg.mxu0
        %v652 = vsel %vm549, %v492, 0
        %v655 = vsel %vm549, %v493, 0
        %v658 = vsel %vm549, %v494, 0
        %v661 = vsel %vm549, %v495, 0
        %663 = vmatprep.subr.mxu0 %v497
        %664 = vmatpush1.msra.mxu0 %v496
        %665 = vmatprep.subr.mxu0 %v499
        %666 = vmatpush1.msra.mxu0 %v498
        %667 = vmatprep.subr.mxu0 %v501
        %668 = vmatpush1.msra.mxu0 %v500
        %669 = vmatprep.subr.mxu0 %v503
        %670 = vmatpush1.msra.mxu0 %v502
        %671 = vmatprep.subr.mxu0 %v505
        %672 = vmatpush1.msra.mxu0 %v504
        %673 = vmatprep.subr.mxu0 %v507
        %674 = vmatpush1.msra.mxu0 %v506
        %675 = vmatprep.subr.mxu0 %v509
        %676 = vmatpush1.msra.mxu0 %v508
        %677 = vmatprep.subr.mxu0 %v511
        %678 = vmatpush1.msra.mxu0 %v510
        %679 = vmatprep.subr.mxu0 %v513
        %680 = vmatpush1.msra.mxu0 %v512
        %681 = vmatprep.subr.mxu0 %v515
        %682 = vmatpush1.msra.mxu0 %v514
        %683 = vmatprep.subr.mxu0 %v517
        %684 = vmatpush1.msra.mxu0 %v516
        %685 = vmatprep.subr.mxu0 %v519
        %686 = vmatpush1.msra.mxu0 %v518
        %687 = vmatprep.subr.mxu0 0.0
        %688 = vmatpush1.msra.mxu0 0.0
        %689 = vmatprep.subr.mxu0 0.0
        %690 = vmatpush1.msra.mxu0 0.0
        %691 = vmatprep.subr.mxu0 0.0
        %692 = vmatpush1.msra.mxu0 0.0
        %693 = vmatprep.subr.mxu0 0.0
        %694 = vmatpush1.msra.mxu0 0.0
        %695 = vmatprep.subr.mxu0 0.0
        %696 = vmatpush1.msra.mxu0 0.0
        %697 = vmatprep.subr.mxu0 0.0
        %698 = vmatpush1.msra.mxu0 0.0
        %699 = vmatprep.subr.mxu0 0.0
        %700 = vmatpush1.msra.mxu0 0.0
        %701 = vmatprep.subr.mxu0 0.0
        %702 = vmatpush1.msra.mxu0 0.0
        %703 = vmatprep.subr.mxu0 0.0
        %704 = vmatpush1.msra.mxu0 0.0
        %705 = vmatprep.subr.mxu0 0.0
        %706 = vmatpush1.msra.mxu0 0.0
        %707 = vmatprep.subr.mxu0 0.0
        %708 = vmatpush1.msra.mxu0 0.0
        %709 = vmatprep.subr.mxu0 0.0
        %710 = vmatpush1.msra.mxu0 0.0
        %711 = vmatprep.subr.mxu0 0.0
        %712 = vmatpush1.msra.mxu0 0.0
        %713 = vmatprep.subr.mxu0 0.0
        %714 = vmatpush1.msra.mxu0 0.0
        %715 = vmatprep.subr.mxu0 0.0
        %716 = vmatpush1.msra.mxu0 0.0
        %717 = vmatprep.subr.mxu0 0.0
        %718 = vmatpush1.msra.mxu0 0.0
        %719 = vmatprep.subr.mxu0 0.0
        %720 = vmatpush1.msra.mxu0 0.0
        %721 = vmatprep.subr.mxu0 0.0
        %722 = vmatpush1.msra.mxu0 0.0
        %723 = vmatprep.subr.mxu0 0.0
        %724 = vmatpush1.msra.mxu0 0.0
        %725 = vmatprep.subr.mxu0 0.0
        %726 = vmatpush1.msra.mxu0 0.0
        %727 = vmatprep.mubr.f32.mxu0 0.0
        %728 = vmatmul.mubr.f32.gmra.mrb[0].mxu0 %v652
        %v729 = vpop.f32.mrb[0].mxu0
        %v730 = vadd.f32 %v629, %v729
        %v731 = vpop.f32.mrb[0].mxu0
        %v732 = vadd.f32 %v631, %v731
        %733 = vmatprep.mubr.f32.mxu0 0.0
        %734 = vmatmul.mubr.f32.gmra.mrb[0].mxu0 %v655
        %v735 = vpop.f32.mrb[0].mxu0
        %v736 = vadd.f32 %v635, %v735
        %v737 = vpop.f32.mrb[0].mxu0
        %v738 = vadd.f32 %v637, %v737
        %739 = vmatprep.mubr.f32.mxu0 0.0
        %740 = vmatmul.mubr.f32.gmra.mrb[0].mxu0 %v658
        %v741 = vpop.f32.mrb[0].mxu0
        %v742 = vadd.f32 %v641, %v741
        %v743 = vpop.f32.mrb[0].mxu0
        %v744 = vadd.f32 %v643, %v743
        %745 = vmatprep.mubr.f32.mxu0 0.0
        %746 = vmatmul.mubr.f32.gmra.mrb[0].mxu0 %v661
        %v747 = vpop.f32.mrb[0].mxu0
        %v748 = vadd.f32 %v647, %v747
        %v749 = vpop.f32.mrb[0].mxu0
        %v750 = vadd.f32 %v649, %v749
        %751 = vdwg.mxu0
        %v752 = vld [vmem:[%s491 + $0x2] sm:$0xff]
        %v753 = vld [vmem:[%s491 + $0xa] sm:$0xff]
        %v754 = vld [vmem:[%s491 + $0x12] sm:$0xff]
        %v755 = vld [vmem:[%s491 + $0x1a] sm:$0xf]
        %s756 = scalar_lea.vmem %s1, 384
        %v757 = vld [vmem:[%s756] sm:$0xff]
        %v758 = vld [vmem:[%s756 + $0x8] sm:$0xff]
        %v759 = vld [vmem:[%s756 + $0x10] sm:$0xff]
        %v760 = vld [vmem:[%s756 + $0x18] sm:$0xff]
        %v761 = vld [vmem:[%s756 + $0x20] sm:$0xff]
        %v762 = vld [vmem:[%s756 + $0x28] sm:$0xff]
        %v763 = vld [vmem:[%s756 + $0x30] sm:$0xff]
        %v764 = vld [vmem:[%s756 + $0x38] sm:$0xff]
        %v765 = vld [vmem:[%s756 + $0x40] sm:$0xff]
        %v766 = vld [vmem:[%s756 + $0x48] sm:$0xff]
        %v767 = vld [vmem:[%s756 + $0x50] sm:$0xff]
        %v768 = vld [vmem:[%s756 + $0x58] sm:$0xff]
        %v769 = vld [vmem:[%s756 + $0x60] sm:$0xff]
        %v770 = vld [vmem:[%s756 + $0x68] sm:$0xff]
        %v771 = vld [vmem:[%s756 + $0x70] sm:$0xff]
        %v772 = vld [vmem:[%s756 + $0x78] sm:$0xff]
        %v773 = vld [vmem:[%s756 + $0x80] sm:$0xff]
        %v774 = vld [vmem:[%s756 + $0x88] sm:$0xff]
        %v775 = vld [vmem:[%s756 + $0x90] sm:$0xff]
        %v776 = vld [vmem:[%s756 + $0x98] sm:$0xff]
        %v777 = vld [vmem:[%s756 + $0xa0] sm:$0xff]
        %v778 = vld [vmem:[%s756 + $0xa8] sm:$0xff]
        %v779 = vld [vmem:[%s756 + $0xb0] sm:$0xff]
        %v780 = vld [vmem:[%s756 + $0xb8] sm:$0xff]
        %v782 = vsel %vm549, %v752, 0
        %v785 = vsel %vm549, %v753, 0
        %v788 = vsel %vm549, %v754, 0
        %v791 = vsel %vm549, %v755, 0
        %793 = vmatprep.subr.mxu0 %v758
        %794 = vmatpush1.msra.mxu0 %v757
        %795 = vmatprep.subr.mxu0 %v760
        %796 = vmatpush1.msra.mxu0 %v759
        %797 = vmatprep.subr.mxu0 %v762
        %798 = vmatpush1.msra.mxu0 %v761
        %799 = vmatprep.subr.mxu0 %v764
        %800 = vmatpush1.msra.mxu0 %v763
        %801 = vmatprep.subr.mxu0 %v766
        %802 = vmatpush1.msra.mxu0 %v765
        %803 = vmatprep.subr.mxu0 %v768
        %804 = vmatpush1.msra.mxu0 %v767
        %805 = vmatprep.subr.mxu0 %v770
        %806 = vmatpush1.msra.mxu0 %v769
        %807 = vmatprep.subr.mxu0 %v772
        %808 = vmatpush1.msra.mxu0 %v771
        %809 = vmatprep.subr.mxu0 %v774
        %810 = vmatpush1.msra.mxu0 %v773
        %811 = vmatprep.subr.mxu0 %v776
        %812 = vmatpush1.msra.mxu0 %v775
        %813 = vmatprep.subr.mxu0 %v778
        %814 = vmatpush1.msra.mxu0 %v777
        %815 = vmatprep.subr.mxu0 %v780
        %816 = vmatpush1.msra.mxu0 %v779
        %817 = vmatprep.subr.mxu0 0.0
        %818 = vmatpush1.msra.mxu0 0.0
        %819 = vmatprep.subr.mxu0 0.0
        %820 = vmatpush1.msra.mxu0 0.0
        %821 = vmatprep.subr.mxu0 0.0
        %822 = vmatpush1.msra.mxu0 0.0
        %823 = vmatprep.subr.mxu0 0.0
        %824 = vmatpush1.msra.mxu0 0.0
        %825 = vmatprep.subr.mxu0 0.0
        %826 = vmatpush1.msra.mxu0 0.0
        %827 = vmatprep.subr.mxu0 0.0
        %828 = vmatpush1.msra.mxu0 0.0
        %829 = vmatprep.subr.mxu0 0.0
        %830 = vmatpush1.msra.mxu0 0.0
        %831 = vmatprep.subr.mxu0 0.0
        %832 = vmatpush1.msra.mxu0 0.0
        %833 = vmatprep.subr.mxu0 0.0
        %834 = vmatpush1.msra.mxu0 0.0
        %835 = vmatprep.subr.mxu0 0.0
        %836 = vmatpush1.msra.mxu0 0.0
        %837 = vmatprep.subr.mxu0 0.0
        %838 = vmatpush1.msra.mxu0 0.0
        %839 = vmatprep.subr.mxu0 0.0
        %840 = vmatpush1.msra.mxu0 0.0
        %841 = vmatprep.subr.mxu0 0.0
        %842 = vmatpush1.msra.mxu0 0.0
        %843 = vmatprep.subr.mxu0 0.0
        %844 = vmatpush1.msra.mxu0 0.0
        %845 = vmatprep.subr.mxu0 0.0
        %846 = vmatpush1.msra.mxu0 0.0
        %847 = vmatprep.subr.mxu0 0.0
        %848 = vmatpush1.msra.mxu0 0.0
        %849 = vmatprep.subr.mxu0 0.0
        %850 = vmatpush1.msra.mxu0 0.0
        %851 = vmatprep.subr.mxu0 0.0
        %852 = vmatpush1.msra.mxu0 0.0
        %853 = vmatprep.subr.mxu0 0.0
        %854 = vmatpush1.msra.mxu0 0.0
        %855 = vmatprep.subr.mxu0 0.0
        %856 = vmatpush1.msra.mxu0 0.0
        %857 = vmatprep.mubr.f32.mxu0 0.0
        %858 = vmatmul.mubr.f32.gmra.mrb[0].mxu0 %v782
        %v859 = vpop.f32.mrb[0].mxu0
        %v860 = vadd.f32 0.0, %v859
        %v861 = vpop.f32.mrb[0].mxu0
        %v862 = vadd.f32 0.0, %v861
        %863 = vmatprep.mubr.f32.mxu0 0.0
        %864 = vmatmul.mubr.f32.gmra.mrb[0].mxu0 %v785
        %v865 = vpop.f32.mrb[0].mxu0
        %v866 = vadd.f32 0.0, %v865
        %v867 = vpop.f32.mrb[0].mxu0
        %v868 = vadd.f32 0.0, %v867
        %869 = vmatprep.mubr.f32.mxu0 0.0
        %870 = vmatmul.mubr.f32.gmra.mrb[0].mxu0 %v788
        %v871 = vpop.f32.mrb[0].mxu0
        %v872 = vadd.f32 0.0, %v871
        %v873 = vpop.f32.mrb[0].mxu0
        %v874 = vadd.f32 0.0, %v873
        %875 = vmatprep.mubr.f32.mxu0 0.0
        %876 = vmatmul.mubr.f32.gmra.mrb[0].mxu0 %v791
        %v877 = vpop.f32.mrb[0].mxu0
        %v878 = vadd.f32 0.0, %v877
        %v879 = vpop.f32.mrb[0].mxu0
        %v880 = vadd.f32 0.0, %v879
        %881 = vdwg.mxu0
        %v882 = vadd.f32 %v730, %v860
        %v883 = vadd.f32 %v732, %v862
        %v884 = vadd.f32 %v736, %v866
        %v885 = vadd.f32 %v738, %v868
        %v886 = vadd.f32 %v742, %v872
        %v887 = vadd.f32 %v744, %v874
        %v888 = vadd.f32 %v748, %v878
        %v889 = vadd.f32 %v750, %v880
        %v890 = vld [vmem:[%s491 + $0x3] sm:$0xff]
        %v891 = vld [vmem:[%s491 + $0xb] sm:$0xff]
        %v892 = vld [vmem:[%s491 + $0x13] sm:$0xff]
        %v893 = vld [vmem:[%s491 + $0x1b] sm:$0xf]
        %s894 = scalar_lea.vmem %s1, 576
        %v895 = vld [vmem:[%s894] sm:$0xff]
        %v896 = vld [vmem:[%s894 + $0x8] sm:$0xff]
        %v897 = vld [vmem:[%s894 + $0x10] sm:$0xff]
        %v898 = vld [vmem:[%s894 + $0x18] sm:$0xff]
        %v899 = vld [vmem:[%s894 + $0x20] sm:$0xff]
        %v900 = vld [vmem:[%s894 + $0x28] sm:$0xff]
        %v901 = vld [vmem:[%s894 + $0x30] sm:$0xff]
        %v902 = vld [vmem:[%s894 + $0x38] sm:$0xff]
        %v903 = vld [vmem:[%s894 + $0x40] sm:$0xff]
        %v904 = vld [vmem:[%s894 + $0x48] sm:$0xff]
        %v905 = vld [vmem:[%s894 + $0x50] sm:$0xff]
        %v906 = vld [vmem:[%s894 + $0x58] sm:$0xff]
        %v907 = vld [vmem:[%s894 + $0x60] sm:$0xff]
        %v908 = vld [vmem:[%s894 + $0x68] sm:$0xff]
        %v909 = vld [vmem:[%s894 + $0x70] sm:$0xff]
        %v910 = vld [vmem:[%s894 + $0x78] sm:$0xff]
        %v911 = vld [vmem:[%s894 + $0x80] sm:$0xff]
        %v912 = vld [vmem:[%s894 + $0x88] sm:$0xff]
        %v913 = vld [vmem:[%s894 + $0x90] sm:$0xff]
        %v914 = vld [vmem:[%s894 + $0x98] sm:$0xff]
        %v915 = vld [vmem:[%s894 + $0xa0] sm:$0xff]
        %v916 = vld [vmem:[%s894 + $0xa8] sm:$0xff]
        %v917 = vld [vmem:[%s894 + $0xb0] sm:$0xff]
        %v918 = vld [vmem:[%s894 + $0xb8] sm:$0xff]
        %v920 = vsel %vm549, %v890, 0
        %v923 = vsel %vm549, %v891, 0
        %v926 = vsel %vm549, %v892, 0
        %v929 = vsel %vm549, %v893, 0
        %931 = vmatprep.subr.mxu0 %v896
        %932 = vmatpush1.msra.mxu0 %v895
        %933 = vmatprep.subr.mxu0 %v898
        %934 = vmatpush1.msra.mxu0 %v897
        %935 = vmatprep.subr.mxu0 %v900
        %936 = vmatpush1.msra.mxu0 %v899
        %937 = vmatprep.subr.mxu0 %v902
        %938 = vmatpush1.msra.mxu0 %v901
        %939 = vmatprep.subr.mxu0 %v904
        %940 = vmatpush1.msra.mxu0 %v903
        %941 = vmatprep.subr.mxu0 %v906
        %942 = vmatpush1.msra.mxu0 %v905
        %943 = vmatprep.subr.mxu0 %v908
        %944 = vmatpush1.msra.mxu0 %v907
        %945 = vmatprep.subr.mxu0 %v910
        %946 = vmatpush1.msra.mxu0 %v909
        %947 = vmatprep.subr.mxu0 %v912
        %948 = vmatpush1.msra.mxu0 %v911
        %949 = vmatprep.subr.mxu0 %v914
        %950 = vmatpush1.msra.mxu0 %v913
        %951 = vmatprep.subr.mxu0 %v916
        %952 = vmatpush1.msra.mxu0 %v915
        %953 = vmatprep.subr.mxu0 %v918
        %954 = vmatpush1.msra.mxu0 %v917
        %955 = vmatprep.subr.mxu0 0.0
        %956 = vmatpush1.msra.mxu0 0.0
        %957 = vmatprep.subr.mxu0 0.0
        %958 = vmatpush1.msra.mxu0 0.0
        %959 = vmatprep.subr.mxu0 0.0
        %960 = vmatpush1.msra.mxu0 0.0
        %961 = vmatprep.subr.mxu0 0.0
        %962 = vmatpush1.msra.mxu0 0.0
        %963 = vmatprep.subr.mxu0 0.0
        %964 = vmatpush1.msra.mxu0 0.0
        %965 = vmatprep.subr.mxu0 0.0
        %966 = vmatpush1.msra.mxu0 0.0
        %967 = vmatprep.subr.mxu0 0.0
        %968 = vmatpush1.msra.mxu0 0.0
        %969 = vmatprep.subr.mxu0 0.0
        %970 = vmatpush1.msra.mxu0 0.0
        %971 = vmatprep.subr.mxu0 0.0
        %972 = vmatpush1.msra.mxu0 0.0
        %973 = vmatprep.subr.mxu0 0.0
        %974 = vmatpush1.msra.mxu0 0.0
        %975 = vmatprep.subr.mxu0 0.0
        %976 = vmatpush1.msra.mxu0 0.0
        %977 = vmatprep.subr.mxu0 0.0
        %978 = vmatpush1.msra.mxu0 0.0
        %979 = vmatprep.subr.mxu0 0.0
        %980 = vmatpush1.msra.mxu0 0.0
        %981 = vmatprep.subr.mxu0 0.0
        %982 = vmatpush1.msra.mxu0 0.0
        %983 = vmatprep.subr.mxu0 0.0
        %984 = vmatpush1.msra.mxu0 0.0
        %985 = vmatprep.subr.mxu0 0.0
        %986 = vmatpush1.msra.mxu0 0.0
        %987 = vmatprep.subr.mxu0 0.0
        %988 = vmatpush1.msra.mxu0 0.0
        %989 = vmatprep.subr.mxu0 0.0
        %990 = vmatpush1.msra.mxu0 0.0
        %991 = vmatprep.subr.mxu0 0.0
        %992 = vmatpush1.msra.mxu0 0.0
        %993 = vmatprep.subr.mxu0 0.0
        %994 = vmatpush1.msra.mxu0 0.0
        %995 = vmatprep.mubr.f32.mxu0 0.0
        %996 = vmatmul.mubr.f32.gmra.mrb[0].mxu0 %v920
        %v997 = vpop.f32.mrb[0].mxu0
        %v998 = vadd.f32 0.0, %v997
        %v999 = vpop.f32.mrb[0].mxu0
        %v1000 = vadd.f32 0.0, %v999
        %1001 = vmatprep.mubr.f32.mxu0 0.0
        %1002 = vmatmul.mubr.f32.gmra.mrb[0].mxu0 %v923
        %v1003 = vpop.f32.mrb[0].mxu0
        %v1004 = vadd.f32 0.0, %v1003
        %v1005 = vpop.f32.mrb[0].mxu0
        %v1006 = vadd.f32 0.0, %v1005
        %1007 = vmatprep.mubr.f32.mxu0 0.0
        %1008 = vmatmul.mubr.f32.gmra.mrb[0].mxu0 %v926
        %v1009 = vpop.f32.mrb[0].mxu0
        %v1010 = vadd.f32 0.0, %v1009
        %v1011 = vpop.f32.mrb[0].mxu0
        %v1012 = vadd.f32 0.0, %v1011
        %1013 = vmatprep.mubr.f32.mxu0 0.0
        %1014 = vmatmul.mubr.f32.gmra.mrb[0].mxu0 %v929
        %v1015 = vpop.f32.mrb[0].mxu0
        %v1016 = vadd.f32 0.0, %v1015
        %v1017 = vpop.f32.mrb[0].mxu0
        %v1018 = vadd.f32 0.0, %v1017
        %1019 = vdwg.mxu0
        %v1020 = vadd.f32 %v882, %v998
        %v1021 = vadd.f32 %v883, %v1000
        %v1022 = vadd.f32 %v884, %v1004
        %v1023 = vadd.f32 %v885, %v1006
        %v1024 = vadd.f32 %v886, %v1010
        %v1025 = vadd.f32 %v887, %v1012
        %v1026 = vadd.f32 %v888, %v1016
        %v1027 = vadd.f32 %v889, %v1018
        %v1028 = vld [vmem:[%s491 + $0x4] sm:$0xff]
        %v1029 = vld [vmem:[%s491 + $0xc] sm:$0xff]
        %v1030 = vld [vmem:[%s491 + $0x14] sm:$0xff]
        %v1031 = vld [vmem:[%s491 + $0x1c] sm:$0xf]
        %s1032 = scalar_lea.vmem %s1, 768
        %v1033 = vld [vmem:[%s1032] sm:$0xff]
        %v1034 = vld [vmem:[%s1032 + $0x8] sm:$0xff]
        %v1035 = vld [vmem:[%s1032 + $0x10] sm:$0xff]
        %v1036 = vld [vmem:[%s1032 + $0x18] sm:$0xff]
        %v1037 = vld [vmem:[%s1032 + $0x20] sm:$0xff]
        %v1038 = vld [vmem:[%s1032 + $0x28] sm:$0xff]
        %v1039 = vld [vmem:[%s1032 + $0x30] sm:$0xff]
        %v1040 = vld [vmem:[%s1032 + $0x38] sm:$0xff]
        %v1041 = vld [vmem:[%s1032 + $0x40] sm:$0xff]
        %v1042 = vld [vmem:[%s1032 + $0x48] sm:$0xff]
        %v1043 = vld [vmem:[%s1032 + $0x50] sm:$0xff]
        %v1044 = vld [vmem:[%s1032 + $0x58] sm:$0xff]
        %v1045 = vld [vmem:[%s1032 + $0x60] sm:$0xff]
        %v1046 = vld [vmem:[%s1032 + $0x68] sm:$0xff]
        %v1047 = vld [vmem:[%s1032 + $0x70] sm:$0xff]
        %v1048 = vld [vmem:[%s1032 + $0x78] sm:$0xff]
        %v1049 = vld [vmem:[%s1032 + $0x80] sm:$0xff]
        %v1050 = vld [vmem:[%s1032 + $0x88] sm:$0xff]
        %v1051 = vld [vmem:[%s1032 + $0x90] sm:$0xff]
        %v1052 = vld [vmem:[%s1032 + $0x98] sm:$0xff]
        %v1053 = vld [vmem:[%s1032 + $0xa0] sm:$0xff]
        %v1054 = vld [vmem:[%s1032 + $0xa8] sm:$0xff]
        %v1055 = vld [vmem:[%s1032 + $0xb0] sm:$0xff]
        %v1056 = vld [vmem:[%s1032 + $0xb8] sm:$0xff]
        %v1058 = vsel %vm549, %v1028, 0
        %v1061 = vsel %vm549, %v1029, 0
        %v1064 = vsel %vm549, %v1030, 0
        %v1067 = vsel %vm549, %v1031, 0
        %1069 = vmatprep.subr.mxu0 %v1034
        %1070 = vmatpush1.msra.mxu0 %v1033
        %1071 = vmatprep.subr.mxu0 %v1036
        %1072 = vmatpush1.msra.mxu0 %v1035
        %1073 = vmatprep.subr.mxu0 %v1038
        %1074 = vmatpush1.msra.mxu0 %v1037
        %1075 = vmatprep.subr.mxu0 %v1040
        %1076 = vmatpush1.msra.mxu0 %v1039
        %1077 = vmatprep.subr.mxu0 %v1042
        %1078 = vmatpush1.msra.mxu0 %v1041
        %1079 = vmatprep.subr.mxu0 %v1044
        %1080 = vmatpush1.msra.mxu0 %v1043
        %1081 = vmatprep.subr.mxu0 %v1046
        %1082 = vmatpush1.msra.mxu0 %v1045
        %1083 = vmatprep.subr.mxu0 %v1048
        %1084 = vmatpush1.msra.mxu0 %v1047
        %1085 = vmatprep.subr.mxu0 %v1050
        %1086 = vmatpush1.msra.mxu0 %v1049
        %1087 = vmatprep.subr.mxu0 %v1052
        %1088 = vmatpush1.msra.mxu0 %v1051
        %1089 = vmatprep.subr.mxu0 %v1054
        %1090 = vmatpush1.msra.mxu0 %v1053
        %1091 = vmatprep.subr.mxu0 %v1056
        %1092 = vmatpush1.msra.mxu0 %v1055
        %1093 = vmatprep.subr.mxu0 0.0
        %1094 = vmatpush1.msra.mxu0 0.0
        %1095 = vmatprep.subr.mxu0 0.0
        %1096 = vmatpush1.msra.mxu0 0.0
        %1097 = vmatprep.subr.mxu0 0.0
        %1098 = vmatpush1.msra.mxu0 0.0
        %1099 = vmatprep.subr.mxu0 0.0
        %1100 = vmatpush1.msra.mxu0 0.0
        %1101 = vmatprep.subr.mxu0 0.0
        %1102 = vmatpush1.msra.mxu0 0.0
        %1103 = vmatprep.subr.mxu0 0.0
        %1104 = vmatpush1.msra.mxu0 0.0
        %1105 = vmatprep.subr.mxu0 0.0
        %1106 = vmatpush1.msra.mxu0 0.0
        %1107 = vmatprep.subr.mxu0 0.0
        %1108 = vmatpush1.msra.mxu0 0.0
        %1109 = vmatprep.subr.mxu0 0.0
        %1110 = vmatpush1.msra.mxu0 0.0
        %1111 = vmatprep.subr.mxu0 0.0
        %1112 = vmatpush1.msra.mxu0 0.0
        %1113 = vmatprep.subr.mxu0 0.0
        %1114 = vmatpush1.msra.mxu0 0.0
        %1115 = vmatprep.subr.mxu0 0.0
        %1116 = vmatpush1.msra.mxu0 0.0
        %1117 = vmatprep.subr.mxu0 0.0
        %1118 = vmatpush1.msra.mxu0 0.0
        %1119 = vmatprep.subr.mxu0 0.0
        %1120 = vmatpush1.msra.mxu0 0.0
        %1121 = vmatprep.subr.mxu0 0.0
        %1122 = vmatpush1.msra.mxu0 0.0
        %1123 = vmatprep.subr.mxu0 0.0
        %1124 = vmatpush1.msra.mxu0 0.0
        %1125 = vmatprep.subr.mxu0 0.0
        %1126 = vmatpush1.msra.mxu0 0.0
        %1127 = vmatprep.subr.mxu0 0.0
        %1128 = vmatpush1.msra.mxu0 0.0
        %1129 = vmatprep.subr.mxu0 0.0
        %1130 = vmatpush1.msra.mxu0 0.0
        %1131 = vmatprep.subr.mxu0 0.0
        %1132 = vmatpush1.msra.mxu0 0.0
        %1133 = vmatprep.mubr.f32.mxu0 0.0
        %1134 = vmatmul.mubr.f32.gmra.mrb[0].mxu0 %v1058
        %v1135 = vpop.f32.mrb[0].mxu0
        %v1136 = vadd.f32 0.0, %v1135
        %v1137 = vpop.f32.mrb[0].mxu0
        %v1138 = vadd.f32 0.0, %v1137
        %1139 = vmatprep.mubr.f32.mxu0 0.0
        %1140 = vmatmul.mubr.f32.gmra.mrb[0].mxu0 %v1061
        %v1141 = vpop.f32.mrb[0].mxu0
        %v1142 = vadd.f32 0.0, %v1141
        %v1143 = vpop.f32.mrb[0].mxu0
        %v1144 = vadd.f32 0.0, %v1143
        %1145 = vmatprep.mubr.f32.mxu0 0.0
        %1146 = vmatmul.mubr.f32.gmra.mrb[0].mxu0 %v1064
        %v1147 = vpop.f32.mrb[0].mxu0
        %v1148 = vadd.f32 0.0, %v1147
        %v1149 = vpop.f32.mrb[0].mxu0
        %v1150 = vadd.f32 0.0, %v1149
        %1151 = vmatprep.mubr.f32.mxu0 0.0
        %1152 = vmatmul.mubr.f32.gmra.mrb[0].mxu0 %v1067
        %v1153 = vpop.f32.mrb[0].mxu0
        %v1154 = vadd.f32 0.0, %v1153
        %v1155 = vpop.f32.mrb[0].mxu0
        %v1156 = vadd.f32 0.0, %v1155
        %1157 = vdwg.mxu0
        %v1158 = vadd.f32 %v1020, %v1136
        %v1159 = vadd.f32 %v1021, %v1138
        %v1160 = vadd.f32 %v1022, %v1142
        %v1161 = vadd.f32 %v1023, %v1144
        %v1162 = vadd.f32 %v1024, %v1148
        %v1163 = vadd.f32 %v1025, %v1150
        %v1164 = vadd.f32 %v1026, %v1154
        %v1165 = vadd.f32 %v1027, %v1156
        %v1166 = vld [vmem:[%s2] sm:$0x3]
        %v1168 = vlaneseq
        %v1169 = vshrl.u32 %v1168, 7
        %v1170 = vsub.s32 0, %v1169
        %v1171 = vrot.slane %v1166, %v1170
        %v1172 = vlaneseq
        %v1173 = vshrl.u32 %v1172, 7
        %v1174 = vsub.s32 1, %v1173
        %v1175 = vrot.slane %v1166, %v1174
        %v1178 = vadd.f32 %v1158, %v1171
        %v1179 = vadd.f32 %v1159, %v1175
        %v1180 = vadd.f32 %v1160, %v1171
        %v1181 = vadd.f32 %v1161, %v1175
        %v1182 = vadd.f32 %v1162, %v1171
        %v1183 = vadd.f32 %v1163, %v1175
        %v1184 = vadd.f32 %v1164, %v1171
        %v1185 = vadd.f32 %v1165, %v1175
        %v1186 = vmax.f32 %v1178, 0.0
        %v1187 = vmax.f32 %v1179, 0.0
        %v1188 = vmax.f32 %v1180, 0.0
        %v1189 = vmax.f32 %v1181, 0.0
        %v1190 = vmax.f32 %v1182, 0.0
        %v1191 = vmax.f32 %v1183, 0.0
        %v1192 = vmax.f32 %v1184, 0.0
        %v1193 = vmax.f32 %v1185, 0.0
        %v1194 = vld [vmem:[%s3] sm:$0xff]
        %v1195 = vld [vmem:[%s3 + $0x8] sm:$0xff]
        %v1196 = vld [vmem:[%s3 + $0x10] sm:$0xff]
        %v1197 = vld [vmem:[%s3 + $0x18] sm:$0xff]
        %v1198 = vld [vmem:[%s3 + $0x20] sm:$0xff]
        %v1199 = vld [vmem:[%s3 + $0x28] sm:$0xff]
        %v1200 = vld [vmem:[%s3 + $0x30] sm:$0xff]
        %v1201 = vld [vmem:[%s3 + $0x38] sm:$0xff]
        %v1202 = vld [vmem:[%s3 + $0x40] sm:$0xff]
        %v1203 = vld [vmem:[%s3 + $0x48] sm:$0xff]
        %v1204 = vld [vmem:[%s3 + $0x50] sm:$0xff]
        %v1205 = vld [vmem:[%s3 + $0x58] sm:$0xff]
        %v1206 = vld [vmem:[%s3 + $0x60] sm:$0xff]
        %v1207 = vld [vmem:[%s3 + $0x68] sm:$0xff]
        %v1208 = vld [vmem:[%s3 + $0x70] sm:$0xff]
        %v1209 = vld [vmem:[%s3 + $0x78] sm:$0xff]
        %v1210 = vld [vmem:[%s3 + $0x80] sm:$0xff]
        %v1211 = vld [vmem:[%s3 + $0x88] sm:$0xff]
        %v1212 = vld [vmem:[%s3 + $0x90] sm:$0xff]
        %v1213 = vld [vmem:[%s3 + $0x98] sm:$0xff]
        %v1214 = vld [vmem:[%s3 + $0xa0] sm:$0xff]
        %vm1215 = vcmask 326656
        %v1217 = vsel %vm1215, %v1187, 0
        %v1220 = vsel %vm1215, %v1189, 0
        %v1223 = vsel %vm1215, %v1191, 0
        %v1226 = vsel %vm1215, %v1193, 0
        %1228 = vmatprep.subr.mxu0 0.0
        %1229 = vmatpush1.msra.mxu0 %v1194
        %1230 = vmatprep.subr.mxu0 0.0
        %1231 = vmatpush1.msra.mxu0 %v1195
        %1232 = vmatprep.subr.mxu0 0.0
        %1233 = vmatpush1.msra.mxu0 %v1196
        %1234 = vmatprep.subr.mxu0 0.0
        %1235 = vmatpush1.msra.mxu0 %v1197
        %1236 = vmatprep.subr.mxu0 0.0
        %1237 = vmatpush1.msra.mxu0 %v1198
        %1238 = vmatprep.subr.mxu0 0.0
        %1239 = vmatpush1.msra.mxu0 %v1199
        %1240 = vmatprep.subr.mxu0 0.0
        %1241 = vmatpush1.msra.mxu0 %v1200
        %1242 = vmatprep.subr.mxu0 0.0
        %1243 = vmatpush1.msra.mxu0 %v1201
        %1244 = vmatprep.subr.mxu0 0.0
        %1245 = vmatpush1.msra.mxu0 %v1202
        %1246 = vmatprep.subr.mxu0 0.0
        %1247 = vmatpush1.msra.mxu0 %v1203
        %1248 = vmatprep.subr.mxu0 0.0
        %1249 = vmatpush1.msra.mxu0 %v1204
        %1250 = vmatprep.subr.mxu0 0.0
        %1251 = vmatpush1.msra.mxu0 %v1205
        %1252 = vmatprep.subr.mxu0 0.0
        %1253 = vmatpush1.msra.mxu0 %v1206
        %1254 = vmatprep.subr.mxu0 0.0
        %1255 = vmatpush1.msra.mxu0 %v1207
        %1256 = vmatprep.subr.mxu0 0.0
        %1257 = vmatpush1.msra.mxu0 %v1208
        %1258 = vmatprep.subr.mxu0 0.0
        %1259 = vmatpush1.msra.mxu0 %v1209
        %1260 = vmatprep.subr.mxu0 0.0
        %1261 = vmatpush1.msra.mxu0 %v1210
        %1262 = vmatprep.subr.mxu0 0.0
        %1263 = vmatpush1.msra.mxu0 %v1211
        %1264 = vmatprep.subr.mxu0 0.0
        %1265 = vmatpush1.msra.mxu0 %v1212
        %1266 = vmatprep.subr.mxu0 0.0
        %1267 = vmatpush1.msra.mxu0 %v1213
        %1268 = vmatprep.subr.mxu0 0.0
        %1269 = vmatpush1.msra.mxu0 %v1214
        %1270 = vmatprep.subr.mxu0 0.0
        %1271 = vmatpush1.msra.mxu0 0.0
        %1272 = vmatprep.subr.mxu0 0.0
        %1273 = vmatpush1.msra.mxu0 0.0
        %1274 = vmatprep.subr.mxu0 0.0
        %1275 = vmatpush1.msra.mxu0 0.0
        %1276 = vmatprep.subr.mxu0 0.0
        %1277 = vmatpush1.msra.mxu0 0.0
        %1278 = vmatprep.subr.mxu0 0.0
        %1279 = vmatpush1.msra.mxu0 0.0
        %1280 = vmatprep.subr.mxu0 0.0
        %1281 = vmatpush1.msra.mxu0 0.0
        %1282 = vmatprep.subr.mxu0 0.0
        %1283 = vmatpush1.msra.mxu0 0.0
        %1284 = vmatprep.subr.mxu0 0.0
        %1285 = vmatpush1.msra.mxu0 0.0
        %1286 = vmatprep.subr.mxu0 0.0
        %1287 = vmatpush1.msra.mxu0 0.0
        %1288 = vmatprep.subr.mxu0 0.0
        %1289 = vmatpush1.msra.mxu0 0.0
        %1290 = vmatprep.subr.mxu0 0.0
        %1291 = vmatpush1.msra.mxu0 0.0
        %1292 = vmatprep.mubr.f32.mxu0 %v1217
        %1293 = vmatmul.mubr.f32.gmra.mrb[0].mxu0 %v1186
        %v1294 = vpop.f32.mrb[0].mxu0
        %v1295 = vadd.f32 0.0, %v1294
        %v1296 = vpop.f32.mrb[0].mxu0
        %1297 = vmatprep.mubr.f32.mxu0 %v1220
        %1298 = vmatmul.mubr.f32.gmra.mrb[0].mxu0 %v1188
        %v1299 = vpop.f32.mrb[0].mxu0
        %v1300 = vadd.f32 0.0, %v1299
        %v1301 = vpop.f32.mrb[0].mxu0
        %1302 = vmatprep.mubr.f32.mxu0 %v1223
        %1303 = vmatmul.mubr.f32.gmra.mrb[0].mxu0 %v1190
        %v1304 = vpop.f32.mrb[0].mxu0
        %v1305 = vadd.f32 0.0, %v1304
        %v1306 = vpop.f32.mrb[0].mxu0
        %1307 = vmatprep.mubr.f32.mxu0 %v1226
        %1308 = vmatmul.mubr.f32.gmra.mrb[0].mxu0 %v1192
        %v1309 = vpop.f32.mrb[0].mxu0
        %v1310 = vadd.f32 0.0, %v1309
        %v1311 = vpop.f32.mrb[0].mxu0
        %1312 = vdwg.mxu0
        %s1313 = scalar_lea.vmem %s3, 168
        %v1314 = vld [vmem:[%s1313] sm:$0xff]
        %v1315 = vld [vmem:[%s1313 + $0x8] sm:$0xff]
        %v1316 = vld [vmem:[%s1313 + $0x10] sm:$0xff]
        %v1317 = vld [vmem:[%s1313 + $0x18] sm:$0xff]
        %v1318 = vld [vmem:[%s1313 + $0x20] sm:$0xff]
        %v1319 = vld [vmem:[%s1313 + $0x28] sm:$0xff]
        %v1320 = vld [vmem:[%s1313 + $0x30] sm:$0xff]
        %v1321 = vld [vmem:[%s1313 + $0x38] sm:$0xff]
        %v1322 = vld [vmem:[%s1313 + $0x40] sm:$0xff]
        %v1323 = vld [vmem:[%s1313 + $0x48] sm:$0xff]
        %v1324 = vld [vmem:[%s1313 + $0x50] sm:$0xff]
        %v1325 = vld [vmem:[%s1313 + $0x58] sm:$0xff]
        %v1326 = vld [vmem:[%s1313 + $0x60] sm:$0xff]
        %v1327 = vld [vmem:[%s1313 + $0x68] sm:$0xff]
        %v1328 = vld [vmem:[%s1313 + $0x70] sm:$0xff]
        %v1329 = vld [vmem:[%s1313 + $0x78] sm:$0xff]
        %v1330 = vld [vmem:[%s1313 + $0x80] sm:$0xff]
        %v1331 = vld [vmem:[%s1313 + $0x88] sm:$0xff]
        %v1332 = vld [vmem:[%s1313 + $0x90] sm:$0xff]
        %v1333 = vld [vmem:[%s1313 + $0x98] sm:$0xff]
        %v1334 = vld [vmem:[%s1313 + $0xa0] sm:$0xff]
        %1335 = vmatprep.subr.mxu0 0.0
        %1336 = vmatpush1.msra.mxu0 %v1314
        %1337 = vmatprep.subr.mxu0 0.0
        %1338 = vmatpush1.msra.mxu0 %v1315
        %1339 = vmatprep.subr.mxu0 0.0
        %1340 = vmatpush1.msra.mxu0 %v1316
        %1341 = vmatprep.subr.mxu0 0.0
        %1342 = vmatpush1.msra.mxu0 %v1317
        %1343 = vmatprep.subr.mxu0 0.0
        %1344 = vmatpush1.msra.mxu0 %v1318
        %1345 = vmatprep.subr.mxu0 0.0
        %1346 = vmatpush1.msra.mxu0 %v1319
        %1347 = vmatprep.subr.mxu0 0.0
        %1348 = vmatpush1.msra.mxu0 %v1320
        %1349 = vmatprep.subr.mxu0 0.0
        %1350 = vmatpush1.msra.mxu0 %v1321
        %1351 = vmatprep.subr.mxu0 0.0
        %1352 = vmatpush1.msra.mxu0 %v1322
        %1353 = vmatprep.subr.mxu0 0.0
        %1354 = vmatpush1.msra.mxu0 %v1323
        %1355 = vmatprep.subr.mxu0 0.0
        %1356 = vmatpush1.msra.mxu0 %v1324
        %1357 = vmatprep.subr.mxu0 0.0
        %1358 = vmatpush1.msra.mxu0 %v1325
        %1359 = vmatprep.subr.mxu0 0.0
        %1360 = vmatpush1.msra.mxu0 %v1326
        %1361 = vmatprep.subr.mxu0 0.0
        %1362 = vmatpush1.msra.mxu0 %v1327
        %1363 = vmatprep.subr.mxu0 0.0
        %1364 = vmatpush1.msra.mxu0 %v1328
        %1365 = vmatprep.subr.mxu0 0.0
        %1366 = vmatpush1.msra.mxu0 %v1329
        %1367 = vmatprep.subr.mxu0 0.0
        %1368 = vmatpush1.msra.mxu0 %v1330
        %1369 = vmatprep.subr.mxu0 0.0
        %1370 = vmatpush1.msra.mxu0 %v1331
        %1371 = vmatprep.subr.mxu0 0.0
        %1372 = vmatpush1.msra.mxu0 %v1332
        %1373 = vmatprep.subr.mxu0 0.0
        %1374 = vmatpush1.msra.mxu0 %v1333
        %1375 = vmatprep.subr.mxu0 0.0
        %1376 = vmatpush1.msra.mxu0 %v1334
        %1377 = vmatprep.subr.mxu0 0.0
        %1378 = vmatpush1.msra.mxu0 0.0
        %1379 = vmatprep.subr.mxu0 0.0
        %1380 = vmatpush1.msra.mxu0 0.0
        %1381 = vmatprep.subr.mxu0 0.0
        %1382 = vmatpush1.msra.mxu0 0.0
        %1383 = vmatprep.subr.mxu0 0.0
        %1384 = vmatpush1.msra.mxu0 0.0
        %1385 = vmatprep.subr.mxu0 0.0
        %1386 = vmatpush1.msra.mxu0 0.0
        %1387 = vmatprep.subr.mxu0 0.0
        %1388 = vmatpush1.msra.mxu0 0.0
        %1389 = vmatprep.subr.mxu0 0.0
        %1390 = vmatpush1.msra.mxu0 0.0
        %1391 = vmatprep.subr.mxu0 0.0
        %1392 = vmatpush1.msra.mxu0 0.0
        %1393 = vmatprep.subr.mxu0 0.0
        %1394 = vmatpush1.msra.mxu0 0.0
        %1395 = vmatprep.subr.mxu0 0.0
        %1396 = vmatpush1.msra.mxu0 0.0
        %1397 = vmatprep.subr.mxu0 0.0
        %1398 = vmatpush1.msra.mxu0 0.0
        %1399 = vmatprep.mubr.f32.mxu0 %v1217
        %1400 = vmatmul.mubr.f32.gmra.mrb[0].mxu0 %v1186
        %v1401 = vpop.f32.mrb[0].mxu0
        %v1402 = vadd.f32 0.0, %v1401
        %v1403 = vpop.f32.mrb[0].mxu0
        %1404 = vmatprep.mubr.f32.mxu0 %v1220
        %1405 = vmatmul.mubr.f32.gmra.mrb[0].mxu0 %v1188
        %v1406 = vpop.f32.mrb[0].mxu0
        %v1407 = vadd.f32 0.0, %v1406
        %v1408 = vpop.f32.mrb[0].mxu0
        %1409 = vmatprep.mubr.f32.mxu0 %v1223
        %1410 = vmatmul.mubr.f32.gmra.mrb[0].mxu0 %v1190
        %v1411 = vpop.f32.mrb[0].mxu0
        %v1412 = vadd.f32 0.0, %v1411
        %v1413 = vpop.f32.mrb[0].mxu0
        %1414 = vmatprep.mubr.f32.mxu0 %v1226
        %1415 = vmatmul.mubr.f32.gmra.mrb[0].mxu0 %v1192
        %v1416 = vpop.f32.mrb[0].mxu0
        %v1417 = vadd.f32 0.0, %v1416
        %v1418 = vpop.f32.mrb[0].mxu0
        %1419 = vdwg.mxu0
        %v1420 = vmax.f32 %v1295, %v1402
        %v1421 = vmax.f32 %v1300, %v1407
        %v1422 = vmax.f32 %v1305, %v1412
        %v1423 = vmax.f32 %v1310, %v1417
        %v1424 = vld [vmem:[%s4] sm:$0xff]
        %v1425 = vld [vmem:[%s4 + $0x8] sm:$0x3f]
        %vm1426 = vcmask 228352
        %v1428 = vsel %vm1426, %v1424, 0
        %v1431 = vsel %vm1426, %v1425, 0
        %vm1433 = vcmask 1043456
        %v1435 = vsel %vm1433, %v1423, 0
        %1437 = vmatprep.subr.mxu0 0.0
        %1438 = vmatpush1.msra.mxu0 %v1420
        %1439 = vmatprep.subr.mxu0 0.0
        %1440 = vmatpush1.msra.mxu0 %v1421
        %1441 = vmatprep.subr.mxu0 0.0
        %1442 = vmatpush1.msra.mxu0 %v1422
        %1443 = vmatprep.subr.mxu0 0.0
        %1444 = vmatpush1.msra.mxu0 %v1435
        %1445 = vmatprep.subr.mxu0 0.0
        %1446 = vmatpush1.msra.mxu0 0.0
        %1447 = vmatprep.subr.mxu0 0.0
        %1448 = vmatpush1.msra.mxu0 0.0
        %1449 = vmatprep.subr.mxu0 0.0
        %1450 = vmatpush1.msra.mxu0 0.0
        %1451 = vmatprep.subr.mxu0 0.0
        %1452 = vmatpush1.msra.mxu0 0.0
        %1453 = vmatprep.subr.mxu0 0.0
        %1454 = vmatpush1.msra.mxu0 0.0
        %1455 = vmatprep.subr.mxu0 0.0
        %1456 = vmatpush1.msra.mxu0 0.0
        %1457 = vmatprep.subr.mxu0 0.0
        %1458 = vmatpush1.msra.mxu0 0.0
        %1459 = vmatprep.subr.mxu0 0.0
        %1460 = vmatpush1.msra.mxu0 0.0
        %1461 = vmatprep.subr.mxu0 0.0
        %1462 = vmatpush1.msra.mxu0 0.0
        %1463 = vmatprep.subr.mxu0 0.0
        %1464 = vmatpush1.msra.mxu0 0.0
        %1465 = vmatprep.subr.mxu0 0.0
        %1466 = vmatpush1.msra.mxu0 0.0
        %1467 = vmatprep.subr.mxu0 0.0
        %1468 = vmatpush1.msra.mxu0 0.0
        %1469 = vmatprep.subr.mxu0 0.0
        %1470 = vmatpush1.msra.mxu0 0.0
        %1471 = vmatprep.subr.mxu0 0.0
        %1472 = vmatpush1.msra.mxu0 0.0
        %1473 = vmatprep.subr.mxu0 0.0
        %1474 = vmatpush1.msra.mxu0 0.0
        %1475 = vmatprep.subr.mxu0 0.0
        %1476 = vmatpush1.msra.mxu0 0.0
        %1477 = vmatprep.subr.mxu0 0.0
        %1478 = vmatpush1.msra.mxu0 0.0
        %1479 = vmatprep.subr.mxu0 0.0
        %1480 = vmatpush1.msra.mxu0 0.0
        %1481 = vmatprep.subr.mxu0 0.0
        %1482 = vmatpush1.msra.mxu0 0.0
        %1483 = vmatprep.subr.mxu0 0.0
        %1484 = vmatpush1.msra.mxu0 0.0
        %1485 = vmatprep.subr.mxu0 0.0
        %1486 = vmatpush1.msra.mxu0 0.0
        %1487 = vmatprep.subr.mxu0 0.0
        %1488 = vmatpush1.msra.mxu0 0.0
        %1489 = vmatprep.subr.mxu0 0.0
        %1490 = vmatpush1.msra.mxu0 0.0
        %1491 = vmatprep.subr.mxu0 0.0
        %1492 = vmatpush1.msra.mxu0 0.0
        %1493 = vmatprep.subr.mxu0 0.0
        %1494 = vmatpush1.msra.mxu0 0.0
        %1495 = vmatprep.subr.mxu0 0.0
        %1496 = vmatpush1.msra.mxu0 0.0
        %1497 = vmatprep.subr.mxu0 0.0
        %1498 = vmatpush1.msra.mxu0 0.0
        %1499 = vmatprep.subr.mxu0 0.0
        %1500 = vmatpush1.msra.mxu0 0.0
        %1501 = vmatprep.mubr.f32.mxu0 0.0
        %1502 = vmatmul.mubr.f32.gmra.mrb[0].mxu0 %v1428
        %v1503 = vpop.f32.mrb[0].mxu0
        %v1504 = vadd.f32 0.0, %v1503
        %v1505 = vpop.f32.mrb[0].mxu0
        %1506 = vmatprep.mubr.f32.mxu0 0.0
        %1507 = vmatmul.mubr.f32.gmra.mrb[0].mxu0 %v1431
        %v1508 = vpop.f32.mrb[0].mxu0
        %v1509 = vadd.f32 0.0, %v1508
        %v1510 = vpop.f32.mrb[0].mxu0
        %1511 = vdwg.mxu0
        %s1512 = scalar_lea.vmem %s4, 16
        %v1513 = vld [vmem:[%s1512] sm:$0xff]
        %v1514 = vld [vmem:[%s1512 + $0x8] sm:$0x3f]
        %v1516 = vsel %vm1426, %v1513, 0
        %v1519 = vsel %vm1426, %v1514, 0
        %1521 = vmatprep.subr.mxu0 0.0
        %1522 = vmatpush1.msra.mxu0 %v1420
        %1523 = vmatprep.subr.mxu0 0.0
        %1524 = vmatpush1.msra.mxu0 %v1421
        %1525 = vmatprep.subr.mxu0 0.0
        %1526 = vmatpush1.msra.mxu0 %v1422
        %1527 = vmatprep.subr.mxu0 0.0
        %1528 = vmatpush1.msra.mxu0 %v1435
        %1529 = vmatprep.subr.mxu0 0.0
        %1530 = vmatpush1.msra.mxu0 0.0
        %1531 = vmatprep.subr.mxu0 0.0
        %1532 = vmatpush1.msra.mxu0 0.0
        %1533 = vmatprep.subr.mxu0 0.0
        %1534 = vmatpush1.msra.mxu0 0.0
        %1535 = vmatprep.subr.mxu0 0.0
        %1536 = vmatpush1.msra.mxu0 0.0
        %1537 = vmatprep.subr.mxu0 0.0
        %1538 = vmatpush1.msra.mxu0 0.0
        %1539 = vmatprep.subr.mxu0 0.0
        %1540 = vmatpush1.msra.mxu0 0.0
        %1541 = vmatprep.subr.mxu0 0.0
        %1542 = vmatpush1.msra.mxu0 0.0
        %1543 = vmatprep.subr.mxu0 0.0
        %1544 = vmatpush1.msra.mxu0 0.0
        %1545 = vmatprep.subr.mxu0 0.0
        %1546 = vmatpush1.msra.mxu0 0.0
        %1547 = vmatprep.subr.mxu0 0.0
        %1548 = vmatpush1.msra.mxu0 0.0
        %1549 = vmatprep.subr.mxu0 0.0
        %1550 = vmatpush1.msra.mxu0 0.0
        %1551 = vmatprep.subr.mxu0 0.0
        %1552 = vmatpush1.msra.mxu0 0.0
        %1553 = vmatprep.subr.mxu0 0.0
        %1554 = vmatpush1.msra.mxu0 0.0
        %1555 = vmatprep.subr.mxu0 0.0
        %1556 = vmatpush1.msra.mxu0 0.0
        %1557 = vmatprep.subr.mxu0 0.0
        %1558 = vmatpush1.msra.mxu0 0.0
        %1559 = vmatprep.subr.mxu0 0.0
        %1560 = vmatpush1.msra.mxu0 0.0
        %1561 = vmatprep.subr.mxu0 0.0
        %1562 = vmatpush1.msra.mxu0 0.0
        %1563 = vmatprep.subr.mxu0 0.0
        %1564 = vmatpush1.msra.mxu0 0.0
        %1565 = vmatprep.subr.mxu0 0.0
        %1566 = vmatpush1.msra.mxu0 0.0
        %1567 = vmatprep.subr.mxu0 0.0
        %1568 = vmatpush1.msra.mxu0 0.0
        %1569 = vmatprep.subr.mxu0 0.0
        %1570 = vmatpush1.msra.mxu0 0.0
        %1571 = vmatprep.subr.mxu0 0.0
        %1572 = vmatpush1.msra.mxu0 0.0
        %1573 = vmatprep.subr.mxu0 0.0
        %1574 = vmatpush1.msra.mxu0 0.0
        %1575 = vmatprep.subr.mxu0 0.0
        %1576 = vmatpush1.msra.mxu0 0.0
        %1577 = vmatprep.subr.mxu0 0.0
        %1578 = vmatpush1.msra.mxu0 0.0
        %1579 = vmatprep.subr.mxu0 0.0
        %1580 = vmatpush1.msra.mxu0 0.0
        %1581 = vmatprep.subr.mxu0 0.0
        %1582 = vmatpush1.msra.mxu0 0.0
        %1583 = vmatprep.subr.mxu0 0.0
        %1584 = vmatpush1.msra.mxu0 0.0
        %1585 = vmatprep.mubr.f32.mxu0 0.0
        %1586 = vmatmul.mubr.f32.gmra.mrb[0].mxu0 %v1516
        %v1587 = vpop.f32.mrb[0].mxu0
        %v1588 = vadd.f32 0.0, %v1587
        %v1589 = vpop.f32.mrb[0].mxu0
        %1590 = vmatprep.mubr.f32.mxu0 0.0
        %1591 = vmatmul.mubr.f32.gmra.mrb[0].mxu0 %v1519
        %v1592 = vpop.f32.mrb[0].mxu0
        %v1593 = vadd.f32 0.0, %v1592
        %v1594 = vpop.f32.mrb[0].mxu0
        %1595 = vdwg.mxu0
        %v1596 = vmax.f32 %v1504, %v1588
        %v1597 = vmax.f32 %v1509, %v1593
        %v1598 = vld [vmem:[%s5] sm:$0xff]
        %v1599 = vld [vmem:[%s5 + $0x8] sm:$0xff]
        %v1600 = vld [vmem:[%s5 + $0x10] sm:$0xff]
        %v1601 = vld [vmem:[%s5 + $0x18] sm:$0xff]
        %v1602 = vld [vmem:[%s5 + $0x20] sm:$0xff]
        %v1603 = vld [vmem:[%s5 + $0x28] sm:$0xff]
        %v1604 = vld [vmem:[%s5 + $0x30] sm:$0xff]
        %v1605 = vld [vmem:[%s5 + $0x38] sm:$0xff]
        %v1606 = vld [vmem:[%s5 + $0x40] sm:$0xff]
        %v1607 = vld [vmem:[%s5 + $0x48] sm:$0xff]
        %v1608 = vld [vmem:[%s5 + $0x50] sm:$0xff]
        %v1609 = vld [vmem:[%s5 + $0x58] sm:$0xff]
        %v1610 = vld [vmem:[%s5 + $0x60] sm:$0xff]
        %v1611 = vld [vmem:[%s5 + $0x68] sm:$0xff]
        %v1612 = vld [vmem:[%s5 + $0x70] sm:$0xff]
        %v1613 = vld [vmem:[%s5 + $0x78] sm:$0xff]
        %v1614 = vld [vmem:[%s5 + $0x80] sm:$0xff]
        %v1615 = vld [vmem:[%s5 + $0x88] sm:$0xff]
        %v1616 = vld [vmem:[%s5 + $0x90] sm:$0xff]
        %v1617 = vld [vmem:[%s5 + $0x98] sm:$0xff]
        %v1618 = vld [vmem:[%s5 + $0xa0] sm:$0xf]
        %v1619 = vld [vmem:[%s5 + $0xa8] sm:$0xf]
        %s1620 = scalar_lea.vmem %s5, 176
        %v1621 = vld [vmem:[%s1620] sm:$0xff]
        %v1622 = vld [vmem:[%s1620 + $0x8] sm:$0xff]
        %v1623 = vld [vmem:[%s1620 + $0x10] sm:$0xff]
        %v1624 = vld [vmem:[%s1620 + $0x18] sm:$0xff]
        %v1625 = vld [vmem:[%s1620 + $0x20] sm:$0xff]
        %v1626 = vld [vmem:[%s1620 + $0x28] sm:$0xff]
        %v1627 = vld [vmem:[%s1620 + $0x30] sm:$0xff]
        %v1628 = vld [vmem:[%s1620 + $0x38] sm:$0xff]
        %v1629 = vld [vmem:[%s1620 + $0x40] sm:$0xff]
        %v1630 = vld [vmem:[%s1620 + $0x48] sm:$0xff]
        %v1631 = vld [vmem:[%s1620 + $0x50] sm:$0xff]
        %v1632 = vld [vmem:[%s1620 + $0x58] sm:$0xff]
        %v1633 = vld [vmem:[%s1620 + $0x60] sm:$0xff]
        %v1634 = vld [vmem:[%s1620 + $0x68] sm:$0xff]
        %v1635 = vld [vmem:[%s1620 + $0x70] sm:$0xff]
        %v1636 = vld [vmem:[%s1620 + $0x78] sm:$0xff]
        %v1637 = vld [vmem:[%s1620 + $0x80] sm:$0xff]
        %v1638 = vld [vmem:[%s1620 + $0x88] sm:$0xff]
        %v1639 = vld [vmem:[%s1620 + $0x90] sm:$0xff]
        %v1640 = vld [vmem:[%s1620 + $0x98] sm:$0xff]
        %v1641 = vld [vmem:[%s1620 + $0xa0] sm:$0xf]
        %v1642 = vld [vmem:[%s1620 + $0xa8] sm:$0xf]
        %vm1645 = vcmask 1046528
        %v1646 = vrot.slane %v1596, 1
        %v1647 = vrot.slane %v1597, 1
        %v1648 = vsel %vm1645, %v1646, %v1647
        %vm1649 = vcmask 687104
        %v1650 = vsel %vm1649, %v1648, 0
        %v1652 = vsel %vm1649, %v1647, 0
        %v1655 = vsel %vm1433, %v1641, 0
        %v1658 = vsel %vm1433, %v1642, 0
        %1660 = vmatprep.subr.mxu0 %v1622
        %1661 = vmatpush1.msra.mxu0 %v1621
        %1662 = vmatprep.subr.mxu0 %v1624
        %1663 = vmatpush1.msra.mxu0 %v1623
        %1664 = vmatprep.subr.mxu0 %v1626
        %1665 = vmatpush1.msra.mxu0 %v1625
        %1666 = vmatprep.subr.mxu0 %v1628
        %1667 = vmatpush1.msra.mxu0 %v1627
        %1668 = vmatprep.subr.mxu0 %v1630
        %1669 = vmatpush1.msra.mxu0 %v1629
        %1670 = vmatprep.subr.mxu0 %v1632
        %1671 = vmatpush1.msra.mxu0 %v1631
        %1672 = vmatprep.subr.mxu0 %v1634
        %1673 = vmatpush1.msra.mxu0 %v1633
        %1674 = vmatprep.subr.mxu0 %v1636
        %1675 = vmatpush1.msra.mxu0 %v1635
        %1676 = vmatprep.subr.mxu0 %v1638
        %1677 = vmatpush1.msra.mxu0 %v1637
        %1678 = vmatprep.subr.mxu0 %v1640
        %1679 = vmatpush1.msra.mxu0 %v1639
        %1680 = vmatprep.subr.mxu0 %v1658
        %1681 = vmatpush1.msra.mxu0 %v1655
        %1682 = vmatprep.subr.mxu0 0.0
        %1683 = vmatpush1.msra.mxu0 0.0
        %1684 = vmatprep.subr.mxu0 0.0
        %1685 = vmatpush1.msra.mxu0 0.0
        %1686 = vmatprep.subr.mxu0 0.0
        %1687 = vmatpush1.msra.mxu0 0.0
        %1688 = vmatprep.subr.mxu0 0.0
        %1689 = vmatpush1.msra.mxu0 0.0
        %1690 = vmatprep.subr.mxu0 0.0
        %1691 = vmatpush1.msra.mxu0 0.0
        %1692 = vmatprep.subr.mxu0 0.0
        %1693 = vmatpush1.msra.mxu0 0.0
        %1694 = vmatprep.subr.mxu0 0.0
        %1695 = vmatpush1.msra.mxu0 0.0
        %1696 = vmatprep.subr.mxu0 0.0
        %1697 = vmatpush1.msra.mxu0 0.0
        %1698 = vmatprep.subr.mxu0 0.0
        %1699 = vmatpush1.msra.mxu0 0.0
        %1700 = vmatprep.subr.mxu0 0.0
        %1701 = vmatpush1.msra.mxu0 0.0
        %1702 = vmatprep.subr.mxu0 0.0
        %1703 = vmatpush1.msra.mxu0 0.0
        %1704 = vmatprep.subr.mxu0 0.0
        %1705 = vmatpush1.msra.mxu0 0.0
        %1706 = vmatprep.subr.mxu0 0.0
        %1707 = vmatpush1.msra.mxu0 0.0
        %1708 = vmatprep.subr.mxu0 0.0
        %1709 = vmatpush1.msra.mxu0 0.0
        %1710 = vmatprep.subr.mxu0 0.0
        %1711 = vmatpush1.msra.mxu0 0.0
        %1712 = vmatprep.subr.mxu0 0.0
        %1713 = vmatpush1.msra.mxu0 0.0
        %1714 = vmatprep.subr.mxu0 0.0
        %1715 = vmatpush1.msra.mxu0 0.0
        %1716 = vmatprep.subr.mxu0 0.0
        %1717 = vmatpush1.msra.mxu0 0.0
        %1718 = vmatprep.subr.mxu0 0.0
        %1719 = vmatpush1.msra.mxu0 0.0
        %1720 = vmatprep.subr.mxu0 0.0
        %1721 = vmatpush1.msra.mxu0 0.0
        %1722 = vmatprep.subr.mxu0 0.0
        %1723 = vmatpush1.msra.mxu0 0.0
        %1724 = vmatprep.mubr.f32.mxu0 0.0
        %1725 = vmatmul.mubr.f32.gmra.mrb[0].mxu0 %v1650
        %v1726 = vpop.f32.mrb[0].mxu0
        %v1727 = vadd.f32 0.0, %v1726
        %v1728 = vpop.f32.mrb[0].mxu0
        %v1729 = vadd.f32 0.0, %v1728
        %1730 = vmatprep.mubr.f32.mxu0 0.0
        %1731 = vmatmul.mubr.f32.gmra.mrb[0].mxu0 %v1652
        %v1732 = vpop.f32.mrb[0].mxu0
        %v1733 = vadd.f32 0.0, %v1732
        %v1734 = vpop.f32.mrb[0].mxu0
        %v1735 = vadd.f32 0.0, %v1734
        %1736 = vdwg.mxu0
        %v1737 = vsel %vm1649, %v1596, 0
        %v1739 = vsel %vm1649, %v1597, 0
        %v1742 = vsel %vm1433, %v1618, 0
        %v1745 = vsel %vm1433, %v1619, 0
        %1747 = vmatprep.subr.mxu0 %v1599
        %1748 = vmatpush1.msra.mxu0 %v1598
        %1749 = vmatprep.subr.mxu0 %v1601
        %1750 = vmatpush1.msra.mxu0 %v1600
        %1751 = vmatprep.subr.mxu0 %v1603
        %1752 = vmatpush1.msra.mxu0 %v1602
        %1753 = vmatprep.subr.mxu0 %v1605
        %1754 = vmatpush1.msra.mxu0 %v1604
        %1755 = vmatprep.subr.mxu0 %v1607
        %1756 = vmatpush1.msra.mxu0 %v1606
        %1757 = vmatprep.subr.mxu0 %v1609
        %1758 = vmatpush1.msra.mxu0 %v1608
        %1759 = vmatprep.subr.mxu0 %v1611
        %1760 = vmatpush1.msra.mxu0 %v1610
        %1761 = vmatprep.subr.mxu0 %v1613
        %1762 = vmatpush1.msra.mxu0 %v1612
        %1763 = vmatprep.subr.mxu0 %v1615
        %1764 = vmatpush1.msra.mxu0 %v1614
        %1765 = vmatprep.subr.mxu0 %v1617
        %1766 = vmatpush1.msra.mxu0 %v1616
        %1767 = vmatprep.subr.mxu0 %v1745
        %1768 = vmatpush1.msra.mxu0 %v1742
        %1769 = vmatprep.subr.mxu0 0.0
        %1770 = vmatpush1.msra.mxu0 0.0
        %1771 = vmatprep.subr.mxu0 0.0
        %1772 = vmatpush1.msra.mxu0 0.0
        %1773 = vmatprep.subr.mxu0 0.0
        %1774 = vmatpush1.msra.mxu0 0.0
        %1775 = vmatprep.subr.mxu0 0.0
        %1776 = vmatpush1.msra.mxu0 0.0
        %1777 = vmatprep.subr.mxu0 0.0
        %1778 = vmatpush1.msra.mxu0 0.0
        %1779 = vmatprep.subr.mxu0 0.0
        %1780 = vmatpush1.msra.mxu0 0.0
        %1781 = vmatprep.subr.mxu0 0.0
        %1782 = vmatpush1.msra.mxu0 0.0
        %1783 = vmatprep.subr.mxu0 0.0
        %1784 = vmatpush1.msra.mxu0 0.0
        %1785 = vmatprep.subr.mxu0 0.0
        %1786 = vmatpush1.msra.mxu0 0.0
        %1787 = vmatprep.subr.mxu0 0.0
        %1788 = vmatpush1.msra.mxu0 0.0
        %1789 = vmatprep.subr.mxu0 0.0
        %1790 = vmatpush1.msra.mxu0 0.0
        %1791 = vmatprep.subr.mxu0 0.0
        %1792 = vmatpush1.msra.mxu0 0.0
        %1793 = vmatprep.subr.mxu0 0.0
        %1794 = vmatpush1.msra.mxu0 0.0
        %1795 = vmatprep.subr.mxu0 0.0
        %1796 = vmatpush1.msra.mxu0 0.0
        %1797 = vmatprep.subr.mxu0 0.0
        %1798 = vmatpush1.msra.mxu0 0.0
        %1799 = vmatprep.subr.mxu0 0.0
        %1800 = vmatpush1.msra.mxu0 0.0
        %1801 = vmatprep.subr.mxu0 0.0
        %1802 = vmatpush1.msra.mxu0 0.0
        %1803 = vmatprep.subr.mxu0 0.0
        %1804 = vmatpush1.msra.mxu0 0.0
        %1805 = vmatprep.subr.mxu0 0.0
        %1806 = vmatpush1.msra.mxu0 0.0
        %1807 = vmatprep.subr.mxu0 0.0
        %1808 = vmatpush1.msra.mxu0 0.0
        %1809 = vmatprep.subr.mxu0 0.0
        %1810 = vmatpush1.msra.mxu0 0.0
        %1811 = vmatprep.mubr.f32.mxu0 0.0
        %1812 = vmatmul.mubr.f32.gmra.mrb[0].mxu0 %v1737
        %v1813 = vpop.f32.mrb[0].mxu0
        %v1814 = vadd.f32 %v1727, %v1813
        %v1815 = vpop.f32.mrb[0].mxu0
        %v1816 = vadd.f32 %v1729, %v1815
        %1817 = vmatprep.mubr.f32.mxu0 0.0
        %1818 = vmatmul.mubr.f32.gmra.mrb[0].mxu0 %v1739
        %v1819 = vpop.f32.mrb[0].mxu0
        %v1820 = vadd.f32 %v1733, %v1819
        %v1821 = vpop.f32.mrb[0].mxu0
        %v1822 = vadd.f32 %v1735, %v1821
        %1823 = vdwg.mxu0
        %s1824 = scalar_lea.vmem %s5, 352
        %v1825 = vld [vmem:[%s1824] sm:$0xff]
        %v1826 = vld [vmem:[%s1824 + $0x8] sm:$0xff]
        %v1827 = vld [vmem:[%s1824 + $0x10] sm:$0xff]
        %v1828 = vld [vmem:[%s1824 + $0x18] sm:$0xff]
        %v1829 = vld [vmem:[%s1824 + $0x20] sm:$0xff]
        %v1830 = vld [vmem:[%s1824 + $0x28] sm:$0xff]
        %v1831 = vld [vmem:[%s1824 + $0x30] sm:$0xff]
        %v1832 = vld [vmem:[%s1824 + $0x38] sm:$0xff]
        %v1833 = vld [vmem:[%s1824 + $0x40] sm:$0xff]
        %v1834 = vld [vmem:[%s1824 + $0x48] sm:$0xff]
        %v1835 = vld [vmem:[%s1824 + $0x50] sm:$0xff]
        %v1836 = vld [vmem:[%s1824 + $0x58] sm:$0xff]
        %v1837 = vld [vmem:[%s1824 + $0x60] sm:$0xff]
        %v1838 = vld [vmem:[%s1824 + $0x68] sm:$0xff]
        %v1839 = vld [vmem:[%s1824 + $0x70] sm:$0xff]
        %v1840 = vld [vmem:[%s1824 + $0x78] sm:$0xff]
        %v1841 = vld [vmem:[%s1824 + $0x80] sm:$0xff]
        %v1842 = vld [vmem:[%s1824 + $0x88] sm:$0xff]
        %v1843 = vld [vmem:[%s1824 + $0x90] sm:$0xff]
        %v1844 = vld [vmem:[%s1824 + $0x98] sm:$0xff]
        %v1845 = vld [vmem:[%s1824 + $0xa0] sm:$0xf]
        %v1846 = vld [vmem:[%s1824 + $0xa8] sm:$0xf]
        %vm1847 = vcmask 1045504
        %v1848 = vrot.slane %v1596, 2
        %v1849 = vrot.slane %v1597, 2
        %v1850 = vsel %vm1847, %v1848, %v1849
        %v1851 = vsel %vm1649, %v1850, 0
        %v1853 = vsel %vm1649, %v1849, 0
        %v1856 = vsel %vm1433, %v1845, 0
        %v1859 = vsel %vm1433, %v1846, 0
        %1861 = vmatprep.subr.mxu0 %v1826
        %1862 = vmatpush1.msra.mxu0 %v1825
        %1863 = vmatprep.subr.mxu0 %v1828
        %1864 = vmatpush1.msra.mxu0 %v1827
        %1865 = vmatprep.subr.mxu0 %v1830
        %1866 = vmatpush1.msra.mxu0 %v1829
        %1867 = vmatprep.subr.mxu0 %v1832
        %1868 = vmatpush1.msra.mxu0 %v1831
        %1869 = vmatprep.subr.mxu0 %v1834
        %1870 = vmatpush1.msra.mxu0 %v1833
        %1871 = vmatprep.subr.mxu0 %v1836
        %1872 = vmatpush1.msra.mxu0 %v1835
        %1873 = vmatprep.subr.mxu0 %v1838
        %1874 = vmatpush1.msra.mxu0 %v1837
        %1875 = vmatprep.subr.mxu0 %v1840
        %1876 = vmatpush1.msra.mxu0 %v1839
        %1877 = vmatprep.subr.mxu0 %v1842
        %1878 = vmatpush1.msra.mxu0 %v1841
        %1879 = vmatprep.subr.mxu0 %v1844
        %1880 = vmatpush1.msra.mxu0 %v1843
        %1881 = vmatprep.subr.mxu0 %v1859
        %1882 = vmatpush1.msra.mxu0 %v1856
        %1883 = vmatprep.subr.mxu0 0.0
        %1884 = vmatpush1.msra.mxu0 0.0
        %1885 = vmatprep.subr.mxu0 0.0
        %1886 = vmatpush1.msra.mxu0 0.0
        %1887 = vmatprep.subr.mxu0 0.0
        %1888 = vmatpush1.msra.mxu0 0.0
        %1889 = vmatprep.subr.mxu0 0.0
        %1890 = vmatpush1.msra.mxu0 0.0
        %1891 = vmatprep.subr.mxu0 0.0
        %1892 = vmatpush1.msra.mxu0 0.0
        %1893 = vmatprep.subr.mxu0 0.0
        %1894 = vmatpush1.msra.mxu0 0.0
        %1895 = vmatprep.subr.mxu0 0.0
        %1896 = vmatpush1.msra.mxu0 0.0
        %1897 = vmatprep.subr.mxu0 0.0
        %1898 = vmatpush1.msra.mxu0 0.0
        %1899 = vmatprep.subr.mxu0 0.0
        %1900 = vmatpush1.msra.mxu0 0.0
        %1901 = vmatprep.subr.mxu0 0.0
        %1902 = vmatpush1.msra.mxu0 0.0
        %1903 = vmatprep.subr.mxu0 0.0
        %1904 = vmatpush1.msra.mxu0 0.0
        %1905 = vmatprep.subr.mxu0 0.0
        %1906 = vmatpush1.msra.mxu0 0.0
        %1907 = vmatprep.subr.mxu0 0.0
        %1908 = vmatpush1.msra.mxu0 0.0
        %1909 = vmatprep.subr.mxu0 0.0
        %1910 = vmatpush1.msra.mxu0 0.0
        %1911 = vmatprep.subr.mxu0 0.0
        %1912 = vmatpush1.msra.mxu0 0.0
        %1913 = vmatprep.subr.mxu0 0.0
        %1914 = vmatpush1.msra.mxu0 0.0
        %1915 = vmatprep.subr.mxu0 0.0
        %1916 = vmatpush1.msra.mxu0 0.0
        %1917 = vmatprep.subr.mxu0 0.0
        %1918 = vmatpush1.msra.mxu0 0.0
        %1919 = vmatprep.subr.mxu0 0.0
        %1920 = vmatpush1.msra.mxu0 0.0
        %1921 = vmatprep.subr.mxu0 0.0
        %1922 = vmatpush1.msra.mxu0 0.0
        %1923 = vmatprep.subr.mxu0 0.0
        %1924 = vmatpush1.msra.mxu0 0.0
        %1925 = vmatprep.mubr.f32.mxu0 0.0
        %1926 = vmatmul.mubr.f32.gmra.mrb[0].mxu0 %v1851
        %v1927 = vpop.f32.mrb[0].mxu0
        %v1928 = vadd.f32 0.0, %v1927
        %v1929 = vpop.f32.mrb[0].mxu0
        %v1930 = vadd.f32 0.0, %v1929
        %1931 = vmatprep.mubr.f32.mxu0 0.0
        %1932 = vmatmul.mubr.f32.gmra.mrb[0].mxu0 %v1853
        %v1933 = vpop.f32.mrb[0].mxu0
        %v1934 = vadd.f32 0.0, %v1933
        %v1935 = vpop.f32.mrb[0].mxu0
        %v1936 = vadd.f32 0.0, %v1935
        %1937 = vdwg.mxu0
        %v1938 = vadd.f32 %v1814, %v1928
        %v1939 = vadd.f32 %v1816, %v1930
        %v1940 = vadd.f32 %v1820, %v1934
        %v1941 = vadd.f32 %v1822, %v1936
        %s1942 = scalar_lea.vmem %s5, 528
        %v1943 = vld [vmem:[%s1942] sm:$0xff]
        %v1944 = vld [vmem:[%s1942 + $0x8] sm:$0xff]
        %v1945 = vld [vmem:[%s1942 + $0x10] sm:$0xff]
        %v1946 = vld [vmem:[%s1942 + $0x18] sm:$0xff]
        %v1947 = vld [vmem:[%s1942 + $0x20] sm:$0xff]
        %v1948 = vld [vmem:[%s1942 + $0x28] sm:$0xff]
        %v1949 = vld [vmem:[%s1942 + $0x30] sm:$0xff]
        %v1950 = vld [vmem:[%s1942 + $0x38] sm:$0xff]
        %v1951 = vld [vmem:[%s1942 + $0x40] sm:$0xff]
        %v1952 = vld [vmem:[%s1942 + $0x48] sm:$0xff]
        %v1953 = vld [vmem:[%s1942 + $0x50] sm:$0xff]
        %v1954 = vld [vmem:[%s1942 + $0x58] sm:$0xff]
        %v1955 = vld [vmem:[%s1942 + $0x60] sm:$0xff]
        %v1956 = vld [vmem:[%s1942 + $0x68] sm:$0xff]
        %v1957 = vld [vmem:[%s1942 + $0x70] sm:$0xff]
        %v1958 = vld [vmem:[%s1942 + $0x78] sm:$0xff]
        %v1959 = vld [vmem:[%s1942 + $0x80] sm:$0xff]
        %v1960 = vld [vmem:[%s1942 + $0x88] sm:$0xff]
        %v1961 = vld [vmem:[%s1942 + $0x90] sm:$0xff]
        %v1962 = vld [vmem:[%s1942 + $0x98] sm:$0xff]
        %v1963 = vld [vmem:[%s1942 + $0xa0] sm:$0xf]
        %v1964 = vld [vmem:[%s1942 + $0xa8] sm:$0xf]
        %vm1965 = vcmask 1044480
        %v1966 = vrot.slane %v1596, 3
        %v1967 = vrot.slane %v1597, 3
        %v1968 = vsel %vm1965, %v1966, %v1967
        %v1969 = vsel %vm1649, %v1968, 0
        %v1971 = vsel %vm1649, %v1967, 0
        %v1974 = vsel %vm1433, %v1963, 0
        %v1977 = vsel %vm1433, %v1964, 0
        %1979 = vmatprep.subr.mxu0 %v1944
        %1980 = vmatpush1.msra.mxu0 %v1943
        %1981 = vmatprep.subr.mxu0 %v1946
        %1982 = vmatpush1.msra.mxu0 %v1945
        %1983 = vmatprep.subr.mxu0 %v1948
        %1984 = vmatpush1.msra.mxu0 %v1947
        %1985 = vmatprep.subr.mxu0 %v1950
        %1986 = vmatpush1.msra.mxu0 %v1949
        %1987 = vmatprep.subr.mxu0 %v1952
        %1988 = vmatpush1.msra.mxu0 %v1951
        %1989 = vmatprep.subr.mxu0 %v1954
        %1990 = vmatpush1.msra.mxu0 %v1953
        %1991 = vmatprep.subr.mxu0 %v1956
        %1992 = vmatpush1.msra.mxu0 %v1955
        %1993 = vmatprep.subr.mxu0 %v1958
        %1994 = vmatpush1.msra.mxu0 %v1957
        %1995 = vmatprep.subr.mxu0 %v1960
        %1996 = vmatpush1.msra.mxu0 %v1959
        %1997 = vmatprep.subr.mxu0 %v1962
        %1998 = vmatpush1.msra.mxu0 %v1961
        %1999 = vmatprep.subr.mxu0 %v1977
        %2000 = vmatpush1.msra.mxu0 %v1974
        %2001 = vmatprep.subr.mxu0 0.0
        %2002 = vmatpush1.msra.mxu0 0.0
        %2003 = vmatprep.subr.mxu0 0.0
        %2004 = vmatpush1.msra.mxu0 0.0
        %2005 = vmatprep.subr.mxu0 0.0
        %2006 = vmatpush1.msra.mxu0 0.0
        %2007 = vmatprep.subr.mxu0 0.0
        %2008 = vmatpush1.msra.mxu0 0.0
        %2009 = vmatprep.subr.mxu0 0.0
        %2010 = vmatpush1.msra.mxu0 0.0
        %2011 = vmatprep.subr.mxu0 0.0
        %2012 = vmatpush1.msra.mxu0 0.0
        %2013 = vmatprep.subr.mxu0 0.0
        %2014 = vmatpush1.msra.mxu0 0.0
        %2015 = vmatprep.subr.mxu0 0.0
        %2016 = vmatpush1.msra.mxu0 0.0
        %2017 = vmatprep.subr.mxu0 0.0
        %2018 = vmatpush1.msra.mxu0 0.0
        %2019 = vmatprep.subr.mxu0 0.0
        %2020 = vmatpush1.msra.mxu0 0.0
        %2021 = vmatprep.subr.mxu0 0.0
        %2022 = vmatpush1.msra.mxu0 0.0
        %2023 = vmatprep.subr.mxu0 0.0
        %2024 = vmatpush1.msra.mxu0 0.0
        %2025 = vmatprep.subr.mxu0 0.0
        %2026 = vmatpush1.msra.mxu0 0.0
        %2027 = vmatprep.subr.mxu0 0.0
        %2028 = vmatpush1.msra.mxu0 0.0
        %2029 = vmatprep.subr.mxu0 0.0
        %2030 = vmatpush1.msra.mxu0 0.0
        %2031 = vmatprep.subr.mxu0 0.0
        %2032 = vmatpush1.msra.mxu0 0.0
        %2033 = vmatprep.subr.mxu0 0.0
        %2034 = vmatpush1.msra.mxu0 0.0
        %2035 = vmatprep.subr.mxu0 0.0
        %2036 = vmatpush1.msra.mxu0 0.0
        %2037 = vmatprep.subr.mxu0 0.0
        %2038 = vmatpush1.msra.mxu0 0.0
        %2039 = vmatprep.subr.mxu0 0.0
        %2040 = vmatpush1.msra.mxu0 0.0
        %2041 = vmatprep.subr.mxu0 0.0
        %2042 = vmatpush1.msra.mxu0 0.0
        %2043 = vmatprep.mubr.f32.mxu0 0.0
        %2044 = vmatmul.mubr.f32.gmra.mrb[0].mxu0 %v1969
        %v2045 = vpop.f32.mrb[0].mxu0
        %v2046 = vadd.f32 0.0, %v2045
        %v2047 = vpop.f32.mrb[0].mxu0
        %v2048 = vadd.f32 0.0, %v2047
        %2049 = vmatprep.mubr.f32.mxu0 0.0
        %2050 = vmatmul.mubr.f32.gmra.mrb[0].mxu0 %v1971
        %v2051 = vpop.f32.mrb[0].mxu0
        %v2052 = vadd.f32 0.0, %v2051
        %v2053 = vpop.f32.mrb[0].mxu0
        %v2054 = vadd.f32 0.0, %v2053
        %2055 = vdwg.mxu0
        %v2056 = vadd.f32 %v1938, %v2046
        %v2057 = vadd.f32 %v1939, %v2048
        %v2058 = vadd.f32 %v1940, %v2052
        %v2059 = vadd.f32 %v1941, %v2054
        %s2060 = scalar_lea.vmem %s5, 704
        %v2061 = vld [vmem:[%s2060] sm:$0xff]
        %v2062 = vld [vmem:[%s2060 + $0x8] sm:$0xff]
        %v2063 = vld [vmem:[%s2060 + $0x10] sm:$0xff]
        %v2064 = vld [vmem:[%s2060 + $0x18] sm:$0xff]
        %v2065 = vld [vmem:[%s2060 + $0x20] sm:$0xff]
        %v2066 = vld [vmem:[%s2060 + $0x28] sm:$0xff]
        %v2067 = vld [vmem:[%s2060 + $0x30] sm:$0xff]
        %v2068 = vld [vmem:[%s2060 + $0x38] sm:$0xff]
        %v2069 = vld [vmem:[%s2060 + $0x40] sm:$0xff]
        %v2070 = vld [vmem:[%s2060 + $0x48] sm:$0xff]
        %v2071 = vld [vmem:[%s2060 + $0x50] sm:$0xff]
        %v2072 = vld [vmem:[%s2060 + $0x58] sm:$0xff]
        %v2073 = vld [vmem:[%s2060 + $0x60] sm:$0xff]
        %v2074 = vld [vmem:[%s2060 + $0x68] sm:$0xff]
        %v2075 = vld [vmem:[%s2060 + $0x70] sm:$0xff]
        %v2076 = vld [vmem:[%s2060 + $0x78] sm:$0xff]
        %v2077 = vld [vmem:[%s2060 + $0x80] sm:$0xff]
        %v2078 = vld [vmem:[%s2060 + $0x88] sm:$0xff]
        %v2079 = vld [vmem:[%s2060 + $0x90] sm:$0xff]
        %v2080 = vld [vmem:[%s2060 + $0x98] sm:$0xff]
        %v2081 = vld [vmem:[%s2060 + $0xa0] sm:$0xf]
        %v2082 = vld [vmem:[%s2060 + $0xa8] sm:$0xf]
        %v2083 = vrot.slane %v1596, 4
        %v2084 = vrot.slane %v1597, 4
        %v2085 = vsel %vm1433, %v2083, %v2084
        %v2086 = vsel %vm1649, %v2085, 0
        %v2088 = vsel %vm1649, %v2084, 0
        %v2091 = vsel %vm1433, %v2081, 0
        %v2094 = vsel %vm1433, %v2082, 0
        %2096 = vmatprep.subr.mxu0 %v2062
        %2097 = vmatpush1.msra.mxu0 %v2061
        %2098 = vmatprep.subr.mxu0 %v2064
        %2099 = vmatpush1.msra.mxu0 %v2063
        %2100 = vmatprep.subr.mxu0 %v2066
        %2101 = vmatpush1.msra.mxu0 %v2065
        %2102 = vmatprep.subr.mxu0 %v2068
        %2103 = vmatpush1.msra.mxu0 %v2067
        %2104 = vmatprep.subr.mxu0 %v2070
        %2105 = vmatpush1.msra.mxu0 %v2069
        %2106 = vmatprep.subr.mxu0 %v2072
        %2107 = vmatpush1.msra.mxu0 %v2071
        %2108 = vmatprep.subr.mxu0 %v2074
        %2109 = vmatpush1.msra.mxu0 %v2073
        %2110 = vmatprep.subr.mxu0 %v2076
        %2111 = vmatpush1.msra.mxu0 %v2075
        %2112 = vmatprep.subr.mxu0 %v2078
        %2113 = vmatpush1.msra.mxu0 %v2077
        %2114 = vmatprep.subr.mxu0 %v2080
        %2115 = vmatpush1.msra.mxu0 %v2079
        %2116 = vmatprep.subr.mxu0 %v2094
        %2117 = vmatpush1.msra.mxu0 %v2091
        %2118 = vmatprep.subr.mxu0 0.0
        %2119 = vmatpush1.msra.mxu0 0.0
        %2120 = vmatprep.subr.mxu0 0.0
        %2121 = vmatpush1.msra.mxu0 0.0
        %2122 = vmatprep.subr.mxu0 0.0
        %2123 = vmatpush1.msra.mxu0 0.0
        %2124 = vmatprep.subr.mxu0 0.0
        %2125 = vmatpush1.msra.mxu0 0.0
        %2126 = vmatprep.subr.mxu0 0.0
        %2127 = vmatpush1.msra.mxu0 0.0
        %2128 = vmatprep.subr.mxu0 0.0
        %2129 = vmatpush1.msra.mxu0 0.0
        %2130 = vmatprep.subr.mxu0 0.0
        %2131 = vmatpush1.msra.mxu0 0.0
        %2132 = vmatprep.subr.mxu0 0.0
        %2133 = vmatpush1.msra.mxu0 0.0
        %2134 = vmatprep.subr.mxu0 0.0
        %2135 = vmatpush1.msra.mxu0 0.0
        %2136 = vmatprep.subr.mxu0 0.0
        %2137 = vmatpush1.msra.mxu0 0.0
        %2138 = vmatprep.subr.mxu0 0.0
        %2139 = vmatpush1.msra.mxu0 0.0
        %2140 = vmatprep.subr.mxu0 0.0
        %2141 = vmatpush1.msra.mxu0 0.0
        %2142 = vmatprep.subr.mxu0 0.0
        %2143 = vmatpush1.msra.mxu0 0.0
        %2144 = vmatprep.subr.mxu0 0.0
        %2145 = vmatpush1.msra.mxu0 0.0
        %2146 = vmatprep.subr.mxu0 0.0
        %2147 = vmatpush1.msra.mxu0 0.0
        %2148 = vmatprep.subr.mxu0 0.0
        %2149 = vmatpush1.msra.mxu0 0.0
        %2150 = vmatprep.subr.mxu0 0.0
        %2151 = vmatpush1.msra.mxu0 0.0
        %2152 = vmatprep.subr.mxu0 0.0
        %2153 = vmatpush1.msra.mxu0 0.0
        %2154 = vmatprep.subr.mxu0 0.0
        %2155 = vmatpush1.msra.mxu0 0.0
        %2156 = vmatprep.subr.mxu0 0.0
        %2157 = vmatpush1.msra.mxu0 0.0
        %2158 = vmatprep.subr.mxu0 0.0
        %2159 = vmatpush1.msra.mxu0 0.0
        %2160 = vmatprep.mubr.f32.mxu0 0.0
        %2161 = vmatmul.mubr.f32.gmra.mrb[0].mxu0 %v2086
        %v2162 = vpop.f32.mrb[0].mxu0
        %v2163 = vadd.f32 0.0, %v2162
        %v2164 = vpop.f32.mrb[0].mxu0
        %v2165 = vadd.f32 0.0, %v2164
        %2166 = vmatprep.mubr.f32.mxu0 0.0
        %2167 = vmatmul.mubr.f32.gmra.mrb[0].mxu0 %v2088
        %v2168 = vpop.f32.mrb[0].mxu0
        %v2169 = vadd.f32 0.0, %v2168
        %v2170 = vpop.f32.mrb[0].mxu0
        %v2171 = vadd.f32 0.0, %v2170
        %2172 = vdwg.mxu0
        %v2173 = vadd.f32 %v2056, %v2163
        %v2174 = vadd.f32 %v2057, %v2165
        %v2175 = vadd.f32 %v2058, %v2169
        %v2176 = vadd.f32 %v2059, %v2171
        %v2177 = vld [vmem:[%s6] sm:$0x3]
        %v2179 = vlaneseq
        %v2180 = vshrl.u32 %v2179, 7
        %v2181 = vsub.s32 0, %v2180
        %v2182 = vrot.slane %v2177, %v2181
        %v2183 = vlaneseq
        %v2184 = vshrl.u32 %v2183, 7
        %v2185 = vsub.s32 1, %v2184
        %v2186 = vrot.slane %v2177, %v2185
        %v2189 = vadd.f32 %v2173, %v2182
        %v2190 = vadd.f32 %v2174, %v2186
        %v2191 = vadd.f32 %v2175, %v2182
        %v2192 = vadd.f32 %v2176, %v2186
        %v2193 = vmax.f32 %v2189, 0.0
        %v2194 = vmax.f32 %v2190, 0.0
        %v2195 = vmax.f32 %v2191, 0.0
        %v2196 = vmax.f32 %v2192, 0.0
        %v2197 = vld [vmem:[%s7] sm:$0xff]
        %v2198 = vld [vmem:[%s7 + $0x8] sm:$0xff]
        %v2199 = vld [vmem:[%s7 + $0x10] sm:$0xff]
        %v2200 = vld [vmem:[%s7 + $0x18] sm:$0xff]
        %v2201 = vld [vmem:[%s7 + $0x20] sm:$0xff]
        %v2202 = vld [vmem:[%s7 + $0x28] sm:$0xff]
        %v2203 = vld [vmem:[%s7 + $0x30] sm:$0xff]
        %v2204 = vld [vmem:[%s7 + $0x38] sm:$0xff]
        %v2205 = vld [vmem:[%s7 + $0x40] sm:$0xff]
        %v2206 = vld [vmem:[%s7 + $0x48] sm:$0xff]
        %v2207 = vld [vmem:[%s7 + $0x50] sm:$0xff]
        %v2208 = vld [vmem:[%s7 + $0x58] sm:$0xff]
        %v2209 = vld [vmem:[%s7 + $0x60] sm:$0xff]
        %v2210 = vld [vmem:[%s7 + $0x68] sm:$0xff]
        %v2211 = vld [vmem:[%s7 + $0x70] sm:$0xff]
        %v2212 = vld [vmem:[%s7 + $0x78] sm:$0xff]
        %v2213 = vld [vmem:[%s7 + $0x80] sm:$0xff]
        %v2214 = vld [vmem:[%s7 + $0x88] sm:$0xff]
        %v2215 = vld [vmem:[%s7 + $0x90] sm:$0xff]
        %v2216 = vld [vmem:[%s7 + $0x98] sm:$0xff]
        %vm2217 = vcmask 261120
        %v2219 = vsel %vm2217, %v2194, 0
        %v2222 = vsel %vm2217, %v2196, 0
        %2224 = vmatprep.subr.mxu0 0.0
        %2225 = vmatpush1.msra.mxu0 %v2197
        %2226 = vmatprep.subr.mxu0 0.0
        %2227 = vmatpush1.msra.mxu0 %v2198
        %2228 = vmatprep.subr.mxu0 0.0
        %2229 = vmatpush1.msra.mxu0 %v2199
        %2230 = vmatprep.subr.mxu0 0.0
        %2231 = vmatpush1.msra.mxu0 %v2200
        %2232 = vmatprep.subr.mxu0 0.0
        %2233 = vmatpush1.msra.mxu0 %v2201
        %2234 = vmatprep.subr.mxu0 0.0
        %2235 = vmatpush1.msra.mxu0 %v2202
        %2236 = vmatprep.subr.mxu0 0.0
        %2237 = vmatpush1.msra.mxu0 %v2203
        %2238 = vmatprep.subr.mxu0 0.0
        %2239 = vmatpush1.msra.mxu0 %v2204
        %2240 = vmatprep.subr.mxu0 0.0
        %2241 = vmatpush1.msra.mxu0 %v2205
        %2242 = vmatprep.subr.mxu0 0.0
        %2243 = vmatpush1.msra.mxu0 %v2206
        %2244 = vmatprep.subr.mxu0 0.0
        %2245 = vmatpush1.msra.mxu0 %v2207
        %2246 = vmatprep.subr.mxu0 0.0
        %2247 = vmatpush1.msra.mxu0 %v2208
        %2248 = vmatprep.subr.mxu0 0.0
        %2249 = vmatpush1.msra.mxu0 %v2209
        %2250 = vmatprep.subr.mxu0 0.0
        %2251 = vmatpush1.msra.mxu0 %v2210
        %2252 = vmatprep.subr.mxu0 0.0
        %2253 = vmatpush1.msra.mxu0 %v2211
        %2254 = vmatprep.subr.mxu0 0.0
        %2255 = vmatpush1.msra.mxu0 %v2212
        %2256 = vmatprep.subr.mxu0 0.0
        %2257 = vmatpush1.msra.mxu0 %v2213
        %2258 = vmatprep.subr.mxu0 0.0
        %2259 = vmatpush1.msra.mxu0 %v2214
        %2260 = vmatprep.subr.mxu0 0.0
        %2261 = vmatpush1.msra.mxu0 %v2215
        %2262 = vmatprep.subr.mxu0 0.0
        %2263 = vmatpush1.msra.mxu0 %v2216
        %2264 = vmatprep.subr.mxu0 0.0
        %2265 = vmatpush1.msra.mxu0 0.0
        %2266 = vmatprep.subr.mxu0 0.0
        %2267 = vmatpush1.msra.mxu0 0.0
        %2268 = vmatprep.subr.mxu0 0.0
        %2269 = vmatpush1.msra.mxu0 0.0
        %2270 = vmatprep.subr.mxu0 0.0
        %2271 = vmatpush1.msra.mxu0 0.0
        %2272 = vmatprep.subr.mxu0 0.0
        %2273 = vmatpush1.msra.mxu0 0.0
        %2274 = vmatprep.subr.mxu0 0.0
        %2275 = vmatpush1.msra.mxu0 0.0
        %2276 = vmatprep.subr.mxu0 0.0
        %2277 = vmatpush1.msra.mxu0 0.0
        %2278 = vmatprep.subr.mxu0 0.0
        %2279 = vmatpush1.msra.mxu0 0.0
        %2280 = vmatprep.subr.mxu0 0.0
        %2281 = vmatpush1.msra.mxu0 0.0
        %2282 = vmatprep.subr.mxu0 0.0
        %2283 = vmatpush1.msra.mxu0 0.0
        %2284 = vmatprep.subr.mxu0 0.0
        %2285 = vmatpush1.msra.mxu0 0.0
        %2286 = vmatprep.subr.mxu0 0.0
        %2287 = vmatpush1.msra.mxu0 0.0
        %2288 = vmatprep.mubr.f32.mxu0 %v2219
        %2289 = vmatmul.mubr.f32.gmra.mrb[0].mxu0 %v2193
        %v2290 = vpop.f32.mrb[0].mxu0
        %v2291 = vadd.f32 0.0, %v2290
        %v2292 = vpop.f32.mrb[0].mxu0
        %2293 = vmatprep.mubr.f32.mxu0 %v2222
        %2294 = vmatmul.mubr.f32.gmra.mrb[0].mxu0 %v2195
        %v2295 = vpop.f32.mrb[0].mxu0
        %v2296 = vadd.f32 0.0, %v2295
        %v2297 = vpop.f32.mrb[0].mxu0
        %2298 = vdwg.mxu0
        %s2299 = scalar_lea.vmem %s7, 160
        %v2300 = vld [vmem:[%s2299] sm:$0xff]
        %v2301 = vld [vmem:[%s2299 + $0x8] sm:$0xff]
        %v2302 = vld [vmem:[%s2299 + $0x10] sm:$0xff]
        %v2303 = vld [vmem:[%s2299 + $0x18] sm:$0xff]
        %v2304 = vld [vmem:[%s2299 + $0x20] sm:$0xff]
        %v2305 = vld [vmem:[%s2299 + $0x28] sm:$0xff]
        %v2306 = vld [vmem:[%s2299 + $0x30] sm:$0xff]
        %v2307 = vld [vmem:[%s2299 + $0x38] sm:$0xff]
        %v2308 = vld [vmem:[%s2299 + $0x40] sm:$0xff]
        %v2309 = vld [vmem:[%s2299 + $0x48] sm:$0xff]
        %v2310 = vld [vmem:[%s2299 + $0x50] sm:$0xff]
        %v2311 = vld [vmem:[%s2299 + $0x58] sm:$0xff]
        %v2312 = vld [vmem:[%s2299 + $0x60] sm:$0xff]
        %v2313 = vld [vmem:[%s2299 + $0x68] sm:$0xff]
        %v2314 = vld [vmem:[%s2299 + $0x70] sm:$0xff]
        %v2315 = vld [vmem:[%s2299 + $0x78] sm:$0xff]
        %v2316 = vld [vmem:[%s2299 + $0x80] sm:$0xff]
        %v2317 = vld [vmem:[%s2299 + $0x88] sm:$0xff]
        %v2318 = vld [vmem:[%s2299 + $0x90] sm:$0xff]
        %v2319 = vld [vmem:[%s2299 + $0x98] sm:$0xff]
        %2320 = vmatprep.subr.mxu0 0.0
        %2321 = vmatpush1.msra.mxu0 %v2300
        %2322 = vmatprep.subr.mxu0 0.0
        %2323 = vmatpush1.msra.mxu0 %v2301
        %2324 = vmatprep.subr.mxu0 0.0
        %2325 = vmatpush1.msra.mxu0 %v2302
        %2326 = vmatprep.subr.mxu0 0.0
        %2327 = vmatpush1.msra.mxu0 %v2303
        %2328 = vmatprep.subr.mxu0 0.0
        %2329 = vmatpush1.msra.mxu0 %v2304
        %2330 = vmatprep.subr.mxu0 0.0
        %2331 = vmatpush1.msra.mxu0 %v2305
        %2332 = vmatprep.subr.mxu0 0.0
        %2333 = vmatpush1.msra.mxu0 %v2306
        %2334 = vmatprep.subr.mxu0 0.0
        %2335 = vmatpush1.msra.mxu0 %v2307
        %2336 = vmatprep.subr.mxu0 0.0
        %2337 = vmatpush1.msra.mxu0 %v2308
        %2338 = vmatprep.subr.mxu0 0.0
        %2339 = vmatpush1.msra.mxu0 %v2309
        %2340 = vmatprep.subr.mxu0 0.0
        %2341 = vmatpush1.msra.mxu0 %v2310
        %2342 = vmatprep.subr.mxu0 0.0
        %2343 = vmatpush1.msra.mxu0 %v2311
        %2344 = vmatprep.subr.mxu0 0.0
        %2345 = vmatpush1.msra.mxu0 %v2312
        %2346 = vmatprep.subr.mxu0 0.0
        %2347 = vmatpush1.msra.mxu0 %v2313
        %2348 = vmatprep.subr.mxu0 0.0
        %2349 = vmatpush1.msra.mxu0 %v2314
        %2350 = vmatprep.subr.mxu0 0.0
        %2351 = vmatpush1.msra.mxu0 %v2315
        %2352 = vmatprep.subr.mxu0 0.0
        %2353 = vmatpush1.msra.mxu0 %v2316
        %2354 = vmatprep.subr.mxu0 0.0
        %2355 = vmatpush1.msra.mxu0 %v2317
        %2356 = vmatprep.subr.mxu0 0.0
        %2357 = vmatpush1.msra.mxu0 %v2318
        %2358 = vmatprep.subr.mxu0 0.0
        %2359 = vmatpush1.msra.mxu0 %v2319
        %2360 = vmatprep.subr.mxu0 0.0
        %2361 = vmatpush1.msra.mxu0 0.0
        %2362 = vmatprep.subr.mxu0 0.0
        %2363 = vmatpush1.msra.mxu0 0.0
        %2364 = vmatprep.subr.mxu0 0.0
        %2365 = vmatpush1.msra.mxu0 0.0
        %2366 = vmatprep.subr.mxu0 0.0
        %2367 = vmatpush1.msra.mxu0 0.0
        %2368 = vmatprep.subr.mxu0 0.0
        %2369 = vmatpush1.msra.mxu0 0.0
        %2370 = vmatprep.subr.mxu0 0.0
        %2371 = vmatpush1.msra.mxu0 0.0
        %2372 = vmatprep.subr.mxu0 0.0
        %2373 = vmatpush1.msra.mxu0 0.0
        %2374 = vmatprep.subr.mxu0 0.0
        %2375 = vmatpush1.msra.mxu0 0.0
        %2376 = vmatprep.subr.mxu0 0.0
        %2377 = vmatpush1.msra.mxu0 0.0
        %2378 = vmatprep.subr.mxu0 0.0
        %2379 = vmatpush1.msra.mxu0 0.0
        %2380 = vmatprep.subr.mxu0 0.0
        %2381 = vmatpush1.msra.mxu0 0.0
        %2382 = vmatprep.subr.mxu0 0.0
        %2383 = vmatpush1.msra.mxu0 0.0
        %2384 = vmatprep.mubr.f32.mxu0 %v2219
        %2385 = vmatmul.mubr.f32.gmra.mrb[0].mxu0 %v2193
        %v2386 = vpop.f32.mrb[0].mxu0
        %v2387 = vadd.f32 0.0, %v2386
        %v2388 = vpop.f32.mrb[0].mxu0
        %2389 = vmatprep.mubr.f32.mxu0 %v2222
        %2390 = vmatmul.mubr.f32.gmra.mrb[0].mxu0 %v2195
        %v2391 = vpop.f32.mrb[0].mxu0
        %v2392 = vadd.f32 0.0, %v2391
        %v2393 = vpop.f32.mrb[0].mxu0
        %2394 = vdwg.mxu0
        %v2395 = vmax.f32 %v2291, %v2387
        %v2396 = vmax.f32 %v2296, %v2392
        %v2397 = vld [vmem:[%s8] sm:$0x1f]
        %vm2398 = vcmask 80896
        %v2400 = vsel %vm2398, %v2397, 0
        %vm2402 = vcmask 1041408
        %v2404 = vsel %vm2402, %v2396, 0
        %2406 = vmatprep.subr.mxu0 0.0
        %2407 = vmatpush1.msra.mxu0 %v2395
        %2408 = vmatprep.subr.mxu0 0.0
        %2409 = vmatpush1.msra.mxu0 %v2404
        %2410 = vmatprep.subr.mxu0 0.0
        %2411 = vmatpush1.msra.mxu0 0.0
        %2412 = vmatprep.subr.mxu0 0.0
        %2413 = vmatpush1.msra.mxu0 0.0
        %2414 = vmatprep.subr.mxu0 0.0
        %2415 = vmatpush1.msra.mxu0 0.0
        %2416 = vmatprep.subr.mxu0 0.0
        %2417 = vmatpush1.msra.mxu0 0.0
        %2418 = vmatprep.subr.mxu0 0.0
        %2419 = vmatpush1.msra.mxu0 0.0
        %2420 = vmatprep.subr.mxu0 0.0
        %2421 = vmatpush1.msra.mxu0 0.0
        %2422 = vmatprep.subr.mxu0 0.0
        %2423 = vmatpush1.msra.mxu0 0.0
        %2424 = vmatprep.subr.mxu0 0.0
        %2425 = vmatpush1.msra.mxu0 0.0
        %2426 = vmatprep.subr.mxu0 0.0
        %2427 = vmatpush1.msra.mxu0 0.0
        %2428 = vmatprep.subr.mxu0 0.0
        %2429 = vmatpush1.msra.mxu0 0.0
        %2430 = vmatprep.subr.mxu0 0.0
        %2431 = vmatpush1.msra.mxu0 0.0
        %2432 = vmatprep.subr.mxu0 0.0
        %2433 = vmatpush1.msra.mxu0 0.0
        %2434 = vmatprep.subr.mxu0 0.0
        %2435 = vmatpush1.msra.mxu0 0.0
        %2436 = vmatprep.subr.mxu0 0.0
        %2437 = vmatpush1.msra.mxu0 0.0
        %2438 = vmatprep.subr.mxu0 0.0
        %2439 = vmatpush1.msra.mxu0 0.0
        %2440 = vmatprep.subr.mxu0 0.0
        %2441 = vmatpush1.msra.mxu0 0.0
        %2442 = vmatprep.subr.mxu0 0.0
        %2443 = vmatpush1.msra.mxu0 0.0
        %2444 = vmatprep.subr.mxu0 0.0
        %2445 = vmatpush1.msra.mxu0 0.0
        %2446 = vmatprep.subr.mxu0 0.0
        %2447 = vmatpush1.msra.mxu0 0.0
        %2448 = vmatprep.subr.mxu0 0.0
        %2449 = vmatpush1.msra.mxu0 0.0
        %2450 = vmatprep.subr.mxu0 0.0
        %2451 = vmatpush1.msra.mxu0 0.0
        %2452 = vmatprep.subr.mxu0 0.0
        %2453 = vmatpush1.msra.mxu0 0.0
        %2454 = vmatprep.subr.mxu0 0.0
        %2455 = vmatpush1.msra.mxu0 0.0
        %2456 = vmatprep.subr.mxu0 0.0
        %2457 = vmatpush1.msra.mxu0 0.0
        %2458 = vmatprep.subr.mxu0 0.0
        %2459 = vmatpush1.msra.mxu0 0.0
        %2460 = vmatprep.subr.mxu0 0.0
        %2461 = vmatpush1.msra.mxu0 0.0
        %2462 = vmatprep.subr.mxu0 0.0
        %2463 = vmatpush1.msra.mxu0 0.0
        %2464 = vmatprep.subr.mxu0 0.0
        %2465 = vmatpush1.msra.mxu0 0.0
        %2466 = vmatprep.subr.mxu0 0.0
        %2467 = vmatpush1.msra.mxu0 0.0
        %2468 = vmatprep.subr.mxu0 0.0
        %2469 = vmatpush1.msra.mxu0 0.0
        %2470 = vmatprep.mubr.f32.mxu0 0.0
        %2471 = vmatmul.mubr.f32.gmra.mrb[0].mxu0 %v2400
        %v2472 = vpop.f32.mrb[0].mxu0
        %v2473 = vadd.f32 0.0, %v2472
        %v2474 = vpop.f32.mrb[0].mxu0
        %2475 = vdwg.mxu0
        %s2476 = scalar_lea.vmem %s8, 8
        %v2477 = vld [vmem:[%s2476] sm:$0x1f]
        %v2479 = vsel %vm2398, %v2477, 0
        %2481 = vmatprep.subr.mxu0 0.0
        %2482 = vmatpush1.msra.mxu0 %v2395
        %2483 = vmatprep.subr.mxu0 0.0
        %2484 = vmatpush1.msra.mxu0 %v2404
        %2485 = vmatprep.subr.mxu0 0.0
        %2486 = vmatpush1.msra.mxu0 0.0
        %2487 = vmatprep.subr.mxu0 0.0
        %2488 = vmatpush1.msra.mxu0 0.0
        %2489 = vmatprep.subr.mxu0 0.0
        %2490 = vmatpush1.msra.mxu0 0.0
        %2491 = vmatprep.subr.mxu0 0.0
        %2492 = vmatpush1.msra.mxu0 0.0
        %2493 = vmatprep.subr.mxu0 0.0
        %2494 = vmatpush1.msra.mxu0 0.0
        %2495 = vmatprep.subr.mxu0 0.0
        %2496 = vmatpush1.msra.mxu0 0.0
        %2497 = vmatprep.subr.mxu0 0.0
        %2498 = vmatpush1.msra.mxu0 0.0
        %2499 = vmatprep.subr.mxu0 0.0
        %2500 = vmatpush1.msra.mxu0 0.0
        %2501 = vmatprep.subr.mxu0 0.0
        %2502 = vmatpush1.msra.mxu0 0.0
        %2503 = vmatprep.subr.mxu0 0.0
        %2504 = vmatpush1.msra.mxu0 0.0
        %2505 = vmatprep.subr.mxu0 0.0
        %2506 = vmatpush1.msra.mxu0 0.0
        %2507 = vmatprep.subr.mxu0 0.0
        %2508 = vmatpush1.msra.mxu0 0.0
        %2509 = vmatprep.subr.mxu0 0.0
        %2510 = vmatpush1.msra.mxu0 0.0
        %2511 = vmatprep.subr.mxu0 0.0
        %2512 = vmatpush1.msra.mxu0 0.0
        %2513 = vmatprep.subr.mxu0 0.0
        %2514 = vmatpush1.msra.mxu0 0.0
        %2515 = vmatprep.subr.mxu0 0.0
        %2516 = vmatpush1.msra.mxu0 0.0
        %2517 = vmatprep.subr.mxu0 0.0
        %2518 = vmatpush1.msra.mxu0 0.0
        %2519 = vmatprep.subr.mxu0 0.0
        %2520 = vmatpush1.msra.mxu0 0.0
        %2521 = vmatprep.subr.mxu0 0.0
        %2522 = vmatpush1.msra.mxu0 0.0
        %2523 = vmatprep.subr.mxu0 0.0
        %2524 = vmatpush1.msra.mxu0 0.0
        %2525 = vmatprep.subr.mxu0 0.0
        %2526 = vmatpush1.msra.mxu0 0.0
        %2527 = vmatprep.subr.mxu0 0.0
        %2528 = vmatpush1.msra.mxu0 0.0
        %2529 = vmatprep.subr.mxu0 0.0
        %2530 = vmatpush1.msra.mxu0 0.0
        %2531 = vmatprep.subr.mxu0 0.0
        %2532 = vmatpush1.msra.mxu0 0.0
        %2533 = vmatprep.subr.mxu0 0.0
        %2534 = vmatpush1.msra.mxu0 0.0
        %2535 = vmatprep.subr.mxu0 0.0
        %2536 = vmatpush1.msra.mxu0 0.0
        %2537 = vmatprep.subr.mxu0 0.0
        %2538 = vmatpush1.msra.mxu0 0.0
        %2539 = vmatprep.subr.mxu0 0.0
        %2540 = vmatpush1.msra.mxu0 0.0
        %2541 = vmatprep.subr.mxu0 0.0
        %2542 = vmatpush1.msra.mxu0 0.0
        %2543 = vmatprep.subr.mxu0 0.0
        %2544 = vmatpush1.msra.mxu0 0.0
        %2545 = vmatprep.mubr.f32.mxu0 0.0
        %2546 = vmatmul.mubr.f32.gmra.mrb[0].mxu0 %v2479
        %v2547 = vpop.f32.mrb[0].mxu0
        %v2548 = vadd.f32 0.0, %v2547
        %v2549 = vpop.f32.mrb[0].mxu0
        %2550 = vdwg.mxu0
        %v2551 = vmax.f32 %v2473, %v2548
        %v2552 = vld [vmem:[%s9] sm:$0xff]
        %v2553 = vld [vmem:[%s9 + $0x8] sm:$0xff]
        %v2554 = vld [vmem:[%s9 + $0x10] sm:$0xff]
        %v2555 = vld [vmem:[%s9 + $0x18] sm:$0xff]
        %v2556 = vld [vmem:[%s9 + $0x20] sm:$0xff]
        %v2557 = vld [vmem:[%s9 + $0x28] sm:$0xff]
        %v2558 = vld [vmem:[%s9 + $0x30] sm:$0xff]
        %v2559 = vld [vmem:[%s9 + $0x38] sm:$0xff]
        %v2560 = vld [vmem:[%s9 + $0x40] sm:$0xff]
        %v2561 = vld [vmem:[%s9 + $0x48] sm:$0xff]
        %v2562 = vld [vmem:[%s9 + $0x50] sm:$0xff]
        %v2563 = vld [vmem:[%s9 + $0x58] sm:$0xff]
        %v2564 = vld [vmem:[%s9 + $0x60] sm:$0xff]
        %v2565 = vld [vmem:[%s9 + $0x68] sm:$0xff]
        %v2566 = vld [vmem:[%s9 + $0x70] sm:$0xff]
        %v2567 = vld [vmem:[%s9 + $0x78] sm:$0xff]
        %v2568 = vld [vmem:[%s9 + $0x80] sm:$0xff]
        %v2569 = vld [vmem:[%s9 + $0x88] sm:$0xff]
        %v2570 = vld [vmem:[%s9 + $0x90] sm:$0xff]
        %v2571 = vld [vmem:[%s9 + $0x98] sm:$0xff]
        %v2573 = vrot.slane %v2551, 1
        %vm2574 = vcmask 654336
        %v2575 = vsel %vm2574, %v2573, 0
        %2577 = vmatprep.subr.mxu0 0.0
        %2578 = vmatpush1.msra.mxu0 %v2562
        %2579 = vmatprep.subr.mxu0 0.0
        %2580 = vmatpush1.msra.mxu0 %v2563
        %2581 = vmatprep.subr.mxu0 0.0
        %2582 = vmatpush1.msra.mxu0 %v2564
        %2583 = vmatprep.subr.mxu0 0.0
        %2584 = vmatpush1.msra.mxu0 %v2565
        %2585 = vmatprep.subr.mxu0 0.0
        %2586 = vmatpush1.msra.mxu0 %v2566
        %2587 = vmatprep.subr.mxu0 0.0
        %2588 = vmatpush1.msra.mxu0 %v2567
        %2589 = vmatprep.subr.mxu0 0.0
        %2590 = vmatpush1.msra.mxu0 %v2568
        %2591 = vmatprep.subr.mxu0 0.0
        %2592 = vmatpush1.msra.mxu0 %v2569
        %2593 = vmatprep.subr.mxu0 0.0
        %2594 = vmatpush1.msra.mxu0 %v2570
        %2595 = vmatprep.subr.mxu0 0.0
        %2596 = vmatpush1.msra.mxu0 %v2571
        %2597 = vmatprep.subr.mxu0 0.0
        %2598 = vmatpush1.msra.mxu0 0.0
        %2599 = vmatprep.subr.mxu0 0.0
        %2600 = vmatpush1.msra.mxu0 0.0
        %2601 = vmatprep.subr.mxu0 0.0
        %2602 = vmatpush1.msra.mxu0 0.0
        %2603 = vmatprep.subr.mxu0 0.0
        %2604 = vmatpush1.msra.mxu0 0.0
        %2605 = vmatprep.subr.mxu0 0.0
        %2606 = vmatpush1.msra.mxu0 0.0
        %2607 = vmatprep.subr.mxu0 0.0
        %2608 = vmatpush1.msra.mxu0 0.0
        %2609 = vmatprep.subr.mxu0 0.0
        %2610 = vmatpush1.msra.mxu0 0.0
        %2611 = vmatprep.subr.mxu0 0.0
        %2612 = vmatpush1.msra.mxu0 0.0
        %2613 = vmatprep.subr.mxu0 0.0
        %2614 = vmatpush1.msra.mxu0 0.0
        %2615 = vmatprep.subr.mxu0 0.0
        %2616 = vmatpush1.msra.mxu0 0.0
        %2617 = vmatprep.subr.mxu0 0.0
        %2618 = vmatpush1.msra.mxu0 0.0
        %2619 = vmatprep.subr.mxu0 0.0
        %2620 = vmatpush1.msra.mxu0 0.0
        %2621 = vmatprep.subr.mxu0 0.0
        %2622 = vmatpush1.msra.mxu0 0.0
        %2623 = vmatprep.subr.mxu0 0.0
        %2624 = vmatpush1.msra.mxu0 0.0
        %2625 = vmatprep.subr.mxu0 0.0
        %2626 = vmatpush1.msra.mxu0 0.0
        %2627 = vmatprep.subr.mxu0 0.0
        %2628 = vmatpush1.msra.mxu0 0.0
        %2629 = vmatprep.subr.mxu0 0.0
        %2630 = vmatpush1.msra.mxu0 0.0
        %2631 = vmatprep.subr.mxu0 0.0
        %2632 = vmatpush1.msra.mxu0 0.0
        %2633 = vmatprep.subr.mxu0 0.0
        %2634 = vmatpush1.msra.mxu0 0.0
        %2635 = vmatprep.subr.mxu0 0.0
        %2636 = vmatpush1.msra.mxu0 0.0
        %2637 = vmatprep.subr.mxu0 0.0
        %2638 = vmatpush1.msra.mxu0 0.0
        %2639 = vmatprep.subr.mxu0 0.0
        %2640 = vmatpush1.msra.mxu0 0.0
        %2641 = vmatprep.mubr.f32.mxu0 0.0
        %2642 = vmatmul.mubr.f32.gmra.mrb[0].mxu0 %v2575
        %v2643 = vpop.f32.mrb[0].mxu0
        %v2644 = vadd.f32 0.0, %v2643
        %v2645 = vpop.f32.mrb[0].mxu0
        %2646 = vdwg.mxu0
        %v2647 = vsel %vm2574, %v2551, 0
        %2649 = vmatprep.subr.mxu0 0.0
        %2650 = vmatpush1.msra.mxu0 %v2552
        %2651 = vmatprep.subr.mxu0 0.0
        %2652 = vmatpush1.msra.mxu0 %v2553
        %2653 = vmatprep.subr.mxu0 0.0
        %2654 = vmatpush1.msra.mxu0 %v2554
        %2655 = vmatprep.subr.mxu0 0.0
        %2656 = vmatpush1.msra.mxu0 %v2555
        %2657 = vmatprep.subr.mxu0 0.0
        %2658 = vmatpush1.msra.mxu0 %v2556
        %2659 = vmatprep.subr.mxu0 0.0
        %2660 = vmatpush1.msra.mxu0 %v2557
        %2661 = vmatprep.subr.mxu0 0.0
        %2662 = vmatpush1.msra.mxu0 %v2558
        %2663 = vmatprep.subr.mxu0 0.0
        %2664 = vmatpush1.msra.mxu0 %v2559
        %2665 = vmatprep.subr.mxu0 0.0
        %2666 = vmatpush1.msra.mxu0 %v2560
        %2667 = vmatprep.subr.mxu0 0.0
        %2668 = vmatpush1.msra.mxu0 %v2561
        %2669 = vmatprep.subr.mxu0 0.0
        %2670 = vmatpush1.msra.mxu0 0.0
        %2671 = vmatprep.subr.mxu0 0.0
        %2672 = vmatpush1.msra.mxu0 0.0
        %2673 = vmatprep.subr.mxu0 0.0
        %2674 = vmatpush1.msra.mxu0 0.0
        %2675 = vmatprep.subr.mxu0 0.0
        %2676 = vmatpush1.msra.mxu0 0.0
        %2677 = vmatprep.subr.mxu0 0.0
        %2678 = vmatpush1.msra.mxu0 0.0
        %2679 = vmatprep.subr.mxu0 0.0
        %2680 = vmatpush1.msra.mxu0 0.0
        %2681 = vmatprep.subr.mxu0 0.0
        %2682 = vmatpush1.msra.mxu0 0.0
        %2683 = vmatprep.subr.mxu0 0.0
        %2684 = vmatpush1.msra.mxu0 0.0
        %2685 = vmatprep.subr.mxu0 0.0
        %2686 = vmatpush1.msra.mxu0 0.0
        %2687 = vmatprep.subr.mxu0 0.0
        %2688 = vmatpush1.msra.mxu0 0.0
        %2689 = vmatprep.subr.mxu0 0.0
        %2690 = vmatpush1.msra.mxu0 0.0
        %2691 = vmatprep.subr.mxu0 0.0
        %2692 = vmatpush1.msra.mxu0 0.0
        %2693 = vmatprep.subr.mxu0 0.0
        %2694 = vmatpush1.msra.mxu0 0.0
        %2695 = vmatprep.subr.mxu0 0.0
        %2696 = vmatpush1.msra.mxu0 0.0
        %2697 = vmatprep.subr.mxu0 0.0
        %2698 = vmatpush1.msra.mxu0 0.0
        %2699 = vmatprep.subr.mxu0 0.0
        %2700 = vmatpush1.msra.mxu0 0.0
        %2701 = vmatprep.subr.mxu0 0.0
        %2702 = vmatpush1.msra.mxu0 0.0
        %2703 = vmatprep.subr.mxu0 0.0
        %2704 = vmatpush1.msra.mxu0 0.0
        %2705 = vmatprep.subr.mxu0 0.0
        %2706 = vmatpush1.msra.mxu0 0.0
        %2707 = vmatprep.subr.mxu0 0.0
        %2708 = vmatpush1.msra.mxu0 0.0
        %2709 = vmatprep.subr.mxu0 0.0
        %2710 = vmatpush1.msra.mxu0 0.0
        %2711 = vmatprep.subr.mxu0 0.0
        %2712 = vmatpush1.msra.mxu0 0.0
        %2713 = vmatprep.mubr.f32.mxu0 0.0
        %2714 = vmatmul.mubr.f32.gmra.mrb[0].mxu0 %v2647
        %v2715 = vpop.f32.mrb[0].mxu0
        %v2716 = vadd.f32 %v2644, %v2715
        %v2717 = vpop.f32.mrb[0].mxu0
        %2718 = vdwg.mxu0
        %v2719 = vld [vmem:[%s9 + $0xa0] sm:$0xff]
        %v2720 = vld [vmem:[%s9 + $0xa8] sm:$0xff]
        %v2721 = vld [vmem:[%s9 + $0xb0] sm:$0xff]
        %v2722 = vld [vmem:[%s9 + $0xb8] sm:$0xff]
        %v2723 = vld [vmem:[%s9 + $0xc0] sm:$0xff]
        %v2724 = vld [vmem:[%s9 + $0xc8] sm:$0xff]
        %v2725 = vld [vmem:[%s9 + $0xd0] sm:$0xff]
        %v2726 = vld [vmem:[%s9 + $0xd8] sm:$0xff]
        %v2727 = vld [vmem:[%s9 + $0xe0] sm:$0xff]
        %v2728 = vld [vmem:[%s9 + $0xe8] sm:$0xff]
        %v2729 = vrot.slane %v2551, 2
        %v2730 = vsel %vm2574, %v2729, 0
        %2732 = vmatprep.subr.mxu0 0.0
        %2733 = vmatpush1.msra.mxu0 %v2719
        %2734 = vmatprep.subr.mxu0 0.0
        %2735 = vmatpush1.msra.mxu0 %v2720
        %2736 = vmatprep.subr.mxu0 0.0
        %2737 = vmatpush1.msra.mxu0 %v2721
        %2738 = vmatprep.subr.mxu0 0.0
        %2739 = vmatpush1.msra.mxu0 %v2722
        %2740 = vmatprep.subr.mxu0 0.0
        %2741 = vmatpush1.msra.mxu0 %v2723
        %2742 = vmatprep.subr.mxu0 0.0
        %2743 = vmatpush1.msra.mxu0 %v2724
        %2744 = vmatprep.subr.mxu0 0.0
        %2745 = vmatpush1.msra.mxu0 %v2725
        %2746 = vmatprep.subr.mxu0 0.0
        %2747 = vmatpush1.msra.mxu0 %v2726
        %2748 = vmatprep.subr.mxu0 0.0
        %2749 = vmatpush1.msra.mxu0 %v2727
        %2750 = vmatprep.subr.mxu0 0.0
        %2751 = vmatpush1.msra.mxu0 %v2728
        %2752 = vmatprep.subr.mxu0 0.0
        %2753 = vmatpush1.msra.mxu0 0.0
        %2754 = vmatprep.subr.mxu0 0.0
        %2755 = vmatpush1.msra.mxu0 0.0
        %2756 = vmatprep.subr.mxu0 0.0
        %2757 = vmatpush1.msra.mxu0 0.0
        %2758 = vmatprep.subr.mxu0 0.0
        %2759 = vmatpush1.msra.mxu0 0.0
        %2760 = vmatprep.subr.mxu0 0.0
        %2761 = vmatpush1.msra.mxu0 0.0
        %2762 = vmatprep.subr.mxu0 0.0
        %2763 = vmatpush1.msra.mxu0 0.0
        %2764 = vmatprep.subr.mxu0 0.0
        %2765 = vmatpush1.msra.mxu0 0.0
        %2766 = vmatprep.subr.mxu0 0.0
        %2767 = vmatpush1.msra.mxu0 0.0
        %2768 = vmatprep.subr.mxu0 0.0
        %2769 = vmatpush1.msra.mxu0 0.0
        %2770 = vmatprep.subr.mxu0 0.0
        %2771 = vmatpush1.msra.mxu0 0.0
        %2772 = vmatprep.subr.mxu0 0.0
        %2773 = vmatpush1.msra.mxu0 0.0
        %2774 = vmatprep.subr.mxu0 0.0
        %2775 = vmatpush1.msra.mxu0 0.0
        %2776 = vmatprep.subr.mxu0 0.0
        %2777 = vmatpush1.msra.mxu0 0.0
        %2778 = vmatprep.subr.mxu0 0.0
        %2779 = vmatpush1.msra.mxu0 0.0
        %2780 = vmatprep.subr.mxu0 0.0
        %2781 = vmatpush1.msra.mxu0 0.0
        %2782 = vmatprep.subr.mxu0 0.0
        %2783 = vmatpush1.msra.mxu0 0.0
        %2784 = vmatprep.subr.mxu0 0.0
        %2785 = vmatpush1.msra.mxu0 0.0
        %2786 = vmatprep.subr.mxu0 0.0
        %2787 = vmatpush1.msra.mxu0 0.0
        %2788 = vmatprep.subr.mxu0 0.0
        %2789 = vmatpush1.msra.mxu0 0.0
        %2790 = vmatprep.subr.mxu0 0.0
        %2791 = vmatpush1.msra.mxu0 0.0
        %2792 = vmatprep.subr.mxu0 0.0
        %2793 = vmatpush1.msra.mxu0 0.0
        %2794 = vmatprep.subr.mxu0 0.0
        %2795 = vmatpush1.msra.mxu0 0.0
        %2796 = vmatprep.mubr.f32.mxu0 0.0
        %2797 = vmatmul.mubr.f32.gmra.mrb[0].mxu0 %v2730
        %v2798 = vpop.f32.mrb[0].mxu0
        %v2799 = vadd.f32 0.0, %v2798
        %v2800 = vpop.f32.mrb[0].mxu0
        %2801 = vdwg.mxu0
        %v2802 = vadd.f32 %v2716, %v2799
        %v2803 = vld [vmem:[%s9 + $0xf0] sm:$0xff]
        %v2804 = vld [vmem:[%s9 + $0xf8] sm:$0xff]
        %v2805 = vld [vmem:[%s9 + $0x100] sm:$0xff]
        %v2806 = vld [vmem:[%s9 + $0x108] sm:$0xff]
        %v2807 = vld [vmem:[%s9 + $0x110] sm:$0xff]
        %v2808 = vld [vmem:[%s9 + $0x118] sm:$0xff]
        %v2809 = vld [vmem:[%s9 + $0x120] sm:$0xff]
        %v2810 = vld [vmem:[%s9 + $0x128] sm:$0xff]
        %v2811 = vld [vmem:[%s9 + $0x130] sm:$0xff]
        %v2812 = vld [vmem:[%s9 + $0x138] sm:$0xff]
        %v2813 = vrot.slane %v2551, 3
        %v2814 = vsel %vm2574, %v2813, 0
        %2816 = vmatprep.subr.mxu0 0.0
        %2817 = vmatpush1.msra.mxu0 %v2803
        %2818 = vmatprep.subr.mxu0 0.0
        %2819 = vmatpush1.msra.mxu0 %v2804
        %2820 = vmatprep.subr.mxu0 0.0
        %2821 = vmatpush1.msra.mxu0 %v2805
        %2822 = vmatprep.subr.mxu0 0.0
        %2823 = vmatpush1.msra.mxu0 %v2806
        %2824 = vmatprep.subr.mxu0 0.0
        %2825 = vmatpush1.msra.mxu0 %v2807
        %2826 = vmatprep.subr.mxu0 0.0
        %2827 = vmatpush1.msra.mxu0 %v2808
        %2828 = vmatprep.subr.mxu0 0.0
        %2829 = vmatpush1.msra.mxu0 %v2809
        %2830 = vmatprep.subr.mxu0 0.0
        %2831 = vmatpush1.msra.mxu0 %v2810
        %2832 = vmatprep.subr.mxu0 0.0
        %2833 = vmatpush1.msra.mxu0 %v2811
        %2834 = vmatprep.subr.mxu0 0.0
        %2835 = vmatpush1.msra.mxu0 %v2812
        %2836 = vmatprep.subr.mxu0 0.0
        %2837 = vmatpush1.msra.mxu0 0.0
        %2838 = vmatprep.subr.mxu0 0.0
        %2839 = vmatpush1.msra.mxu0 0.0
        %2840 = vmatprep.subr.mxu0 0.0
        %2841 = vmatpush1.msra.mxu0 0.0
        %2842 = vmatprep.subr.mxu0 0.0
        %2843 = vmatpush1.msra.mxu0 0.0
        %2844 = vmatprep.subr.mxu0 0.0
        %2845 = vmatpush1.msra.mxu0 0.0
        %2846 = vmatprep.subr.mxu0 0.0
        %2847 = vmatpush1.msra.mxu0 0.0
        %2848 = vmatprep.subr.mxu0 0.0
        %2849 = vmatpush1.msra.mxu0 0.0
        %2850 = vmatprep.subr.mxu0 0.0
        %2851 = vmatpush1.msra.mxu0 0.0
        %2852 = vmatprep.subr.mxu0 0.0
        %2853 = vmatpush1.msra.mxu0 0.0
        %2854 = vmatprep.subr.mxu0 0.0
        %2855 = vmatpush1.msra.mxu0 0.0
        %2856 = vmatprep.subr.mxu0 0.0
        %2857 = vmatpush1.msra.mxu0 0.0
        %2858 = vmatprep.subr.mxu0 0.0
        %2859 = vmatpush1.msra.mxu0 0.0
        %2860 = vmatprep.subr.mxu0 0.0
        %2861 = vmatpush1.msra.mxu0 0.0
        %2862 = vmatprep.subr.mxu0 0.0
        %2863 = vmatpush1.msra.mxu0 0.0
        %2864 = vmatprep.subr.mxu0 0.0
        %2865 = vmatpush1.msra.mxu0 0.0
        %2866 = vmatprep.subr.mxu0 0.0
        %2867 = vmatpush1.msra.mxu0 0.0
        %2868 = vmatprep.subr.mxu0 0.0
        %2869 = vmatpush1.msra.mxu0 0.0
        %2870 = vmatprep.subr.mxu0 0.0
        %2871 = vmatpush1.msra.mxu0 0.0
        %2872 = vmatprep.subr.mxu0 0.0
        %2873 = vmatpush1.msra.mxu0 0.0
        %2874 = vmatprep.subr.mxu0 0.0
        %2875 = vmatpush1.msra.mxu0 0.0
        %2876 = vmatprep.subr.mxu0 0.0
        %2877 = vmatpush1.msra.mxu0 0.0
        %2878 = vmatprep.subr.mxu0 0.0
        %2879 = vmatpush1.msra.mxu0 0.0
        %2880 = vmatprep.mubr.f32.mxu0 0.0
        %2881 = vmatmul.mubr.f32.gmra.mrb[0].mxu0 %v2814
        %v2882 = vpop.f32.mrb[0].mxu0
        %v2883 = vadd.f32 0.0, %v2882
        %v2884 = vpop.f32.mrb[0].mxu0
        %2885 = vdwg.mxu0
        %v2886 = vadd.f32 %v2802, %v2883
        %v2887 = vld [vmem:[%s9 + $0x140] sm:$0xff]
        %v2888 = vld [vmem:[%s9 + $0x148] sm:$0xff]
        %v2889 = vld [vmem:[%s9 + $0x150] sm:$0xff]
        %v2890 = vld [vmem:[%s9 + $0x158] sm:$0xff]
        %v2891 = vld [vmem:[%s9 + $0x160] sm:$0xff]
        %v2892 = vld [vmem:[%s9 + $0x168] sm:$0xff]
        %v2893 = vld [vmem:[%s9 + $0x170] sm:$0xff]
        %v2894 = vld [vmem:[%s9 + $0x178] sm:$0xff]
        %v2895 = vld [vmem:[%s9 + $0x180] sm:$0xff]
        %v2896 = vld [vmem:[%s9 + $0x188] sm:$0xff]
        %v2897 = vrot.slane %v2551, 4
        %v2898 = vsel %vm2574, %v2897, 0
        %2900 = vmatprep.subr.mxu0 0.0
        %2901 = vmatpush1.msra.mxu0 %v2887
        %2902 = vmatprep.subr.mxu0 0.0
        %2903 = vmatpush1.msra.mxu0 %v2888
        %2904 = vmatprep.subr.mxu0 0.0
        %2905 = vmatpush1.msra.mxu0 %v2889
        %2906 = vmatprep.subr.mxu0 0.0
        %2907 = vmatpush1.msra.mxu0 %v2890
        %2908 = vmatprep.subr.mxu0 0.0
        %2909 = vmatpush1.msra.mxu0 %v2891
        %2910 = vmatprep.subr.mxu0 0.0
        %2911 = vmatpush1.msra.mxu0 %v2892
        %2912 = vmatprep.subr.mxu0 0.0
        %2913 = vmatpush1.msra.mxu0 %v2893
        %2914 = vmatprep.subr.mxu0 0.0
        %2915 = vmatpush1.msra.mxu0 %v2894
        %2916 = vmatprep.subr.mxu0 0.0
        %2917 = vmatpush1.msra.mxu0 %v2895
        %2918 = vmatprep.subr.mxu0 0.0
        %2919 = vmatpush1.msra.mxu0 %v2896
        %2920 = vmatprep.subr.mxu0 0.0
        %2921 = vmatpush1.msra.mxu0 0.0
        %2922 = vmatprep.subr.mxu0 0.0
        %2923 = vmatpush1.msra.mxu0 0.0
        %2924 = vmatprep.subr.mxu0 0.0
        %2925 = vmatpush1.msra.mxu0 0.0
        %2926 = vmatprep.subr.mxu0 0.0
        %2927 = vmatpush1.msra.mxu0 0.0
        %2928 = vmatprep.subr.mxu0 0.0
        %2929 = vmatpush1.msra.mxu0 0.0
        %2930 = vmatprep.subr.mxu0 0.0
        %2931 = vmatpush1.msra.mxu0 0.0
        %2932 = vmatprep.subr.mxu0 0.0
        %2933 = vmatpush1.msra.mxu0 0.0
        %2934 = vmatprep.subr.mxu0 0.0
        %2935 = vmatpush1.msra.mxu0 0.0
        %2936 = vmatprep.subr.mxu0 0.0
        %2937 = vmatpush1.msra.mxu0 0.0
        %2938 = vmatprep.subr.mxu0 0.0
        %2939 = vmatpush1.msra.mxu0 0.0
        %2940 = vmatprep.subr.mxu0 0.0
        %2941 = vmatpush1.msra.mxu0 0.0
        %2942 = vmatprep.subr.mxu0 0.0
        %2943 = vmatpush1.msra.mxu0 0.0
        %2944 = vmatprep.subr.mxu0 0.0
        %2945 = vmatpush1.msra.mxu0 0.0
        %2946 = vmatprep.subr.mxu0 0.0
        %2947 = vmatpush1.msra.mxu0 0.0
        %2948 = vmatprep.subr.mxu0 0.0
        %2949 = vmatpush1.msra.mxu0 0.0
        %2950 = vmatprep.subr.mxu0 0.0
        %2951 = vmatpush1.msra.mxu0 0.0
        %2952 = vmatprep.subr.mxu0 0.0
        %2953 = vmatpush1.msra.mxu0 0.0
        %2954 = vmatprep.subr.mxu0 0.0
        %2955 = vmatpush1.msra.mxu0 0.0
        %2956 = vmatprep.subr.mxu0 0.0
        %2957 = vmatpush1.msra.mxu0 0.0
        %2958 = vmatprep.subr.mxu0 0.0
        %2959 = vmatpush1.msra.mxu0 0.0
        %2960 = vmatprep.subr.mxu0 0.0
        %2961 = vmatpush1.msra.mxu0 0.0
        %2962 = vmatprep.subr.mxu0 0.0
        %2963 = vmatpush1.msra.mxu0 0.0
        %2964 = vmatprep.mubr.f32.mxu0 0.0
        %2965 = vmatmul.mubr.f32.gmra.mrb[0].mxu0 %v2898
        %v2966 = vpop.f32.mrb[0].mxu0
        %v2967 = vadd.f32 0.0, %v2966
        %v2968 = vpop.f32.mrb[0].mxu0
        %2969 = vdwg.mxu0
        %v2970 = vadd.f32 %v2886, %v2967
        %v2971 = vld [vmem:[%s10] sm:$0x1]
        %v2972 = vadd.f32 %v2970, %v2971
        %v2973 = vmax.f32 %v2972, 0.0
        %v2974 = vld [vmem:[%s11] sm:$0xff]
        %v2975 = vld [vmem:[%s11 + $0x8] sm:$0xff]
        %v2976 = vld [vmem:[%s11 + $0x10] sm:$0xff]
        %v2977 = vld [vmem:[%s11 + $0x18] sm:$0xff]
        %v2978 = vld [vmem:[%s11 + $0x20] sm:$0xff]
        %v2979 = vld [vmem:[%s11 + $0x28] sm:$0xff]
        %v2980 = vld [vmem:[%s11 + $0x30] sm:$0xff]
        %v2981 = vld [vmem:[%s11 + $0x38] sm:$0xff]
        %v2982 = vld [vmem:[%s11 + $0x40] sm:$0xff]
        %v2983 = vld [vmem:[%s11 + $0x48] sm:$0xff]
        %v2984 = vld [vmem:[%s11 + $0x50] sm:$0xff]
        %v2985 = vld [vmem:[%s11 + $0x58] sm:$0xff]
        %v2986 = vld [vmem:[%s11 + $0x60] sm:$0xff]
        %v2987 = vld [vmem:[%s11 + $0x68] sm:$0xff]
        %v2988 = vld [vmem:[%s11 + $0x70] sm:$0xff]
        %v2989 = vld [vmem:[%s12] sm:$0x1]
        %vm2990 = vcmask 982016
        %v2992 = vsel %vm2990, %v2973, 0
        %2994 = vmatprep.subr.mxu0 0.0
        %2995 = vmatpush1.msra.mxu0 %v2974
        %2996 = vmatprep.subr.mxu0 0.0
        %2997 = vmatpush1.msra.mxu0 %v2975
        %2998 = vmatprep.subr.mxu0 0.0
        %2999 = vmatpush1.msra.mxu0 %v2976
        %3000 = vmatprep.subr.mxu0 0.0
        %3001 = vmatpush1.msra.mxu0 %v2977
        %3002 = vmatprep.subr.mxu0 0.0
        %3003 = vmatpush1.msra.mxu0 %v2978
        %3004 = vmatprep.subr.mxu0 0.0
        %3005 = vmatpush1.msra.mxu0 %v2979
        %3006 = vmatprep.subr.mxu0 0.0
        %3007 = vmatpush1.msra.mxu0 %v2980
        %3008 = vmatprep.subr.mxu0 0.0
        %3009 = vmatpush1.msra.mxu0 %v2981
        %3010 = vmatprep.subr.mxu0 0.0
        %3011 = vmatpush1.msra.mxu0 %v2982
        %3012 = vmatprep.subr.mxu0 0.0
        %3013 = vmatpush1.msra.mxu0 %v2983
        %3014 = vmatprep.subr.mxu0 0.0
        %3015 = vmatpush1.msra.mxu0 %v2984
        %3016 = vmatprep.subr.mxu0 0.0
        %3017 = vmatpush1.msra.mxu0 %v2985
        %3018 = vmatprep.subr.mxu0 0.0
        %3019 = vmatpush1.msra.mxu0 %v2986
        %3020 = vmatprep.subr.mxu0 0.0
        %3021 = vmatpush1.msra.mxu0 %v2987
        %3022 = vmatprep.subr.mxu0 0.0
        %3023 = vmatpush1.msra.mxu0 %v2988
        %3024 = vmatprep.subr.mxu0 0.0
        %3025 = vmatpush1.msra.mxu0 0.0
        %3026 = vmatprep.subr.mxu0 0.0
        %3027 = vmatpush1.msra.mxu0 0.0
        %3028 = vmatprep.subr.mxu0 0.0
        %3029 = vmatpush1.msra.mxu0 0.0
        %3030 = vmatprep.subr.mxu0 0.0
        %3031 = vmatpush1.msra.mxu0 0.0
        %3032 = vmatprep.subr.mxu0 0.0
        %3033 = vmatpush1.msra.mxu0 0.0
        %3034 = vmatprep.subr.mxu0 0.0
        %3035 = vmatpush1.msra.mxu0 0.0
        %3036 = vmatprep.subr.mxu0 0.0
        %3037 = vmatpush1.msra.mxu0 0.0
        %3038 = vmatprep.subr.mxu0 0.0
        %3039 = vmatpush1.msra.mxu0 0.0
        %3040 = vmatprep.subr.mxu0 0.0
        %3041 = vmatpush1.msra.mxu0 0.0
        %3042 = vmatprep.subr.mxu0 0.0
        %3043 = vmatpush1.msra.mxu0 0.0
        %3044 = vmatprep.subr.mxu0 0.0
        %3045 = vmatpush1.msra.mxu0 0.0
        %3046 = vmatprep.subr.mxu0 0.0
        %3047 = vmatpush1.msra.mxu0 0.0
        %3048 = vmatprep.subr.mxu0 0.0
        %3049 = vmatpush1.msra.mxu0 0.0
        %3050 = vmatprep.subr.mxu0 0.0
        %3051 = vmatpush1.msra.mxu0 0.0
        %3052 = vmatprep.subr.mxu0 0.0
        %3053 = vmatpush1.msra.mxu0 0.0
        %3054 = vmatprep.subr.mxu0 0.0
        %3055 = vmatpush1.msra.mxu0 0.0
        %3056 = vmatprep.subr.mxu0 0.0
        %3057 = vmatpush1.msra.mxu0 0.0
        %3058 = vmatprep.mubr.f32.mxu0 0.0
        %3059 = vmatmul.mubr.f32.gmra.mrb[0].mxu0 %v2992
        %v3060 = vpop.f32.mrb[0].mxu0
        %v3061 = vadd.f32 %v2989, %v3060
        %v3062 = vpop.f32.mrb[0].mxu0
        %3063 = vdwg.mxu0
        %v3064 = vmax.f32 %v3061, 0.0
        %v3065 = vld [vmem:[%s13] sm:$0xff]
        %v3066 = vld [vmem:[%s13 + $0x8] sm:$0xff]
        %v3067 = vld [vmem:[%s13 + $0x10] sm:$0xff]
        %v3068 = vld [vmem:[%s13 + $0x18] sm:$0xff]
        %v3069 = vld [vmem:[%s13 + $0x20] sm:$0xff]
        %v3070 = vld [vmem:[%s13 + $0x28] sm:$0xff]
        %v3071 = vld [vmem:[%s13 + $0x30] sm:$0xff]
        %v3072 = vld [vmem:[%s13 + $0x38] sm:$0xff]
        %v3073 = vld [vmem:[%s13 + $0x40] sm:$0xff]
        %v3074 = vld [vmem:[%s13 + $0x48] sm:$0xff]
        %v3075 = vld [vmem:[%s13 + $0x50] sm:$0xf]
        %v3076 = vld [vmem:[%s14] sm:$0x1]
        %v3078 = vsel %vm1649, %v3064, 0
        %v3081 = vsel %vm1433, %v3075, 0
        %3083 = vmatprep.subr.mxu0 0.0
        %3084 = vmatpush1.msra.mxu0 %v3065
        %3085 = vmatprep.subr.mxu0 0.0
        %3086 = vmatpush1.msra.mxu0 %v3066
        %3087 = vmatprep.subr.mxu0 0.0
        %3088 = vmatpush1.msra.mxu0 %v3067
        %3089 = vmatprep.subr.mxu0 0.0
        %3090 = vmatpush1.msra.mxu0 %v3068
        %3091 = vmatprep.subr.mxu0 0.0
        %3092 = vmatpush1.msra.mxu0 %v3069
        %3093 = vmatprep.subr.mxu0 0.0
        %3094 = vmatpush1.msra.mxu0 %v3070
        %3095 = vmatprep.subr.mxu0 0.0
        %3096 = vmatpush1.msra.mxu0 %v3071
        %3097 = vmatprep.subr.mxu0 0.0
        %3098 = vmatpush1.msra.mxu0 %v3072
        %3099 = vmatprep.subr.mxu0 0.0
        %3100 = vmatpush1.msra.mxu0 %v3073
        %3101 = vmatprep.subr.mxu0 0.0
        %3102 = vmatpush1.msra.mxu0 %v3074
        %3103 = vmatprep.subr.mxu0 0.0
        %3104 = vmatpush1.msra.mxu0 %v3081
        %3105 = vmatprep.subr.mxu0 0.0
        %3106 = vmatpush1.msra.mxu0 0.0
        %3107 = vmatprep.subr.mxu0 0.0
        %3108 = vmatpush1.msra.mxu0 0.0
        %3109 = vmatprep.subr.mxu0 0.0
        %3110 = vmatpush1.msra.mxu0 0.0
        %3111 = vmatprep.subr.mxu0 0.0
        %3112 = vmatpush1.msra.mxu0 0.0
        %3113 = vmatprep.subr.mxu0 0.0
        %3114 = vmatpush1.msra.mxu0 0.0
        %3115 = vmatprep.subr.mxu0 0.0
        %3116 = vmatpush1.msra.mxu0 0.0
        %3117 = vmatprep.subr.mxu0 0.0
        %3118 = vmatpush1.msra.mxu0 0.0
        %3119 = vmatprep.subr.mxu0 0.0
        %3120 = vmatpush1.msra.mxu0 0.0
        %3121 = vmatprep.subr.mxu0 0.0
        %3122 = vmatpush1.msra.mxu0 0.0
        %3123 = vmatprep.subr.mxu0 0.0
        %3124 = vmatpush1.msra.mxu0 0.0
        %3125 = vmatprep.subr.mxu0 0.0
        %3126 = vmatpush1.msra.mxu0 0.0
        %3127 = vmatprep.subr.mxu0 0.0
        %3128 = vmatpush1.msra.mxu0 0.0
        %3129 = vmatprep.subr.mxu0 0.0
        %3130 = vmatpush1.msra.mxu0 0.0
        %3131 = vmatprep.subr.mxu0 0.0
        %3132 = vmatpush1.msra.mxu0 0.0
        %3133 = vmatprep.subr.mxu0 0.0
        %3134 = vmatpush1.msra.mxu0 0.0
        %3135 = vmatprep.subr.mxu0 0.0
        %3136 = vmatpush1.msra.mxu0 0.0
        %3137 = vmatprep.subr.mxu0 0.0
        %3138 = vmatpush1.msra.mxu0 0.0
        %3139 = vmatprep.subr.mxu0 0.0
        %3140 = vmatpush1.msra.mxu0 0.0
        %3141 = vmatprep.subr.mxu0 0.0
        %3142 = vmatpush1.msra.mxu0 0.0
        %3143 = vmatprep.subr.mxu0 0.0
        %3144 = vmatpush1.msra.mxu0 0.0
        %3145 = vmatprep.subr.mxu0 0.0
        %3146 = vmatpush1.msra.mxu0 0.0
        %3147 = vmatprep.mubr.f32.mxu0 0.0
        %3148 = vmatmul.mubr.f32.gmra.mrb[0].mxu0 %v3078
        %v3149 = vpop.f32.mrb[0].mxu0
        %v3150 = vadd.f32 %v3076, %v3149
        %v3151 = vpop.f32.mrb[0].mxu0
        %3152 = vdwg.mxu0
        %vm3153 = vcmask 24576
        %v3154 = vsel %vm3153, %v3150, -inf
        %3155 = vmax.xlane.f32.xlu0 %v3154
        %v3156 = vpop.xlane.xlu0 %3155
        %v3157 = vsub.f32 %v3150, %v3156
        %v3158 = vmul.f32 %v3157, 1.442695
        %v3159 = vpow.pop %v3158
        %v3160 = vsel %vm3153, %v3159, 0.0
        %3161 = vadd.xlane.f32.xlu0 %v3160
        %v3162 = vpop.xlane.xlu0 %3161
        %v3163 = vrcp.pop %v3162
        %v3164 = vmul.f32 %v3159, %v3163
        %3165 = vst.msk [vmem:[%s486] sm:$0x1] %vm3153, %v3164
        %s3166 = sand.u32 %s357, 1
        %s3167 = scalar_lea.sflag [#allocation3], %s3166
        %s3168 = sand.u32 %s357, 1
        %s3169 = scalar_lea.vmem [#allocation2], %s3168
        // Predicated region
        $region81: #{forward.1} parent=79 // pred_check
          %p3170 = pneg %p367
        $region82: #{forward.1} parent=79 // pred_check_branch
          %3172 = sbr.rel (%p3170) target = $region84
        $region83: #{forward.1} parent=79 // pred_region
          %s3174 = ssub.s32 16, 16
          %3175 = vsyncadd %s3167, %s3174
          %s3176 = smul.addr %s29, 16
          %s3177 = scalar_lea.hbm %s15, %s3176
          %s3179 = sshll.u32 %s3169, 4
          %s3180 = int_to_ptr.vmem [resolvable:$true] %s3179
          %3182 = dma.vmem_to_hbm [thread:$0]  %s3180, 16, %s3177, %s3167
        $region84: #{forward.1} parent=79 // pred_fallthru
          _
      $region80: #{forward.1} parent=5 // pred_fallthru
        _
      %p3183 = scmp.le.s32.totalorder 2, %s24
      // Predicated region
      $region85: #{forward.1} parent=5 // pred_check
        %p3184 = pneg %p3183
      $region86: #{forward.1} parent=5 // pred_check_branch
        %3186 = sbr.rel (%p3184) target = $region88
      $region87: #{forward.1} parent=5 // pred_region
        %s3187 = ssub.s32 %s24, 2
        // Predicated region
        $region89: #{forward.1} parent=87 // pred_check
          %p3188 = pneg %p373
        $region90: #{forward.1} parent=87 // pred_check_branch
          %3190 = sbr.rel (%p3188) target = $region92
        $region91: #{forward.1} parent=87 // pred_region
          %s3191 = sand.u32 %s358, 1
          %s3192 = scalar_lea.sflag [#allocation3], %s3191
          %s3193 = sand.u32 %s358, 1
          %s3194 = scalar_lea.vmem [#allocation2], %s3193
          %3195 = dma.done %s3192, 16
        $region92: #{forward.1} parent=87 // pred_fallthru
          _
      $region88: #{forward.1} parent=5 // pred_fallthru
        _
    $region6: #{forward.1} parent=1 // loop_footer
      %s28 = sadd.s32 1, %s24
    $region7: #{forward.1} parent=1 // loop_footer_branch
      %23 = sbr.rel target = $region3
    $region8: #{forward.1} parent=1 // loop_exit
      _
    %3196 = vsyncpa [#allocation3], 1
    %s3197 = scalar_lea.sflag [#allocation3], 1
    %3198 = vsyncpa %s3197, 1

</llo_original>
